<compile_context>
chip_gen: v6e
topology: v6e:2x2x1
jax: 0.10.0
libtpu: 0.0.40
codegen_flags: <defaults>
</compile_context>

<pallas_src>
import jax
import jax.numpy as jnp
import numpy as np
from jax.experimental import pallas as pl
from jax.experimental.pallas import tpu as pltpu


def pooling_classifier_kernel(x_ref, w1_ref, scale_ref, shift_ref, wc_ref, bc_ref, out_ref):
    B, T, D = x_ref.shape

    # Build the segment-major (T*B, D) activation matrix from the caller's (B, T, D) layout.
    x2 = jnp.concatenate([x_ref[:, t, :] for t in range(T)], axis=0)
    x2 = x2.astype(jnp.bfloat16)

    # MLP: Linear (bias pre-folded into shift) -> folded BatchNorm affine -> ReLU, all rows at once.
    h = jnp.dot(x2, w1_ref[...], preferred_element_type=jnp.float32)       # (T*B, H) f32
    h = jnp.maximum(h * scale_ref[...] + shift_ref[...], 0.0)

    # Running (cumulative) element-wise max over segments: straight-line maximum chain.
    # Rows t*B:(t+1)*B of h hold segment t for all batch entries.
    cz = h[0:B, :]
    blocks = [cz]
    for t in range(1, T):
        cz = jnp.maximum(cz, h[t * B:(t + 1) * B, :])
        blocks.append(cz)
    cz_all = jnp.concatenate(blocks, axis=0).astype(jnp.bfloat16)          # (T*B, H)

    # All T per-segment classifiers in one wide, lane-dense matmul: (T*B, H) @ (H, T*C).
    out_ref[...] = (jnp.dot(cz_all, wc_ref[...], preferred_element_type=jnp.float32)
                    + bc_ref[...]).astype(out_ref.dtype)


def pack_params(params):
    """One-time host-side packing: fold the Linear bias into the BN shift, pack the
    per-segment classifier weights lane-dense as (H, T*C), cast weights to bf16."""
    w1, b1 = params["w1"], params["b1"]
    scale, shift = params["bn_scale"], params["bn_shift"]
    wc, bc = params["wc"], params["bc"]                      # (T, H, C), (T, 1, C)
    T, H, C = wc.shape
    return {
        "w1": w1.astype(jnp.bfloat16),                       # (D, H)   bf16
        "scale": scale.reshape(1, H),                        # (1, H)   f32
        "shift": (shift + b1 * scale).reshape(1, H),         # (1, H)   f32 (b1 folded in)
        "wc": jnp.transpose(wc, (1, 0, 2)).reshape(H, T * C).astype(jnp.bfloat16),
        "bc": bc.reshape(1, T * C),                          # (1, T*C) f32
    }


def pooling_classifier_forward(x, packed):
    """x: (B, T, D) float32, packed = pack_params(...). Returns (logits (B*T, C), last_out (B, C))."""
    B, T, D = x.shape
    H = packed["w1"].shape[1]
    TC = packed["wc"].shape[1]
    C = TC // T

    out = pl.pallas_call(
        pooling_classifier_kernel,
        out_shape=jax.ShapeDtypeStruct((T * B, TC), jnp.float32),
        grid=(1,),
        in_specs=[
            pl.BlockSpec((B, T, D), lambda i: (0, 0, 0)),    # x            f32
            pl.BlockSpec((D, H),    lambda i: (0, 0)),       # w1           bf16
            pl.BlockSpec((1, H),    lambda i: (0, 0)),       # BN scale     f32
            pl.BlockSpec((1, H),    lambda i: (0, 0)),       # BN shift+b1  f32
            pl.BlockSpec((H, TC),   lambda i: (0, 0)),       # packed wc    bf16
            pl.BlockSpec((1, TC),   lambda i: (0, 0)),       # packed bc    f32
        ],
        out_specs=pl.BlockSpec((T * B, TC), lambda i: (0, 0)),
        compiler_params=pltpu.CompilerParams(
            dimension_semantics=("arbitrary",)),
    )(x, packed["w1"], packed["scale"], packed["shift"], packed["wc"], packed["bc"])

    # Select the diagonal blocks: logits[b, t] = out[t*B + b, t*C:(t+1)*C].
    out4 = out.reshape(T, B, T, C)
    idx = jnp.arange(T)
    logits_btc = jnp.transpose(out4[idx, :, idx, :], (1, 0, 2))   # (B, T, C)
    last_out = logits_btc[:, -1, :]                               # (B, C)
    logits = logits_btc.reshape(B * T, C)                         # (B*T, C)
    return logits, last_out


def init_params(key, input_dim, num_segments, num_classes, hidden=4096):
    ks = jax.random.split(key, 8)
    w1 = jax.random.normal(ks[0], (input_dim, hidden), jnp.float32) * 0.02
    b1 = jax.random.normal(ks[1], (1, hidden), jnp.float32) * 0.02
    gamma = 1.0 + 0.1 * jax.random.normal(ks[2], (hidden,), jnp.float32)
    beta = 0.1 * jax.random.normal(ks[3], (hidden,), jnp.float32)
    running_mean = 0.05 * jax.random.normal(ks[4], (hidden,), jnp.float32)
    running_var = jnp.abs(1.0 + 0.1 * jax.random.normal(ks[5], (hidden,), jnp.float32))
    eps = 1e-5
    scale = gamma / jnp.sqrt(running_var + eps)
    shift = beta - running_mean * scale
    wc = jax.random.normal(ks[6], (num_segments, hidden, num_classes), jnp.float32) * 0.02
    bc = jax.random.normal(ks[7], (num_segments, 1, num_classes), jnp.float32) * 0.02
    return {"w1": w1, "b1": b1,
            "bn_scale": scale.reshape(1, hidden), "bn_shift": shift.reshape(1, hidden),
            "wc": wc, "bc": bc}


def reference_forward(x, params):
    """Pure-JAX f32 reference of the same eval-mode forward."""
    B, T, D = x.shape
    h = x.reshape(B * T, D) @ params["w1"] + params["b1"]
    h = h * params["bn_scale"] + params["bn_shift"]
    h = jnp.maximum(h, 0.0)
    H = h.shape[-1]
    z = h.reshape(B, T, H)
    cz = jax.lax.cummax(z, axis=1)                                    # running max over segments
    logits = jnp.einsum("bth,thc->btc", cz, params["wc"]) + params["bc"].reshape(1, T, -1)
    return logits.reshape(B * T, -1), logits[:, -1, :]


if __name__ == "__main__":
    B, T, D, C = 2, 4, 64, 16      # batch, num_segments, input_dim (cat_feature_dim), num_classes
    H = 4096                       # MLP width hardcoded in the PyTorch module

    key = jax.random.PRNGKey(0)
    kx, kp = jax.random.split(key)
    x = jax.random.normal(kx, (B, T, D), jnp.float32)
    params = init_params(kp, D, T, C, hidden=H)
    packed = pack_params(params)

    logits, last_out = pooling_classifier_forward(x, packed)
    logits, last_out = jax.block_until_ready((logits, last_out))

    ref_logits, ref_last = reference_forward(x, params)
    np.testing.assert_allclose(np.asarray(logits), np.asarray(ref_logits), rtol=2e-2, atol=2e-2)
    np.testing.assert_allclose(np.asarray(last_out), np.asarray(ref_last), rtol=2e-2, atol=2e-2)
    assert logits.shape == (B * T, C) and last_out.shape == (B, C)

    print("KERNEL_OK")
</pallas_src>

<mosaic_0001>
module attributes {stable_mosaic.version = 11 : i64} {
  func.func @pooling_classifier_kernel(%arg0: i32, %arg1: memref<2x4x64xf32, #tpu.memory_space<vmem>>, %arg2: memref<64x4096xbf16, #tpu.memory_space<vmem>>, %arg3: memref<1x4096xf32, #tpu.memory_space<vmem>>, %arg4: memref<1x4096xf32, #tpu.memory_space<vmem>>, %arg5: memref<4096x64xbf16, #tpu.memory_space<vmem>>, %arg6: memref<1x64xf32, #tpu.memory_space<vmem>>, %arg7: memref<8x64xf32, #tpu.memory_space<vmem>>) attributes {dimension_semantics = [#tpu.dimension_semantics<arbitrary>], iteration_bounds = array<i64: 1>, scalar_prefetch = 0 : i64, scratch_operands = 0 : i64, tpu.core_type = #tpu.core_type<tc>, window_params = [{pipeline_mode = #tpu.pipeline_mode<synchronous>, transform_indices = @transform_0, window_bounds = array<i64: 2, 4, 64>}, {pipeline_mode = #tpu.pipeline_mode<synchronous>, transform_indices = @transform_1, window_bounds = array<i64: 64, 4096>}, {pipeline_mode = #tpu.pipeline_mode<synchronous>, transform_indices = @transform_2, window_bounds = array<i64: 1, 4096>}, {pipeline_mode = #tpu.pipeline_mode<synchronous>, transform_indices = @transform_3, window_bounds = array<i64: 1, 4096>}, {pipeline_mode = #tpu.pipeline_mode<synchronous>, transform_indices = @transform_4, window_bounds = array<i64: 4096, 64>}, {pipeline_mode = #tpu.pipeline_mode<synchronous>, transform_indices = @transform_5, window_bounds = array<i64: 1, 64>}, {pipeline_mode = #tpu.pipeline_mode<synchronous>, transform_indices = @transform_6, window_bounds = array<i64: 8, 64>}]} {
    %c0 = arith.constant 0 : index
    %c0_0 = arith.constant 0 : index
    %c0_1 = arith.constant 0 : index
    %0 = vector.load %arg1[%c0, %c0_0, %c0_1] : memref<2x4x64xf32, #tpu.memory_space<vmem>>, vector<2x1x64xf32>
    %1 = vector.shape_cast %0 : vector<2x1x64xf32> to vector<2x64xf32>
    %c0_2 = arith.constant 0 : index
    %c1 = arith.constant 1 : index
    %c0_3 = arith.constant 0 : index
    %2 = vector.load %arg1[%c0_2, %c1, %c0_3] : memref<2x4x64xf32, #tpu.memory_space<vmem>>, vector<2x1x64xf32>
    %3 = vector.shape_cast %2 : vector<2x1x64xf32> to vector<2x64xf32>
    %c0_4 = arith.constant 0 : index
    %c2 = arith.constant 2 : index
    %c0_5 = arith.constant 0 : index
    %4 = vector.load %arg1[%c0_4, %c2, %c0_5] : memref<2x4x64xf32, #tpu.memory_space<vmem>>, vector<2x1x64xf32>
    %5 = vector.shape_cast %4 : vector<2x1x64xf32> to vector<2x64xf32>
    %c0_6 = arith.constant 0 : index
    %c3 = arith.constant 3 : index
    %c0_7 = arith.constant 0 : index
    %6 = vector.load %arg1[%c0_6, %c3, %c0_7] : memref<2x4x64xf32, #tpu.memory_space<vmem>>, vector<2x1x64xf32>
    %7 = vector.shape_cast %6 : vector<2x1x64xf32> to vector<2x64xf32>
    %8 = tpu.concatenate %1, %3, %5, %7 in 0 : vector<2x64xf32>, vector<2x64xf32>, vector<2x64xf32>, vector<2x64xf32> -> vector<8x64xf32>
    %9 = arith.truncf %8 : vector<8x64xf32> to vector<8x64xbf16>
    %c0_8 = arith.constant 0 : index
    %c0_9 = arith.constant 0 : index
    %10 = vector.load %arg2[%c0_8, %c0_9] : memref<64x4096xbf16, #tpu.memory_space<vmem>>, vector<64x4096xbf16>
    %cst = arith.constant dense<0.000000e+00> : vector<8x4096xf32>
    %11 = tpu.matmul %9, %10, %cst {dimension_numbers = #tpu.dot_dimension_numbers<[1], [0], [0], [1], [0, 0, 1, 1], [], []>} : vector<8x64xbf16>, vector<64x4096xbf16>, vector<8x4096xf32> -> vector<8x4096xf32>
    %c0_10 = arith.constant 0 : index
    %c0_11 = arith.constant 0 : index
    %12 = vector.load %arg3[%c0_10, %c0_11] : memref<1x4096xf32, #tpu.memory_space<vmem>>, vector<1x4096xf32>
    %13 = vector.broadcast %12 : vector<1x4096xf32> to vector<8x4096xf32>
    %14 = arith.mulf %11, %13 : vector<8x4096xf32>
    %c0_12 = arith.constant 0 : index
    %c0_13 = arith.constant 0 : index
    %15 = vector.load %arg4[%c0_12, %c0_13] : memref<1x4096xf32, #tpu.memory_space<vmem>>, vector<1x4096xf32>
    %16 = vector.broadcast %15 : vector<1x4096xf32> to vector<8x4096xf32>
    %17 = arith.addf %14, %16 : vector<8x4096xf32>
    %cst_14 = arith.constant 0.000000e+00 : f32
    %18 = vector.broadcast %cst_14 : f32 to vector<8x4096xf32>
    %19 = arith.maximumf %17, %18 : vector<8x4096xf32>
    %20 = vector.extract_strided_slice %19 {offsets = [0, 0], sizes = [2, 4096], strides = [1, 1]} : vector<8x4096xf32> to vector<2x4096xf32>
    %21 = vector.extract_strided_slice %19 {offsets = [2, 0], sizes = [2, 4096], strides = [1, 1]} : vector<8x4096xf32> to vector<2x4096xf32>
    %22 = arith.maximumf %20, %21 : vector<2x4096xf32>
    %23 = vector.extract_strided_slice %19 {offsets = [4, 0], sizes = [2, 4096], strides = [1, 1]} : vector<8x4096xf32> to vector<2x4096xf32>
    %24 = arith.maximumf %22, %23 : vector<2x4096xf32>
    %25 = vector.extract_strided_slice %19 {offsets = [6, 0], sizes = [2, 4096], strides = [1, 1]} : vector<8x4096xf32> to vector<2x4096xf32>
    %26 = arith.maximumf %24, %25 : vector<2x4096xf32>
    %27 = tpu.concatenate %20, %22, %24, %26 in 0 : vector<2x4096xf32>, vector<2x4096xf32>, vector<2x4096xf32>, vector<2x4096xf32> -> vector<8x4096xf32>
    %28 = arith.truncf %27 : vector<8x4096xf32> to vector<8x4096xbf16>
    %c0_15 = arith.constant 0 : index
    %c0_16 = arith.constant 0 : index
    %29 = vector.load %arg5[%c0_15, %c0_16] : memref<4096x64xbf16, #tpu.memory_space<vmem>>, vector<4096x64xbf16>
    %cst_17 = arith.constant dense<0.000000e+00> : vector<8x64xf32>
    %30 = tpu.matmul %28, %29, %cst_17 {dimension_numbers = #tpu.dot_dimension_numbers<[1], [0], [0], [1], [0, 0, 1, 1], [], []>} : vector<8x4096xbf16>, vector<4096x64xbf16>, vector<8x64xf32> -> vector<8x64xf32>
    %c0_18 = arith.constant 0 : index
    %c0_19 = arith.constant 0 : index
    %31 = vector.load %arg6[%c0_18, %c0_19] : memref<1x64xf32, #tpu.memory_space<vmem>>, vector<1x64xf32>
    %32 = vector.broadcast %31 : vector<1x64xf32> to vector<8x64xf32>
    %33 = arith.addf %30, %32 : vector<8x64xf32>
    %c0_20 = arith.constant 0 : index
    %c0_21 = arith.constant 0 : index
    %34 = vector.load %arg7[%c0_20, %c0_21] : memref<8x64xf32, #tpu.memory_space<vmem>>, vector<8x64xf32>
    tpu.vector_store %arg7[%c0_20, %c0_21], %33 {strides = array<i32>} : memref<8x64xf32, #tpu.memory_space<vmem>>, vector<8x64xf32>,
    return
  }
  func.func @transform_0(%arg0: i32) -> (i32, i32, i32) {
    %c0_i32 = arith.constant 0 : i32
    %c0_i32_0 = arith.constant 0 : i32
    %c0_i32_1 = arith.constant 0 : i32
    %c0_i32_2 = arith.constant 0 : i32
    return %c0_i32, %c0_i32_0, %c0_i32_1 : i32, i32, i32
  }
  func.func @transform_1(%arg0: i32) -> (i32, i32) {
    %c0_i32 = arith.constant 0 : i32
    %c0_i32_0 = arith.constant 0 : i32
    %c0_i32_1 = arith.constant 0 : i32
    return %c0_i32, %c0_i32_0 : i32, i32
  }
  func.func @transform_2(%arg0: i32) -> (i32, i32) {
    %c0_i32 = arith.constant 0 : i32
    %c0_i32_0 = arith.constant 0 : i32
    %c0_i32_1 = arith.constant 0 : i32
    return %c0_i32, %c0_i32_0 : i32, i32
  }
  func.func @transform_3(%arg0: i32) -> (i32, i32) {
    %c0_i32 = arith.constant 0 : i32
    %c0_i32_0 = arith.constant 0 : i32
    %c0_i32_1 = arith.constant 0 : i32
    return %c0_i32, %c0_i32_0 : i32, i32
  }
  func.func @transform_4(%arg0: i32) -> (i32, i32) {
    %c0_i32 = arith.constant 0 : i32
    %c0_i32_0 = arith.constant 0 : i32
    %c0_i32_1 = arith.constant 0 : i32
    return %c0_i32, %c0_i32_0 : i32, i32
  }
  func.func @transform_5(%arg0: i32) -> (i32, i32) {
    %c0_i32 = arith.constant 0 : i32
    %c0_i32_0 = arith.constant 0 : i32
    %c0_i32_1 = arith.constant 0 : i32
    return %c0_i32, %c0_i32_0 : i32, i32
  }
  func.func @transform_6(%arg0: i32) -> (i32, i32) {
    %c0_i32 = arith.constant 0 : i32
    %c0_i32_0 = arith.constant 0 : i32
    %c0_i32_1 = arith.constant 0 : i32
    return %c0_i32, %c0_i32_0 : i32, i32
  }
}

</mosaic_0001>

<llo_original>
// kernel: tpu_custom_call.1
$region0: #{tpu_custom_call.1}
  #allocation0 [shape = 'u32[]', space=smem, size = 0x4, offset = 0x4, fixed_abs, tag = 'smem constant byte address 0x4 - core index']
  #allocation1 [shape = 'u32[144,128]{1,0:T(1,128)}', space=vmem, size = 0x12000, scoped, tag = 'internal scratch']
  %s0 = inlined_call_operand.vmem [shape: f32[2,4,64], index: 0, kind: input, shape index: {}]
  %s1 = inlined_call_operand.vmem [shape: bf16[64,4096], index: 1, kind: input, shape index: {}]
  %s2 = inlined_call_operand.vmem [shape: f32[1,4096], index: 2, kind: input, shape index: {}]
  %s3 = inlined_call_operand.vmem [shape: f32[1,4096], index: 3, kind: input, shape index: {}]
  %s4 = inlined_call_operand.vmem [shape: bf16[4096,64], index: 4, kind: input, shape index: {}]
  %s5 = inlined_call_operand.vmem [shape: f32[1,64], index: 5, kind: input, shape index: {}]
  %s6 = inlined_call_operand.hbm [shape: f32[8,64], index: 6, kind: output, shape index: {}]
  %s7 = sld [smem:[#allocation0]]
  $region34: #{tpu_custom_call.1} parent=0
    _
  %s9 = ssub.s32 1, %s7
  %s10 = scalar_select 0, %s9, %s7
  $region1: #{tpu_custom_call.1} parent=0
    #allocation2 [shape = 'u8[4096]{0}', space=vmem, size = 0x1000, scoped, tag = 'output window, operand 0, single buffered']
    #allocation3 [shape = 's32[1]{0}', space=sflag, size = 0x4, scoped, tag = 'scoped memory for tpu_custom_call.1']
    %11 = vsyncpa [#allocation3], 0
    // Predicated region
    $region2: #{tpu_custom_call.1} parent=1 // pred_check
      _
    $region3: #{tpu_custom_call.1} parent=1 // pred_check_branch
      %13 = sbr.rel (0) target = $region5
    $region4: #{tpu_custom_call.1} parent=1 // pred_region
      _
    $region5: #{tpu_custom_call.1} parent=1 // pred_fallthru
      _
    // Predicated region
    $region6: #{tpu_custom_call.1} parent=1 // pred_check
      _
    $region7: #{tpu_custom_call.1} parent=1 // pred_check_branch
      %15 = sbr.rel (0) target = $region9
    $region8: #{tpu_custom_call.1} parent=1 // pred_region
      _
    $region9: #{tpu_custom_call.1} parent=1 // pred_fallthru
      _
    // Predicated region
    $region10: #{tpu_custom_call.1} parent=1 // pred_check
      _
    $region11: #{tpu_custom_call.1} parent=1 // pred_check_branch
      %17 = sbr.rel (0) target = $region13
    $region12: #{tpu_custom_call.1} parent=1 // pred_region
      _
    $region13: #{tpu_custom_call.1} parent=1 // pred_fallthru
      _
    // Predicated region
    $region14: #{tpu_custom_call.1} parent=1 // pred_check
      _
    $region15: #{tpu_custom_call.1} parent=1 // pred_check_branch
      %19 = sbr.rel (0) target = $region17
    $region16: #{tpu_custom_call.1} parent=1 // pred_region
      _
    $region17: #{tpu_custom_call.1} parent=1 // pred_fallthru
      _
    // Predicated region
    $region18: #{tpu_custom_call.1} parent=1 // pred_check
      _
    $region19: #{tpu_custom_call.1} parent=1 // pred_check_branch
      %21 = sbr.rel (0) target = $region21
    $region20: #{tpu_custom_call.1} parent=1 // pred_region
      _
    $region21: #{tpu_custom_call.1} parent=1 // pred_fallthru
      _
    // Predicated region
    $region22: #{tpu_custom_call.1} parent=1 // pred_check
      _
    $region23: #{tpu_custom_call.1} parent=1 // pred_check_branch
      %23 = sbr.rel (0) target = $region25
    $region24: #{tpu_custom_call.1} parent=1 // pred_region
      _
    $region25: #{tpu_custom_call.1} parent=1 // pred_fallthru
      _
    %v25 = vld [vmem:[%s0] sm:$0x1]
    %v26 = vld [vmem:[%s0 + $0x4] sm:$0x1]
    %v27 = vld [vmem:[%s0 + $0x1] sm:$0x1]
    %v28 = vld [vmem:[%s0 + $0x5] sm:$0x1]
    %v29 = vld [vmem:[%s0 + $0x2] sm:$0x1]
    %v30 = vld [vmem:[%s0 + $0x6] sm:$0x1]
    %v31 = vld [vmem:[%s0 + $0x3] sm:$0x1]
    %v32 = vld [vmem:[%s0 + $0x7] sm:$0x1]
    %v35 = vrot.slane %v26, 7
    %vm36 = vcmask 1041409
    %v37 = vsel %vm36, %v35, %v25
    %v41 = vrot.slane %v27, 6
    %v42 = vrot.slane %v28, 5
    %vm43 = vcmask 1043459
    %v44 = vsel %vm43, %v42, %v41
    %v48 = vrot.slane %v29, 4
    %v49 = vrot.slane %v30, 3
    %vm50 = vcmask 1045509
    %v51 = vsel %vm50, %v49, %v48
    %v55 = vrot.slane %v31, 2
    %v56 = vrot.slane %v32, 1
    %vm57 = vcmask 1047559
    %v58 = vsel %vm57, %v56, %v55
    %vm60 = vcmask 1041408
    %v61 = vsel %vm60, %v37, %v44
    %vm62 = vcmask 1043456
    %v63 = vsel %vm62, %v61, %v51
    %vm64 = vcmask 1045504
    %v65 = vsel %vm64, %v63, %v58
    %v66 = vpack.c.bf16 %v65, %v65
    %v67 = vld [vmem:[%s1] sm:$0xff]
    %v68 = vld [vmem:[%s1 + $0x8] sm:$0xff]
    %v69 = vld [vmem:[%s1 + $0x10] sm:$0xff]
    %v70 = vld [vmem:[%s1 + $0x18] sm:$0xff]
    %v71 = vld [vmem:[%s1 + $0x20] sm:$0xff]
    %v72 = vld [vmem:[%s1 + $0x28] sm:$0xff]
    %v73 = vld [vmem:[%s1 + $0x30] sm:$0xff]
    %v74 = vld [vmem:[%s1 + $0x38] sm:$0xff]
    %v75 = vld [vmem:[%s1 + $0x40] sm:$0xff]
    %v76 = vld [vmem:[%s1 + $0x48] sm:$0xff]
    %v77 = vld [vmem:[%s1 + $0x50] sm:$0xff]
    %v78 = vld [vmem:[%s1 + $0x58] sm:$0xff]
    %v79 = vld [vmem:[%s1 + $0x60] sm:$0xff]
    %v80 = vld [vmem:[%s1 + $0x68] sm:$0xff]
    %v81 = vld [vmem:[%s1 + $0x70] sm:$0xff]
    %v82 = vld [vmem:[%s1 + $0x78] sm:$0xff]
    %v83 = vld [vmem:[%s1 + $0x80] sm:$0xff]
    %v84 = vld [vmem:[%s1 + $0x88] sm:$0xff]
    %v85 = vld [vmem:[%s1 + $0x90] sm:$0xff]
    %v86 = vld [vmem:[%s1 + $0x98] sm:$0xff]
    %v87 = vld [vmem:[%s1 + $0xa0] sm:$0xff]
    %v88 = vld [vmem:[%s1 + $0xa8] sm:$0xff]
    %v89 = vld [vmem:[%s1 + $0xb0] sm:$0xff]
    %v90 = vld [vmem:[%s1 + $0xb8] sm:$0xff]
    %v91 = vld [vmem:[%s1 + $0xc0] sm:$0xff]
    %v92 = vld [vmem:[%s1 + $0xc8] sm:$0xff]
    %v93 = vld [vmem:[%s1 + $0xd0] sm:$0xff]
    %v94 = vld [vmem:[%s1 + $0xd8] sm:$0xff]
    %v95 = vld [vmem:[%s1 + $0xe0] sm:$0xff]
    %v96 = vld [vmem:[%s1 + $0xe8] sm:$0xff]
    %v97 = vld [vmem:[%s1 + $0xf0] sm:$0xff]
    %v98 = vld [vmem:[%s1 + $0xf8] sm:$0xff]
    %v99 = vld [vmem:[%s1 + $0x100] sm:$0xff]
    %v100 = vld [vmem:[%s1 + $0x108] sm:$0xff]
    %v101 = vld [vmem:[%s1 + $0x110] sm:$0xff]
    %v102 = vld [vmem:[%s1 + $0x118] sm:$0xff]
    %v103 = vld [vmem:[%s1 + $0x120] sm:$0xff]
    %v104 = vld [vmem:[%s1 + $0x128] sm:$0xff]
    %v105 = vld [vmem:[%s1 + $0x130] sm:$0xff]
    %v106 = vld [vmem:[%s1 + $0x138] sm:$0xff]
    %v107 = vld [vmem:[%s1 + $0x140] sm:$0xff]
    %v108 = vld [vmem:[%s1 + $0x148] sm:$0xff]
    %v109 = vld [vmem:[%s1 + $0x150] sm:$0xff]
    %v110 = vld [vmem:[%s1 + $0x158] sm:$0xff]
    %v111 = vld [vmem:[%s1 + $0x160] sm:$0xff]
    %v112 = vld [vmem:[%s1 + $0x168] sm:$0xff]
    %v113 = vld [vmem:[%s1 + $0x170] sm:$0xff]
    %v114 = vld [vmem:[%s1 + $0x178] sm:$0xff]
    %v115 = vld [vmem:[%s1 + $0x180] sm:$0xff]
    %v116 = vld [vmem:[%s1 + $0x188] sm:$0xff]
    %v117 = vld [vmem:[%s1 + $0x190] sm:$0xff]
    %v118 = vld [vmem:[%s1 + $0x198] sm:$0xff]
    %v119 = vld [vmem:[%s1 + $0x1a0] sm:$0xff]
    %v120 = vld [vmem:[%s1 + $0x1a8] sm:$0xff]
    %v121 = vld [vmem:[%s1 + $0x1b0] sm:$0xff]
    %v122 = vld [vmem:[%s1 + $0x1b8] sm:$0xff]
    %v123 = vld [vmem:[%s1 + $0x1c0] sm:$0xff]
    %v124 = vld [vmem:[%s1 + $0x1c8] sm:$0xff]
    %v125 = vld [vmem:[%s1 + $0x1d0] sm:$0xff]
    %v126 = vld [vmem:[%s1 + $0x1d8] sm:$0xff]
    %v127 = vld [vmem:[%s1 + $0x1e0] sm:$0xff]
    %v128 = vld [vmem:[%s1 + $0x1e8] sm:$0xff]
    %v129 = vld [vmem:[%s1 + $0x1f0] sm:$0xff]
    %v130 = vld [vmem:[%s1 + $0x1f8] sm:$0xff]
    %v131 = vld [vmem:[%s1 + $0x200] sm:$0xff]
    %v132 = vld [vmem:[%s1 + $0x208] sm:$0xff]
    %v133 = vld [vmem:[%s1 + $0x210] sm:$0xff]
    %v134 = vld [vmem:[%s1 + $0x218] sm:$0xff]
    %v135 = vld [vmem:[%s1 + $0x220] sm:$0xff]
    %v136 = vld [vmem:[%s1 + $0x228] sm:$0xff]
    %v137 = vld [vmem:[%s1 + $0x230] sm:$0xff]
    %v138 = vld [vmem:[%s1 + $0x238] sm:$0xff]
    %v139 = vld [vmem:[%s1 + $0x240] sm:$0xff]
    %v140 = vld [vmem:[%s1 + $0x248] sm:$0xff]
    %v141 = vld [vmem:[%s1 + $0x250] sm:$0xff]
    %v142 = vld [vmem:[%s1 + $0x258] sm:$0xff]
    %v143 = vld [vmem:[%s1 + $0x260] sm:$0xff]
    %v144 = vld [vmem:[%s1 + $0x268] sm:$0xff]
    %v145 = vld [vmem:[%s1 + $0x270] sm:$0xff]
    %v146 = vld [vmem:[%s1 + $0x278] sm:$0xff]
    %v147 = vld [vmem:[%s1 + $0x280] sm:$0xff]
    %v148 = vld [vmem:[%s1 + $0x288] sm:$0xff]
    %v149 = vld [vmem:[%s1 + $0x290] sm:$0xff]
    %v150 = vld [vmem:[%s1 + $0x298] sm:$0xff]
    %v151 = vld [vmem:[%s1 + $0x2a0] sm:$0xff]
    %v152 = vld [vmem:[%s1 + $0x2a8] sm:$0xff]
    %v153 = vld [vmem:[%s1 + $0x2b0] sm:$0xff]
    %v154 = vld [vmem:[%s1 + $0x2b8] sm:$0xff]
    %v155 = vld [vmem:[%s1 + $0x2c0] sm:$0xff]
    %v156 = vld [vmem:[%s1 + $0x2c8] sm:$0xff]
    %v157 = vld [vmem:[%s1 + $0x2d0] sm:$0xff]
    %v158 = vld [vmem:[%s1 + $0x2d8] sm:$0xff]
    %v159 = vld [vmem:[%s1 + $0x2e0] sm:$0xff]
    %v160 = vld [vmem:[%s1 + $0x2e8] sm:$0xff]
    %v161 = vld [vmem:[%s1 + $0x2f0] sm:$0xff]
    %v162 = vld [vmem:[%s1 + $0x2f8] sm:$0xff]
    %v163 = vld [vmem:[%s1 + $0x300] sm:$0xff]
    %v164 = vld [vmem:[%s1 + $0x308] sm:$0xff]
    %v165 = vld [vmem:[%s1 + $0x310] sm:$0xff]
    %v166 = vld [vmem:[%s1 + $0x318] sm:$0xff]
    %v167 = vld [vmem:[%s1 + $0x320] sm:$0xff]
    %v168 = vld [vmem:[%s1 + $0x328] sm:$0xff]
    %v169 = vld [vmem:[%s1 + $0x330] sm:$0xff]
    %v170 = vld [vmem:[%s1 + $0x338] sm:$0xff]
    %v171 = vld [vmem:[%s1 + $0x340] sm:$0xff]
    %v172 = vld [vmem:[%s1 + $0x348] sm:$0xff]
    %v173 = vld [vmem:[%s1 + $0x350] sm:$0xff]
    %v174 = vld [vmem:[%s1 + $0x358] sm:$0xff]
    %v175 = vld [vmem:[%s1 + $0x360] sm:$0xff]
    %v176 = vld [vmem:[%s1 + $0x368] sm:$0xff]
    %v177 = vld [vmem:[%s1 + $0x370] sm:$0xff]
    %v178 = vld [vmem:[%s1 + $0x378] sm:$0xff]
    %v179 = vld [vmem:[%s1 + $0x380] sm:$0xff]
    %v180 = vld [vmem:[%s1 + $0x388] sm:$0xff]
    %v181 = vld [vmem:[%s1 + $0x390] sm:$0xff]
    %v182 = vld [vmem:[%s1 + $0x398] sm:$0xff]
    %v183 = vld [vmem:[%s1 + $0x3a0] sm:$0xff]
    %v184 = vld [vmem:[%s1 + $0x3a8] sm:$0xff]
    %v185 = vld [vmem:[%s1 + $0x3b0] sm:$0xff]
    %v186 = vld [vmem:[%s1 + $0x3b8] sm:$0xff]
    %v187 = vld [vmem:[%s1 + $0x3c0] sm:$0xff]
    %v188 = vld [vmem:[%s1 + $0x3c8] sm:$0xff]
    %v189 = vld [vmem:[%s1 + $0x3d0] sm:$0xff]
    %v190 = vld [vmem:[%s1 + $0x3d8] sm:$0xff]
    %v191 = vld [vmem:[%s1 + $0x3e0] sm:$0xff]
    %v192 = vld [vmem:[%s1 + $0x3e8] sm:$0xff]
    %v193 = vld [vmem:[%s1 + $0x3f0] sm:$0xff]
    %v194 = vld [vmem:[%s1 + $0x3f8] sm:$0xff]
    %v323 = vunpack.c.l.b16 %v67
    %v324 = vunpack.c.h.b16 %v67
    %v325 = vunpack.c.l.b16 %v68
    %v326 = vunpack.c.h.b16 %v68
    %v327 = vunpack.c.l.b16 %v69
    %v328 = vunpack.c.h.b16 %v69
    %v329 = vunpack.c.l.b16 %v70
    %v330 = vunpack.c.h.b16 %v70
    %v331 = vunpack.c.l.b16 %v71
    %v332 = vunpack.c.h.b16 %v71
    %v333 = vunpack.c.l.b16 %v72
    %v334 = vunpack.c.h.b16 %v72
    %v335 = vunpack.c.l.b16 %v73
    %v336 = vunpack.c.h.b16 %v73
    %v337 = vunpack.c.l.b16 %v74
    %v338 = vunpack.c.h.b16 %v74
    %v339 = vunpack.c.l.b16 %v75
    %v340 = vunpack.c.h.b16 %v75
    %v341 = vunpack.c.l.b16 %v76
    %v342 = vunpack.c.h.b16 %v76
    %v343 = vunpack.c.l.b16 %v77
    %v344 = vunpack.c.h.b16 %v77
    %v345 = vunpack.c.l.b16 %v78
    %v346 = vunpack.c.h.b16 %v78
    %v347 = vunpack.c.l.b16 %v79
    %v348 = vunpack.c.h.b16 %v79
    %v349 = vunpack.c.l.b16 %v80
    %v350 = vunpack.c.h.b16 %v80
    %v351 = vunpack.c.l.b16 %v81
    %v352 = vunpack.c.h.b16 %v81
    %v353 = vunpack.c.l.b16 %v82
    %v354 = vunpack.c.h.b16 %v82
    %v355 = vunpack.c.l.b16 %v83
    %v356 = vunpack.c.h.b16 %v83
    %v357 = vunpack.c.l.b16 %v84
    %v358 = vunpack.c.h.b16 %v84
    %v359 = vunpack.c.l.b16 %v85
    %v360 = vunpack.c.h.b16 %v85
    %v361 = vunpack.c.l.b16 %v86
    %v362 = vunpack.c.h.b16 %v86
    %v363 = vunpack.c.l.b16 %v87
    %v364 = vunpack.c.h.b16 %v87
    %v365 = vunpack.c.l.b16 %v88
    %v366 = vunpack.c.h.b16 %v88
    %v367 = vunpack.c.l.b16 %v89
    %v368 = vunpack.c.h.b16 %v89
    %v369 = vunpack.c.l.b16 %v90
    %v370 = vunpack.c.h.b16 %v90
    %v371 = vunpack.c.l.b16 %v91
    %v372 = vunpack.c.h.b16 %v91
    %v373 = vunpack.c.l.b16 %v92
    %v374 = vunpack.c.h.b16 %v92
    %v375 = vunpack.c.l.b16 %v93
    %v376 = vunpack.c.h.b16 %v93
    %v377 = vunpack.c.l.b16 %v94
    %v378 = vunpack.c.h.b16 %v94
    %v379 = vunpack.c.l.b16 %v95
    %v380 = vunpack.c.h.b16 %v95
    %v381 = vunpack.c.l.b16 %v96
    %v382 = vunpack.c.h.b16 %v96
    %v383 = vunpack.c.l.b16 %v97
    %v384 = vunpack.c.h.b16 %v97
    %v385 = vunpack.c.l.b16 %v98
    %v386 = vunpack.c.h.b16 %v98
    %v387 = vunpack.c.l.b16 %v99
    %v388 = vunpack.c.h.b16 %v99
    %v389 = vunpack.c.l.b16 %v100
    %v390 = vunpack.c.h.b16 %v100
    %v391 = vunpack.c.l.b16 %v101
    %v392 = vunpack.c.h.b16 %v101
    %v393 = vunpack.c.l.b16 %v102
    %v394 = vunpack.c.h.b16 %v102
    %v395 = vunpack.c.l.b16 %v103
    %v396 = vunpack.c.h.b16 %v103
    %v397 = vunpack.c.l.b16 %v104
    %v398 = vunpack.c.h.b16 %v104
    %v399 = vunpack.c.l.b16 %v105
    %v400 = vunpack.c.h.b16 %v105
    %v401 = vunpack.c.l.b16 %v106
    %v402 = vunpack.c.h.b16 %v106
    %v403 = vunpack.c.l.b16 %v107
    %v404 = vunpack.c.h.b16 %v107
    %v405 = vunpack.c.l.b16 %v108
    %v406 = vunpack.c.h.b16 %v108
    %v407 = vunpack.c.l.b16 %v109
    %v408 = vunpack.c.h.b16 %v109
    %v409 = vunpack.c.l.b16 %v110
    %v410 = vunpack.c.h.b16 %v110
    %v411 = vunpack.c.l.b16 %v111
    %v412 = vunpack.c.h.b16 %v111
    %v413 = vunpack.c.l.b16 %v112
    %v414 = vunpack.c.h.b16 %v112
    %v415 = vunpack.c.l.b16 %v113
    %v416 = vunpack.c.h.b16 %v113
    %v417 = vunpack.c.l.b16 %v114
    %v418 = vunpack.c.h.b16 %v114
    %v419 = vunpack.c.l.b16 %v115
    %v420 = vunpack.c.h.b16 %v115
    %v421 = vunpack.c.l.b16 %v116
    %v422 = vunpack.c.h.b16 %v116
    %v423 = vunpack.c.l.b16 %v117
    %v424 = vunpack.c.h.b16 %v117
    %v425 = vunpack.c.l.b16 %v118
    %v426 = vunpack.c.h.b16 %v118
    %v427 = vunpack.c.l.b16 %v119
    %v428 = vunpack.c.h.b16 %v119
    %v429 = vunpack.c.l.b16 %v120
    %v430 = vunpack.c.h.b16 %v120
    %v431 = vunpack.c.l.b16 %v121
    %v432 = vunpack.c.h.b16 %v121
    %v433 = vunpack.c.l.b16 %v122
    %v434 = vunpack.c.h.b16 %v122
    %v435 = vunpack.c.l.b16 %v123
    %v436 = vunpack.c.h.b16 %v123
    %v437 = vunpack.c.l.b16 %v124
    %v438 = vunpack.c.h.b16 %v124
    %v439 = vunpack.c.l.b16 %v125
    %v440 = vunpack.c.h.b16 %v125
    %v441 = vunpack.c.l.b16 %v126
    %v442 = vunpack.c.h.b16 %v126
    %v443 = vunpack.c.l.b16 %v127
    %v444 = vunpack.c.h.b16 %v127
    %v445 = vunpack.c.l.b16 %v128
    %v446 = vunpack.c.h.b16 %v128
    %v447 = vunpack.c.l.b16 %v129
    %v448 = vunpack.c.h.b16 %v129
    %v449 = vunpack.c.l.b16 %v130
    %v450 = vunpack.c.h.b16 %v130
    %v451 = vunpack.c.l.b16 %v131
    %v452 = vunpack.c.h.b16 %v131
    %v453 = vunpack.c.l.b16 %v132
    %v454 = vunpack.c.h.b16 %v132
    %v455 = vunpack.c.l.b16 %v133
    %v456 = vunpack.c.h.b16 %v133
    %v457 = vunpack.c.l.b16 %v134
    %v458 = vunpack.c.h.b16 %v134
    %v459 = vunpack.c.l.b16 %v135
    %v460 = vunpack.c.h.b16 %v135
    %v461 = vunpack.c.l.b16 %v136
    %v462 = vunpack.c.h.b16 %v136
    %v463 = vunpack.c.l.b16 %v137
    %v464 = vunpack.c.h.b16 %v137
    %v465 = vunpack.c.l.b16 %v138
    %v466 = vunpack.c.h.b16 %v138
    %v467 = vunpack.c.l.b16 %v139
    %v468 = vunpack.c.h.b16 %v139
    %v469 = vunpack.c.l.b16 %v140
    %v470 = vunpack.c.h.b16 %v140
    %v471 = vunpack.c.l.b16 %v141
    %v472 = vunpack.c.h.b16 %v141
    %v473 = vunpack.c.l.b16 %v142
    %v474 = vunpack.c.h.b16 %v142
    %v475 = vunpack.c.l.b16 %v143
    %v476 = vunpack.c.h.b16 %v143
    %v477 = vunpack.c.l.b16 %v144
    %v478 = vunpack.c.h.b16 %v144
    %v479 = vunpack.c.l.b16 %v145
    %v480 = vunpack.c.h.b16 %v145
    %v481 = vunpack.c.l.b16 %v146
    %v482 = vunpack.c.h.b16 %v146
    %v483 = vunpack.c.l.b16 %v147
    %v484 = vunpack.c.h.b16 %v147
    %v485 = vunpack.c.l.b16 %v148
    %v486 = vunpack.c.h.b16 %v148
    %v487 = vunpack.c.l.b16 %v149
    %v488 = vunpack.c.h.b16 %v149
    %v489 = vunpack.c.l.b16 %v150
    %v490 = vunpack.c.h.b16 %v150
    %v491 = vunpack.c.l.b16 %v151
    %v492 = vunpack.c.h.b16 %v151
    %v493 = vunpack.c.l.b16 %v152
    %v494 = vunpack.c.h.b16 %v152
    %v495 = vunpack.c.l.b16 %v153
    %v496 = vunpack.c.h.b16 %v153
    %v497 = vunpack.c.l.b16 %v154
    %v498 = vunpack.c.h.b16 %v154
    %v499 = vunpack.c.l.b16 %v155
    %v500 = vunpack.c.h.b16 %v155
    %v501 = vunpack.c.l.b16 %v156
    %v502 = vunpack.c.h.b16 %v156
    %v503 = vunpack.c.l.b16 %v157
    %v504 = vunpack.c.h.b16 %v157
    %v505 = vunpack.c.l.b16 %v158
    %v506 = vunpack.c.h.b16 %v158
    %v507 = vunpack.c.l.b16 %v159
    %v508 = vunpack.c.h.b16 %v159
    %v509 = vunpack.c.l.b16 %v160
    %v510 = vunpack.c.h.b16 %v160
    %v511 = vunpack.c.l.b16 %v161
    %v512 = vunpack.c.h.b16 %v161
    %v513 = vunpack.c.l.b16 %v162
    %v514 = vunpack.c.h.b16 %v162
    %v515 = vunpack.c.l.b16 %v163
    %v516 = vunpack.c.h.b16 %v163
    %v517 = vunpack.c.l.b16 %v164
    %v518 = vunpack.c.h.b16 %v164
    %v519 = vunpack.c.l.b16 %v165
    %v520 = vunpack.c.h.b16 %v165
    %v521 = vunpack.c.l.b16 %v166
    %v522 = vunpack.c.h.b16 %v166
    %v523 = vunpack.c.l.b16 %v167
    %v524 = vunpack.c.h.b16 %v167
    %v525 = vunpack.c.l.b16 %v168
    %v526 = vunpack.c.h.b16 %v168
    %v527 = vunpack.c.l.b16 %v169
    %v528 = vunpack.c.h.b16 %v169
    %v529 = vunpack.c.l.b16 %v170
    %v530 = vunpack.c.h.b16 %v170
    %v531 = vunpack.c.l.b16 %v171
    %v532 = vunpack.c.h.b16 %v171
    %v533 = vunpack.c.l.b16 %v172
    %v534 = vunpack.c.h.b16 %v172
    %v535 = vunpack.c.l.b16 %v173
    %v536 = vunpack.c.h.b16 %v173
    %v537 = vunpack.c.l.b16 %v174
    %v538 = vunpack.c.h.b16 %v174
    %v539 = vunpack.c.l.b16 %v175
    %v540 = vunpack.c.h.b16 %v175
    %v541 = vunpack.c.l.b16 %v176
    %v542 = vunpack.c.h.b16 %v176
    %v543 = vunpack.c.l.b16 %v177
    %v544 = vunpack.c.h.b16 %v177
    %v545 = vunpack.c.l.b16 %v178
    %v546 = vunpack.c.h.b16 %v178
    %v547 = vunpack.c.l.b16 %v179
    %v548 = vunpack.c.h.b16 %v179
    %v549 = vunpack.c.l.b16 %v180
    %v550 = vunpack.c.h.b16 %v180
    %v551 = vunpack.c.l.b16 %v181
    %v552 = vunpack.c.h.b16 %v181
    %v553 = vunpack.c.l.b16 %v182
    %v554 = vunpack.c.h.b16 %v182
    %v555 = vunpack.c.l.b16 %v183
    %v556 = vunpack.c.h.b16 %v183
    %v557 = vunpack.c.l.b16 %v184
    %v558 = vunpack.c.h.b16 %v184
    %v559 = vunpack.c.l.b16 %v185
    %v560 = vunpack.c.h.b16 %v185
    %v561 = vunpack.c.l.b16 %v186
    %v562 = vunpack.c.h.b16 %v186
    %v563 = vunpack.c.l.b16 %v187
    %v564 = vunpack.c.h.b16 %v187
    %v565 = vunpack.c.l.b16 %v188
    %v566 = vunpack.c.h.b16 %v188
    %v567 = vunpack.c.l.b16 %v189
    %v568 = vunpack.c.h.b16 %v189
    %v569 = vunpack.c.l.b16 %v190
    %v570 = vunpack.c.h.b16 %v190
    %v571 = vunpack.c.l.b16 %v191
    %v572 = vunpack.c.h.b16 %v191
    %v573 = vunpack.c.l.b16 %v192
    %v574 = vunpack.c.h.b16 %v192
    %v575 = vunpack.c.l.b16 %v193
    %v576 = vunpack.c.h.b16 %v193
    %v577 = vunpack.c.l.b16 %v194
    %v578 = vunpack.c.h.b16 %v194
    %v579 = vpack.c.b16 %v355, %v323
    %v580 = vpack.c.b16 %v356, %v324
    %v581 = vpack.c.b16 %v357, %v325
    %v582 = vpack.c.b16 %v358, %v326
    %v583 = vpack.c.b16 %v359, %v327
    %v584 = vpack.c.b16 %v360, %v328
    %v585 = vpack.c.b16 %v361, %v329
    %v586 = vpack.c.b16 %v362, %v330
    %v587 = vpack.c.b16 %v363, %v331
    %v588 = vpack.c.b16 %v364, %v332
    %v589 = vpack.c.b16 %v365, %v333
    %v590 = vpack.c.b16 %v366, %v334
    %v591 = vpack.c.b16 %v367, %v335
    %v592 = vpack.c.b16 %v368, %v336
    %v593 = vpack.c.b16 %v369, %v337
    %v594 = vpack.c.b16 %v370, %v338
    %v595 = vpack.c.b16 %v371, %v339
    %v596 = vpack.c.b16 %v372, %v340
    %v597 = vpack.c.b16 %v373, %v341
    %v598 = vpack.c.b16 %v374, %v342
    %v599 = vpack.c.b16 %v375, %v343
    %v600 = vpack.c.b16 %v376, %v344
    %v601 = vpack.c.b16 %v377, %v345
    %v602 = vpack.c.b16 %v378, %v346
    %v603 = vpack.c.b16 %v379, %v347
    %v604 = vpack.c.b16 %v380, %v348
    %v605 = vpack.c.b16 %v381, %v349
    %v606 = vpack.c.b16 %v382, %v350
    %v607 = vpack.c.b16 %v383, %v351
    %v608 = vpack.c.b16 %v384, %v352
    %v609 = vpack.c.b16 %v385, %v353
    %v610 = vpack.c.b16 %v386, %v354
    %v611 = vpack.c.b16 %v419, %v387
    %v612 = vpack.c.b16 %v420, %v388
    %v613 = vpack.c.b16 %v421, %v389
    %v614 = vpack.c.b16 %v422, %v390
    %v615 = vpack.c.b16 %v423, %v391
    %v616 = vpack.c.b16 %v424, %v392
    %v617 = vpack.c.b16 %v425, %v393
    %v618 = vpack.c.b16 %v426, %v394
    %v619 = vpack.c.b16 %v427, %v395
    %v620 = vpack.c.b16 %v428, %v396
    %v621 = vpack.c.b16 %v429, %v397
    %v622 = vpack.c.b16 %v430, %v398
    %v623 = vpack.c.b16 %v431, %v399
    %v624 = vpack.c.b16 %v432, %v400
    %v625 = vpack.c.b16 %v433, %v401
    %v626 = vpack.c.b16 %v434, %v402
    %v627 = vpack.c.b16 %v435, %v403
    %v628 = vpack.c.b16 %v436, %v404
    %v629 = vpack.c.b16 %v437, %v405
    %v630 = vpack.c.b16 %v438, %v406
    %v631 = vpack.c.b16 %v439, %v407
    %v632 = vpack.c.b16 %v440, %v408
    %v633 = vpack.c.b16 %v441, %v409
    %v634 = vpack.c.b16 %v442, %v410
    %v635 = vpack.c.b16 %v443, %v411
    %v636 = vpack.c.b16 %v444, %v412
    %v637 = vpack.c.b16 %v445, %v413
    %v638 = vpack.c.b16 %v446, %v414
    %v639 = vpack.c.b16 %v447, %v415
    %v640 = vpack.c.b16 %v448, %v416
    %v641 = vpack.c.b16 %v449, %v417
    %v642 = vpack.c.b16 %v450, %v418
    %v643 = vpack.c.b16 %v483, %v451
    %v644 = vpack.c.b16 %v484, %v452
    %v645 = vpack.c.b16 %v485, %v453
    %v646 = vpack.c.b16 %v486, %v454
    %v647 = vpack.c.b16 %v487, %v455
    %v648 = vpack.c.b16 %v488, %v456
    %v649 = vpack.c.b16 %v489, %v457
    %v650 = vpack.c.b16 %v490, %v458
    %v651 = vpack.c.b16 %v491, %v459
    %v652 = vpack.c.b16 %v492, %v460
    %v653 = vpack.c.b16 %v493, %v461
    %v654 = vpack.c.b16 %v494, %v462
    %v655 = vpack.c.b16 %v495, %v463
    %v656 = vpack.c.b16 %v496, %v464
    %v657 = vpack.c.b16 %v497, %v465
    %v658 = vpack.c.b16 %v498, %v466
    %v659 = vpack.c.b16 %v499, %v467
    %v660 = vpack.c.b16 %v500, %v468
    %v661 = vpack.c.b16 %v501, %v469
    %v662 = vpack.c.b16 %v502, %v470
    %v663 = vpack.c.b16 %v503, %v471
    %v664 = vpack.c.b16 %v504, %v472
    %v665 = vpack.c.b16 %v505, %v473
    %v666 = vpack.c.b16 %v506, %v474
    %v667 = vpack.c.b16 %v507, %v475
    %v668 = vpack.c.b16 %v508, %v476
    %v669 = vpack.c.b16 %v509, %v477
    %v670 = vpack.c.b16 %v510, %v478
    %v671 = vpack.c.b16 %v511, %v479
    %v672 = vpack.c.b16 %v512, %v480
    %v673 = vpack.c.b16 %v513, %v481
    %v674 = vpack.c.b16 %v514, %v482
    %v675 = vpack.c.b16 %v547, %v515
    %v676 = vpack.c.b16 %v548, %v516
    %v677 = vpack.c.b16 %v549, %v517
    %v678 = vpack.c.b16 %v550, %v518
    %v679 = vpack.c.b16 %v551, %v519
    %v680 = vpack.c.b16 %v552, %v520
    %v681 = vpack.c.b16 %v553, %v521
    %v682 = vpack.c.b16 %v554, %v522
    %v683 = vpack.c.b16 %v555, %v523
    %v684 = vpack.c.b16 %v556, %v524
    %v685 = vpack.c.b16 %v557, %v525
    %v686 = vpack.c.b16 %v558, %v526
    %v687 = vpack.c.b16 %v559, %v527
    %v688 = vpack.c.b16 %v560, %v528
    %v689 = vpack.c.b16 %v561, %v529
    %v690 = vpack.c.b16 %v562, %v530
    %v691 = vpack.c.b16 %v563, %v531
    %v692 = vpack.c.b16 %v564, %v532
    %v693 = vpack.c.b16 %v565, %v533
    %v694 = vpack.c.b16 %v566, %v534
    %v695 = vpack.c.b16 %v567, %v535
    %v696 = vpack.c.b16 %v568, %v536
    %v697 = vpack.c.b16 %v569, %v537
    %v698 = vpack.c.b16 %v570, %v538
    %v699 = vpack.c.b16 %v571, %v539
    %v700 = vpack.c.b16 %v572, %v540
    %v701 = vpack.c.b16 %v573, %v541
    %v702 = vpack.c.b16 %v574, %v542
    %v703 = vpack.c.b16 %v575, %v543
    %v704 = vpack.c.b16 %v576, %v544
    %v705 = vpack.c.b16 %v577, %v545
    %v706 = vpack.c.b16 %v578, %v546
    %vm835 = vcmask 523264
    %v837 = vsel %vm835, %v66, 0
    %839 = vmatprep.subr.bf16.mxu0 0
    %840 = vmatpush1.bf16.msra.mxu0 0
    %841 = vmatprep.subr.bf16.mxu0 0
    %842 = vmatpush1.bf16.msra.mxu0 0
    %843 = vmatprep.subr.bf16.mxu0 0
    %844 = vmatpush1.bf16.msra.mxu0 0
    %845 = vmatprep.subr.bf16.mxu0 0
    %846 = vmatpush1.bf16.msra.mxu0 0
    %847 = vmatprep.subr.bf16.mxu0 %v676
    %848 = vmatpush1.bf16.msra.mxu0 %v675
    %849 = vmatprep.subr.bf16.mxu0 %v644
    %850 = vmatpush1.bf16.msra.mxu0 %v643
    %851 = vmatprep.subr.bf16.mxu0 %v612
    %852 = vmatpush1.bf16.msra.mxu0 %v611
    %853 = vmatprep.subr.bf16.mxu0 %v580
    %854 = vmatpush1.bf16.msra.mxu0 %v579
    %855 = vmatprep.subr.bf16.mxu0 0
    %856 = vmatpush2.bf16.msra.mxu0 0
    %857 = vmatprep.subr.bf16.mxu0 0
    %858 = vmatpush2.bf16.msra.mxu0 0
    %859 = vmatprep.subr.bf16.mxu0 0
    %860 = vmatpush2.bf16.msra.mxu0 0
    %861 = vmatprep.subr.bf16.mxu0 0
    %862 = vmatpush2.bf16.msra.mxu0 0
    %863 = vmatprep.subr.bf16.mxu0 0
    %864 = vmatpush2.bf16.msra.mxu0 0
    %865 = vmatprep.subr.bf16.mxu0 0
    %866 = vmatpush2.bf16.msra.mxu0 0
    %867 = vmatprep.subr.bf16.mxu0 0
    %868 = vmatpush2.bf16.msra.mxu0 0
    %869 = vmatprep.subr.bf16.mxu0 0
    %870 = vmatpush2.bf16.msra.mxu0 0
    %871 = vmatprep.mubr.bf16.mxu0 0
    %872 = vmatmul.mubr.bf16.gmra.mxu0 %v837
    %v873 = vpop.f32.mrf.mxu0
    %v874 = vadd.f32 0.0, %v873
    %v875 = vpop.f32.mrf.mxu0
    %v876 = vadd.f32 0.0, %v875
    %v877 = vpop.f32.mrf.mxu0
    %v878 = vpop.f32.mrf.mxu0
    %879 = vdwg.mxu0
    %880 = vmatprep.subr.bf16.mxu0 0
    %881 = vmatpush1.bf16.msra.mxu0 0
    %882 = vmatprep.subr.bf16.mxu0 0
    %883 = vmatpush1.bf16.msra.mxu0 0
    %884 = vmatprep.subr.bf16.mxu0 0
    %885 = vmatpush1.bf16.msra.mxu0 0
    %886 = vmatprep.subr.bf16.mxu0 0
    %887 = vmatpush1.bf16.msra.mxu0 0
    %888 = vmatprep.subr.bf16.mxu0 %v678
    %889 = vmatpush1.bf16.msra.mxu0 %v677
    %890 = vmatprep.subr.bf16.mxu0 %v646
    %891 = vmatpush1.bf16.msra.mxu0 %v645
    %892 = vmatprep.subr.bf16.mxu0 %v614
    %893 = vmatpush1.bf16.msra.mxu0 %v613
    %894 = vmatprep.subr.bf16.mxu0 %v582
    %895 = vmatpush1.bf16.msra.mxu0 %v581
    %896 = vmatprep.subr.bf16.mxu0 0
    %897 = vmatpush2.bf16.msra.mxu0 0
    %898 = vmatprep.subr.bf16.mxu0 0
    %899 = vmatpush2.bf16.msra.mxu0 0
    %900 = vmatprep.subr.bf16.mxu0 0
    %901 = vmatpush2.bf16.msra.mxu0 0
    %902 = vmatprep.subr.bf16.mxu0 0
    %903 = vmatpush2.bf16.msra.mxu0 0
    %904 = vmatprep.subr.bf16.mxu0 0
    %905 = vmatpush2.bf16.msra.mxu0 0
    %906 = vmatprep.subr.bf16.mxu0 0
    %907 = vmatpush2.bf16.msra.mxu0 0
    %908 = vmatprep.subr.bf16.mxu0 0
    %909 = vmatpush2.bf16.msra.mxu0 0
    %910 = vmatprep.subr.bf16.mxu0 0
    %911 = vmatpush2.bf16.msra.mxu0 0
    %912 = vmatprep.mubr.bf16.mxu0 0
    %913 = vmatmul.mubr.bf16.gmra.mxu0 %v837
    %v914 = vpop.f32.mrf.mxu0
    %v915 = vadd.f32 0.0, %v914
    %v916 = vpop.f32.mrf.mxu0
    %v917 = vadd.f32 0.0, %v916
    %v918 = vpop.f32.mrf.mxu0
    %v919 = vpop.f32.mrf.mxu0
    %920 = vdwg.mxu0
    %921 = vmatprep.subr.bf16.mxu0 0
    %922 = vmatpush1.bf16.msra.mxu0 0
    %923 = vmatprep.subr.bf16.mxu0 0
    %924 = vmatpush1.bf16.msra.mxu0 0
    %925 = vmatprep.subr.bf16.mxu0 0
    %926 = vmatpush1.bf16.msra.mxu0 0
    %927 = vmatprep.subr.bf16.mxu0 0
    %928 = vmatpush1.bf16.msra.mxu0 0
    %929 = vmatprep.subr.bf16.mxu0 %v680
    %930 = vmatpush1.bf16.msra.mxu0 %v679
    %931 = vmatprep.subr.bf16.mxu0 %v648
    %932 = vmatpush1.bf16.msra.mxu0 %v647
    %933 = vmatprep.subr.bf16.mxu0 %v616
    %934 = vmatpush1.bf16.msra.mxu0 %v615
    %935 = vmatprep.subr.bf16.mxu0 %v584
    %936 = vmatpush1.bf16.msra.mxu0 %v583
    %937 = vmatprep.subr.bf16.mxu0 0
    %938 = vmatpush2.bf16.msra.mxu0 0
    %939 = vmatprep.subr.bf16.mxu0 0
    %940 = vmatpush2.bf16.msra.mxu0 0
    %941 = vmatprep.subr.bf16.mxu0 0
    %942 = vmatpush2.bf16.msra.mxu0 0
    %943 = vmatprep.subr.bf16.mxu0 0
    %944 = vmatpush2.bf16.msra.mxu0 0
    %945 = vmatprep.subr.bf16.mxu0 0
    %946 = vmatpush2.bf16.msra.mxu0 0
    %947 = vmatprep.subr.bf16.mxu0 0
    %948 = vmatpush2.bf16.msra.mxu0 0
    %949 = vmatprep.subr.bf16.mxu0 0
    %950 = vmatpush2.bf16.msra.mxu0 0
    %951 = vmatprep.subr.bf16.mxu0 0
    %952 = vmatpush2.bf16.msra.mxu0 0
    %953 = vmatprep.mubr.bf16.mxu0 0
    %954 = vmatmul.mubr.bf16.gmra.mxu0 %v837
    %v955 = vpop.f32.mrf.mxu0
    %v956 = vadd.f32 0.0, %v955
    %v957 = vpop.f32.mrf.mxu0
    %v958 = vadd.f32 0.0, %v957
    %v959 = vpop.f32.mrf.mxu0
    %v960 = vpop.f32.mrf.mxu0
    %961 = vdwg.mxu0
    %962 = vmatprep.subr.bf16.mxu0 0
    %963 = vmatpush1.bf16.msra.mxu0 0
    %964 = vmatprep.subr.bf16.mxu0 0
    %965 = vmatpush1.bf16.msra.mxu0 0
    %966 = vmatprep.subr.bf16.mxu0 0
    %967 = vmatpush1.bf16.msra.mxu0 0
    %968 = vmatprep.subr.bf16.mxu0 0
    %969 = vmatpush1.bf16.msra.mxu0 0
    %970 = vmatprep.subr.bf16.mxu0 %v682
    %971 = vmatpush1.bf16.msra.mxu0 %v681
    %972 = vmatprep.subr.bf16.mxu0 %v650
    %973 = vmatpush1.bf16.msra.mxu0 %v649
    %974 = vmatprep.subr.bf16.mxu0 %v618
    %975 = vmatpush1.bf16.msra.mxu0 %v617
    %976 = vmatprep.subr.bf16.mxu0 %v586
    %977 = vmatpush1.bf16.msra.mxu0 %v585
    %978 = vmatprep.subr.bf16.mxu0 0
    %979 = vmatpush2.bf16.msra.mxu0 0
    %980 = vmatprep.subr.bf16.mxu0 0
    %981 = vmatpush2.bf16.msra.mxu0 0
    %982 = vmatprep.subr.bf16.mxu0 0
    %983 = vmatpush2.bf16.msra.mxu0 0
    %984 = vmatprep.subr.bf16.mxu0 0
    %985 = vmatpush2.bf16.msra.mxu0 0
    %986 = vmatprep.subr.bf16.mxu0 0
    %987 = vmatpush2.bf16.msra.mxu0 0
    %988 = vmatprep.subr.bf16.mxu0 0
    %989 = vmatpush2.bf16.msra.mxu0 0
    %990 = vmatprep.subr.bf16.mxu0 0
    %991 = vmatpush2.bf16.msra.mxu0 0
    %992 = vmatprep.subr.bf16.mxu0 0
    %993 = vmatpush2.bf16.msra.mxu0 0
    %994 = vmatprep.mubr.bf16.mxu0 0
    %995 = vmatmul.mubr.bf16.gmra.mxu0 %v837
    %v996 = vpop.f32.mrf.mxu0
    %v997 = vadd.f32 0.0, %v996
    %v998 = vpop.f32.mrf.mxu0
    %v999 = vadd.f32 0.0, %v998
    %v1000 = vpop.f32.mrf.mxu0
    %v1001 = vpop.f32.mrf.mxu0
    %1002 = vdwg.mxu0
    %1003 = vmatprep.subr.bf16.mxu0 0
    %1004 = vmatpush1.bf16.msra.mxu0 0
    %1005 = vmatprep.subr.bf16.mxu0 0
    %1006 = vmatpush1.bf16.msra.mxu0 0
    %1007 = vmatprep.subr.bf16.mxu0 0
    %1008 = vmatpush1.bf16.msra.mxu0 0
    %1009 = vmatprep.subr.bf16.mxu0 0
    %1010 = vmatpush1.bf16.msra.mxu0 0
    %1011 = vmatprep.subr.bf16.mxu0 %v684
    %1012 = vmatpush1.bf16.msra.mxu0 %v683
    %1013 = vmatprep.subr.bf16.mxu0 %v652
    %1014 = vmatpush1.bf16.msra.mxu0 %v651
    %1015 = vmatprep.subr.bf16.mxu0 %v620
    %1016 = vmatpush1.bf16.msra.mxu0 %v619
    %1017 = vmatprep.subr.bf16.mxu0 %v588
    %1018 = vmatpush1.bf16.msra.mxu0 %v587
    %1019 = vmatprep.subr.bf16.mxu0 0
    %1020 = vmatpush2.bf16.msra.mxu0 0
    %1021 = vmatprep.subr.bf16.mxu0 0
    %1022 = vmatpush2.bf16.msra.mxu0 0
    %1023 = vmatprep.subr.bf16.mxu0 0
    %1024 = vmatpush2.bf16.msra.mxu0 0
    %1025 = vmatprep.subr.bf16.mxu0 0
    %1026 = vmatpush2.bf16.msra.mxu0 0
    %1027 = vmatprep.subr.bf16.mxu0 0
    %1028 = vmatpush2.bf16.msra.mxu0 0
    %1029 = vmatprep.subr.bf16.mxu0 0
    %1030 = vmatpush2.bf16.msra.mxu0 0
    %1031 = vmatprep.subr.bf16.mxu0 0
    %1032 = vmatpush2.bf16.msra.mxu0 0
    %1033 = vmatprep.subr.bf16.mxu0 0
    %1034 = vmatpush2.bf16.msra.mxu0 0
    %1035 = vmatprep.mubr.bf16.mxu0 0
    %1036 = vmatmul.mubr.bf16.gmra.mxu0 %v837
    %v1037 = vpop.f32.mrf.mxu0
    %v1038 = vadd.f32 0.0, %v1037
    %v1039 = vpop.f32.mrf.mxu0
    %v1040 = vadd.f32 0.0, %v1039
    %v1041 = vpop.f32.mrf.mxu0
    %v1042 = vpop.f32.mrf.mxu0
    %1043 = vdwg.mxu0
    %1044 = vmatprep.subr.bf16.mxu0 0
    %1045 = vmatpush1.bf16.msra.mxu0 0
    %1046 = vmatprep.subr.bf16.mxu0 0
    %1047 = vmatpush1.bf16.msra.mxu0 0
    %1048 = vmatprep.subr.bf16.mxu0 0
    %1049 = vmatpush1.bf16.msra.mxu0 0
    %1050 = vmatprep.subr.bf16.mxu0 0
    %1051 = vmatpush1.bf16.msra.mxu0 0
    %1052 = vmatprep.subr.bf16.mxu0 %v686
    %1053 = vmatpush1.bf16.msra.mxu0 %v685
    %1054 = vmatprep.subr.bf16.mxu0 %v654
    %1055 = vmatpush1.bf16.msra.mxu0 %v653
    %1056 = vmatprep.subr.bf16.mxu0 %v622
    %1057 = vmatpush1.bf16.msra.mxu0 %v621
    %1058 = vmatprep.subr.bf16.mxu0 %v590
    %1059 = vmatpush1.bf16.msra.mxu0 %v589
    %1060 = vmatprep.subr.bf16.mxu0 0
    %1061 = vmatpush2.bf16.msra.mxu0 0
    %1062 = vmatprep.subr.bf16.mxu0 0
    %1063 = vmatpush2.bf16.msra.mxu0 0
    %1064 = vmatprep.subr.bf16.mxu0 0
    %1065 = vmatpush2.bf16.msra.mxu0 0
    %1066 = vmatprep.subr.bf16.mxu0 0
    %1067 = vmatpush2.bf16.msra.mxu0 0
    %1068 = vmatprep.subr.bf16.mxu0 0
    %1069 = vmatpush2.bf16.msra.mxu0 0
    %1070 = vmatprep.subr.bf16.mxu0 0
    %1071 = vmatpush2.bf16.msra.mxu0 0
    %1072 = vmatprep.subr.bf16.mxu0 0
    %1073 = vmatpush2.bf16.msra.mxu0 0
    %1074 = vmatprep.subr.bf16.mxu0 0
    %1075 = vmatpush2.bf16.msra.mxu0 0
    %1076 = vmatprep.mubr.bf16.mxu0 0
    %1077 = vmatmul.mubr.bf16.gmra.mxu0 %v837
    %v1078 = vpop.f32.mrf.mxu0
    %v1079 = vadd.f32 0.0, %v1078
    %v1080 = vpop.f32.mrf.mxu0
    %v1081 = vadd.f32 0.0, %v1080
    %v1082 = vpop.f32.mrf.mxu0
    %v1083 = vpop.f32.mrf.mxu0
    %1084 = vdwg.mxu0
    %1085 = vmatprep.subr.bf16.mxu0 0
    %1086 = vmatpush1.bf16.msra.mxu0 0
    %1087 = vmatprep.subr.bf16.mxu0 0
    %1088 = vmatpush1.bf16.msra.mxu0 0
    %1089 = vmatprep.subr.bf16.mxu0 0
    %1090 = vmatpush1.bf16.msra.mxu0 0
    %1091 = vmatprep.subr.bf16.mxu0 0
    %1092 = vmatpush1.bf16.msra.mxu0 0
    %1093 = vmatprep.subr.bf16.mxu0 %v688
    %1094 = vmatpush1.bf16.msra.mxu0 %v687
    %1095 = vmatprep.subr.bf16.mxu0 %v656
    %1096 = vmatpush1.bf16.msra.mxu0 %v655
    %1097 = vmatprep.subr.bf16.mxu0 %v624
    %1098 = vmatpush1.bf16.msra.mxu0 %v623
    %1099 = vmatprep.subr.bf16.mxu0 %v592
    %1100 = vmatpush1.bf16.msra.mxu0 %v591
    %1101 = vmatprep.subr.bf16.mxu0 0
    %1102 = vmatpush2.bf16.msra.mxu0 0
    %1103 = vmatprep.subr.bf16.mxu0 0
    %1104 = vmatpush2.bf16.msra.mxu0 0
    %1105 = vmatprep.subr.bf16.mxu0 0
    %1106 = vmatpush2.bf16.msra.mxu0 0
    %1107 = vmatprep.subr.bf16.mxu0 0
    %1108 = vmatpush2.bf16.msra.mxu0 0
    %1109 = vmatprep.subr.bf16.mxu0 0
    %1110 = vmatpush2.bf16.msra.mxu0 0
    %1111 = vmatprep.subr.bf16.mxu0 0
    %1112 = vmatpush2.bf16.msra.mxu0 0
    %1113 = vmatprep.subr.bf16.mxu0 0
    %1114 = vmatpush2.bf16.msra.mxu0 0
    %1115 = vmatprep.subr.bf16.mxu0 0
    %1116 = vmatpush2.bf16.msra.mxu0 0
    %1117 = vmatprep.mubr.bf16.mxu0 0
    %1118 = vmatmul.mubr.bf16.gmra.mxu0 %v837
    %v1119 = vpop.f32.mrf.mxu0
    %v1120 = vadd.f32 0.0, %v1119
    %v1121 = vpop.f32.mrf.mxu0
    %v1122 = vadd.f32 0.0, %v1121
    %v1123 = vpop.f32.mrf.mxu0
    %v1124 = vpop.f32.mrf.mxu0
    %1125 = vdwg.mxu0
    %1126 = vmatprep.subr.bf16.mxu0 0
    %1127 = vmatpush1.bf16.msra.mxu0 0
    %1128 = vmatprep.subr.bf16.mxu0 0
    %1129 = vmatpush1.bf16.msra.mxu0 0
    %1130 = vmatprep.subr.bf16.mxu0 0
    %1131 = vmatpush1.bf16.msra.mxu0 0
    %1132 = vmatprep.subr.bf16.mxu0 0
    %1133 = vmatpush1.bf16.msra.mxu0 0
    %1134 = vmatprep.subr.bf16.mxu0 %v690
    %1135 = vmatpush1.bf16.msra.mxu0 %v689
    %1136 = vmatprep.subr.bf16.mxu0 %v658
    %1137 = vmatpush1.bf16.msra.mxu0 %v657
    %1138 = vmatprep.subr.bf16.mxu0 %v626
    %1139 = vmatpush1.bf16.msra.mxu0 %v625
    %1140 = vmatprep.subr.bf16.mxu0 %v594
    %1141 = vmatpush1.bf16.msra.mxu0 %v593
    %1142 = vmatprep.subr.bf16.mxu0 0
    %1143 = vmatpush2.bf16.msra.mxu0 0
    %1144 = vmatprep.subr.bf16.mxu0 0
    %1145 = vmatpush2.bf16.msra.mxu0 0
    %1146 = vmatprep.subr.bf16.mxu0 0
    %1147 = vmatpush2.bf16.msra.mxu0 0
    %1148 = vmatprep.subr.bf16.mxu0 0
    %1149 = vmatpush2.bf16.msra.mxu0 0
    %1150 = vmatprep.subr.bf16.mxu0 0
    %1151 = vmatpush2.bf16.msra.mxu0 0
    %1152 = vmatprep.subr.bf16.mxu0 0
    %1153 = vmatpush2.bf16.msra.mxu0 0
    %1154 = vmatprep.subr.bf16.mxu0 0
    %1155 = vmatpush2.bf16.msra.mxu0 0
    %1156 = vmatprep.subr.bf16.mxu0 0
    %1157 = vmatpush2.bf16.msra.mxu0 0
    %1158 = vmatprep.mubr.bf16.mxu0 0
    %1159 = vmatmul.mubr.bf16.gmra.mxu0 %v837
    %v1160 = vpop.f32.mrf.mxu0
    %v1161 = vadd.f32 0.0, %v1160
    %v1162 = vpop.f32.mrf.mxu0
    %v1163 = vadd.f32 0.0, %v1162
    %v1164 = vpop.f32.mrf.mxu0
    %v1165 = vpop.f32.mrf.mxu0
    %1166 = vdwg.mxu0
    %1167 = vmatprep.subr.bf16.mxu0 0
    %1168 = vmatpush1.bf16.msra.mxu0 0
    %1169 = vmatprep.subr.bf16.mxu0 0
    %1170 = vmatpush1.bf16.msra.mxu0 0
    %1171 = vmatprep.subr.bf16.mxu0 0
    %1172 = vmatpush1.bf16.msra.mxu0 0
    %1173 = vmatprep.subr.bf16.mxu0 0
    %1174 = vmatpush1.bf16.msra.mxu0 0
    %1175 = vmatprep.subr.bf16.mxu0 %v692
    %1176 = vmatpush1.bf16.msra.mxu0 %v691
    %1177 = vmatprep.subr.bf16.mxu0 %v660
    %1178 = vmatpush1.bf16.msra.mxu0 %v659
    %1179 = vmatprep.subr.bf16.mxu0 %v628
    %1180 = vmatpush1.bf16.msra.mxu0 %v627
    %1181 = vmatprep.subr.bf16.mxu0 %v596
    %1182 = vmatpush1.bf16.msra.mxu0 %v595
    %1183 = vmatprep.subr.bf16.mxu0 0
    %1184 = vmatpush2.bf16.msra.mxu0 0
    %1185 = vmatprep.subr.bf16.mxu0 0
    %1186 = vmatpush2.bf16.msra.mxu0 0
    %1187 = vmatprep.subr.bf16.mxu0 0
    %1188 = vmatpush2.bf16.msra.mxu0 0
    %1189 = vmatprep.subr.bf16.mxu0 0
    %1190 = vmatpush2.bf16.msra.mxu0 0
    %1191 = vmatprep.subr.bf16.mxu0 0
    %1192 = vmatpush2.bf16.msra.mxu0 0
    %1193 = vmatprep.subr.bf16.mxu0 0
    %1194 = vmatpush2.bf16.msra.mxu0 0
    %1195 = vmatprep.subr.bf16.mxu0 0
    %1196 = vmatpush2.bf16.msra.mxu0 0
    %1197 = vmatprep.subr.bf16.mxu0 0
    %1198 = vmatpush2.bf16.msra.mxu0 0
    %1199 = vmatprep.mubr.bf16.mxu0 0
    %1200 = vmatmul.mubr.bf16.gmra.mxu0 %v837
    %v1201 = vpop.f32.mrf.mxu0
    %v1202 = vadd.f32 0.0, %v1201
    %v1203 = vpop.f32.mrf.mxu0
    %v1204 = vadd.f32 0.0, %v1203
    %v1205 = vpop.f32.mrf.mxu0
    %v1206 = vpop.f32.mrf.mxu0
    %1207 = vdwg.mxu0
    %1208 = vmatprep.subr.bf16.mxu0 0
    %1209 = vmatpush1.bf16.msra.mxu0 0
    %1210 = vmatprep.subr.bf16.mxu0 0
    %1211 = vmatpush1.bf16.msra.mxu0 0
    %1212 = vmatprep.subr.bf16.mxu0 0
    %1213 = vmatpush1.bf16.msra.mxu0 0
    %1214 = vmatprep.subr.bf16.mxu0 0
    %1215 = vmatpush1.bf16.msra.mxu0 0
    %1216 = vmatprep.subr.bf16.mxu0 %v694
    %1217 = vmatpush1.bf16.msra.mxu0 %v693
    %1218 = vmatprep.subr.bf16.mxu0 %v662
    %1219 = vmatpush1.bf16.msra.mxu0 %v661
    %1220 = vmatprep.subr.bf16.mxu0 %v630
    %1221 = vmatpush1.bf16.msra.mxu0 %v629
    %1222 = vmatprep.subr.bf16.mxu0 %v598
    %1223 = vmatpush1.bf16.msra.mxu0 %v597
    %1224 = vmatprep.subr.bf16.mxu0 0
    %1225 = vmatpush2.bf16.msra.mxu0 0
    %1226 = vmatprep.subr.bf16.mxu0 0
    %1227 = vmatpush2.bf16.msra.mxu0 0
    %1228 = vmatprep.subr.bf16.mxu0 0
    %1229 = vmatpush2.bf16.msra.mxu0 0
    %1230 = vmatprep.subr.bf16.mxu0 0
    %1231 = vmatpush2.bf16.msra.mxu0 0
    %1232 = vmatprep.subr.bf16.mxu0 0
    %1233 = vmatpush2.bf16.msra.mxu0 0
    %1234 = vmatprep.subr.bf16.mxu0 0
    %1235 = vmatpush2.bf16.msra.mxu0 0
    %1236 = vmatprep.subr.bf16.mxu0 0
    %1237 = vmatpush2.bf16.msra.mxu0 0
    %1238 = vmatprep.subr.bf16.mxu0 0
    %1239 = vmatpush2.bf16.msra.mxu0 0
    %1240 = vmatprep.mubr.bf16.mxu0 0
    %1241 = vmatmul.mubr.bf16.gmra.mxu0 %v837
    %v1242 = vpop.f32.mrf.mxu0
    %v1243 = vadd.f32 0.0, %v1242
    %v1244 = vpop.f32.mrf.mxu0
    %v1245 = vadd.f32 0.0, %v1244
    %v1246 = vpop.f32.mrf.mxu0
    %v1247 = vpop.f32.mrf.mxu0
    %1248 = vdwg.mxu0
    %1249 = vmatprep.subr.bf16.mxu0 0
    %1250 = vmatpush1.bf16.msra.mxu0 0
    %1251 = vmatprep.subr.bf16.mxu0 0
    %1252 = vmatpush1.bf16.msra.mxu0 0
    %1253 = vmatprep.subr.bf16.mxu0 0
    %1254 = vmatpush1.bf16.msra.mxu0 0
    %1255 = vmatprep.subr.bf16.mxu0 0
    %1256 = vmatpush1.bf16.msra.mxu0 0
    %1257 = vmatprep.subr.bf16.mxu0 %v696
    %1258 = vmatpush1.bf16.msra.mxu0 %v695
    %1259 = vmatprep.subr.bf16.mxu0 %v664
    %1260 = vmatpush1.bf16.msra.mxu0 %v663
    %1261 = vmatprep.subr.bf16.mxu0 %v632
    %1262 = vmatpush1.bf16.msra.mxu0 %v631
    %1263 = vmatprep.subr.bf16.mxu0 %v600
    %1264 = vmatpush1.bf16.msra.mxu0 %v599
    %1265 = vmatprep.subr.bf16.mxu0 0
    %1266 = vmatpush2.bf16.msra.mxu0 0
    %1267 = vmatprep.subr.bf16.mxu0 0
    %1268 = vmatpush2.bf16.msra.mxu0 0
    %1269 = vmatprep.subr.bf16.mxu0 0
    %1270 = vmatpush2.bf16.msra.mxu0 0
    %1271 = vmatprep.subr.bf16.mxu0 0
    %1272 = vmatpush2.bf16.msra.mxu0 0
    %1273 = vmatprep.subr.bf16.mxu0 0
    %1274 = vmatpush2.bf16.msra.mxu0 0
    %1275 = vmatprep.subr.bf16.mxu0 0
    %1276 = vmatpush2.bf16.msra.mxu0 0
    %1277 = vmatprep.subr.bf16.mxu0 0
    %1278 = vmatpush2.bf16.msra.mxu0 0
    %1279 = vmatprep.subr.bf16.mxu0 0
    %1280 = vmatpush2.bf16.msra.mxu0 0
    %1281 = vmatprep.mubr.bf16.mxu0 0
    %1282 = vmatmul.mubr.bf16.gmra.mxu0 %v837
    %v1283 = vpop.f32.mrf.mxu0
    %v1284 = vadd.f32 0.0, %v1283
    %v1285 = vpop.f32.mrf.mxu0
    %v1286 = vadd.f32 0.0, %v1285
    %v1287 = vpop.f32.mrf.mxu0
    %v1288 = vpop.f32.mrf.mxu0
    %1289 = vdwg.mxu0
    %1290 = vmatprep.subr.bf16.mxu0 0
    %1291 = vmatpush1.bf16.msra.mxu0 0
    %1292 = vmatprep.subr.bf16.mxu0 0
    %1293 = vmatpush1.bf16.msra.mxu0 0
    %1294 = vmatprep.subr.bf16.mxu0 0
    %1295 = vmatpush1.bf16.msra.mxu0 0
    %1296 = vmatprep.subr.bf16.mxu0 0
    %1297 = vmatpush1.bf16.msra.mxu0 0
    %1298 = vmatprep.subr.bf16.mxu0 %v698
    %1299 = vmatpush1.bf16.msra.mxu0 %v697
    %1300 = vmatprep.subr.bf16.mxu0 %v666
    %1301 = vmatpush1.bf16.msra.mxu0 %v665
    %1302 = vmatprep.subr.bf16.mxu0 %v634
    %1303 = vmatpush1.bf16.msra.mxu0 %v633
    %1304 = vmatprep.subr.bf16.mxu0 %v602
    %1305 = vmatpush1.bf16.msra.mxu0 %v601
    %1306 = vmatprep.subr.bf16.mxu0 0
    %1307 = vmatpush2.bf16.msra.mxu0 0
    %1308 = vmatprep.subr.bf16.mxu0 0
    %1309 = vmatpush2.bf16.msra.mxu0 0
    %1310 = vmatprep.subr.bf16.mxu0 0
    %1311 = vmatpush2.bf16.msra.mxu0 0
    %1312 = vmatprep.subr.bf16.mxu0 0
    %1313 = vmatpush2.bf16.msra.mxu0 0
    %1314 = vmatprep.subr.bf16.mxu0 0
    %1315 = vmatpush2.bf16.msra.mxu0 0
    %1316 = vmatprep.subr.bf16.mxu0 0
    %1317 = vmatpush2.bf16.msra.mxu0 0
    %1318 = vmatprep.subr.bf16.mxu0 0
    %1319 = vmatpush2.bf16.msra.mxu0 0
    %1320 = vmatprep.subr.bf16.mxu0 0
    %1321 = vmatpush2.bf16.msra.mxu0 0
    %1322 = vmatprep.mubr.bf16.mxu0 0
    %1323 = vmatmul.mubr.bf16.gmra.mxu0 %v837
    %v1324 = vpop.f32.mrf.mxu0
    %v1325 = vadd.f32 0.0, %v1324
    %v1326 = vpop.f32.mrf.mxu0
    %v1327 = vadd.f32 0.0, %v1326
    %v1328 = vpop.f32.mrf.mxu0
    %v1329 = vpop.f32.mrf.mxu0
    %1330 = vdwg.mxu0
    %1331 = vmatprep.subr.bf16.mxu0 0
    %1332 = vmatpush1.bf16.msra.mxu0 0
    %1333 = vmatprep.subr.bf16.mxu0 0
    %1334 = vmatpush1.bf16.msra.mxu0 0
    %1335 = vmatprep.subr.bf16.mxu0 0
    %1336 = vmatpush1.bf16.msra.mxu0 0
    %1337 = vmatprep.subr.bf16.mxu0 0
    %1338 = vmatpush1.bf16.msra.mxu0 0
    %1339 = vmatprep.subr.bf16.mxu0 %v700
    %1340 = vmatpush1.bf16.msra.mxu0 %v699
    %1341 = vmatprep.subr.bf16.mxu0 %v668
    %1342 = vmatpush1.bf16.msra.mxu0 %v667
    %1343 = vmatprep.subr.bf16.mxu0 %v636
    %1344 = vmatpush1.bf16.msra.mxu0 %v635
    %1345 = vmatprep.subr.bf16.mxu0 %v604
    %1346 = vmatpush1.bf16.msra.mxu0 %v603
    %1347 = vmatprep.subr.bf16.mxu0 0
    %1348 = vmatpush2.bf16.msra.mxu0 0
    %1349 = vmatprep.subr.bf16.mxu0 0
    %1350 = vmatpush2.bf16.msra.mxu0 0
    %1351 = vmatprep.subr.bf16.mxu0 0
    %1352 = vmatpush2.bf16.msra.mxu0 0
    %1353 = vmatprep.subr.bf16.mxu0 0
    %1354 = vmatpush2.bf16.msra.mxu0 0
    %1355 = vmatprep.subr.bf16.mxu0 0
    %1356 = vmatpush2.bf16.msra.mxu0 0
    %1357 = vmatprep.subr.bf16.mxu0 0
    %1358 = vmatpush2.bf16.msra.mxu0 0
    %1359 = vmatprep.subr.bf16.mxu0 0
    %1360 = vmatpush2.bf16.msra.mxu0 0
    %1361 = vmatprep.subr.bf16.mxu0 0
    %1362 = vmatpush2.bf16.msra.mxu0 0
    %1363 = vmatprep.mubr.bf16.mxu0 0
    %1364 = vmatmul.mubr.bf16.gmra.mxu0 %v837
    %v1365 = vpop.f32.mrf.mxu0
    %v1366 = vadd.f32 0.0, %v1365
    %v1367 = vpop.f32.mrf.mxu0
    %v1368 = vadd.f32 0.0, %v1367
    %v1369 = vpop.f32.mrf.mxu0
    %v1370 = vpop.f32.mrf.mxu0
    %1371 = vdwg.mxu0
    %1372 = vmatprep.subr.bf16.mxu0 0
    %1373 = vmatpush1.bf16.msra.mxu0 0
    %1374 = vmatprep.subr.bf16.mxu0 0
    %1375 = vmatpush1.bf16.msra.mxu0 0
    %1376 = vmatprep.subr.bf16.mxu0 0
    %1377 = vmatpush1.bf16.msra.mxu0 0
    %1378 = vmatprep.subr.bf16.mxu0 0
    %1379 = vmatpush1.bf16.msra.mxu0 0
    %1380 = vmatprep.subr.bf16.mxu0 %v702
    %1381 = vmatpush1.bf16.msra.mxu0 %v701
    %1382 = vmatprep.subr.bf16.mxu0 %v670
    %1383 = vmatpush1.bf16.msra.mxu0 %v669
    %1384 = vmatprep.subr.bf16.mxu0 %v638
    %1385 = vmatpush1.bf16.msra.mxu0 %v637
    %1386 = vmatprep.subr.bf16.mxu0 %v606
    %1387 = vmatpush1.bf16.msra.mxu0 %v605
    %1388 = vmatprep.subr.bf16.mxu0 0
    %1389 = vmatpush2.bf16.msra.mxu0 0
    %1390 = vmatprep.subr.bf16.mxu0 0
    %1391 = vmatpush2.bf16.msra.mxu0 0
    %1392 = vmatprep.subr.bf16.mxu0 0
    %1393 = vmatpush2.bf16.msra.mxu0 0
    %1394 = vmatprep.subr.bf16.mxu0 0
    %1395 = vmatpush2.bf16.msra.mxu0 0
    %1396 = vmatprep.subr.bf16.mxu0 0
    %1397 = vmatpush2.bf16.msra.mxu0 0
    %1398 = vmatprep.subr.bf16.mxu0 0
    %1399 = vmatpush2.bf16.msra.mxu0 0
    %1400 = vmatprep.subr.bf16.mxu0 0
    %1401 = vmatpush2.bf16.msra.mxu0 0
    %1402 = vmatprep.subr.bf16.mxu0 0
    %1403 = vmatpush2.bf16.msra.mxu0 0
    %1404 = vmatprep.mubr.bf16.mxu0 0
    %1405 = vmatmul.mubr.bf16.gmra.mxu0 %v837
    %v1406 = vpop.f32.mrf.mxu0
    %v1407 = vadd.f32 0.0, %v1406
    %v1408 = vpop.f32.mrf.mxu0
    %v1409 = vadd.f32 0.0, %v1408
    %v1410 = vpop.f32.mrf.mxu0
    %v1411 = vpop.f32.mrf.mxu0
    %1412 = vdwg.mxu0
    %1413 = vmatprep.subr.bf16.mxu0 0
    %1414 = vmatpush1.bf16.msra.mxu0 0
    %1415 = vmatprep.subr.bf16.mxu0 0
    %1416 = vmatpush1.bf16.msra.mxu0 0
    %1417 = vmatprep.subr.bf16.mxu0 0
    %1418 = vmatpush1.bf16.msra.mxu0 0
    %1419 = vmatprep.subr.bf16.mxu0 0
    %1420 = vmatpush1.bf16.msra.mxu0 0
    %1421 = vmatprep.subr.bf16.mxu0 %v704
    %1422 = vmatpush1.bf16.msra.mxu0 %v703
    %1423 = vmatprep.subr.bf16.mxu0 %v672
    %1424 = vmatpush1.bf16.msra.mxu0 %v671
    %1425 = vmatprep.subr.bf16.mxu0 %v640
    %1426 = vmatpush1.bf16.msra.mxu0 %v639
    %1427 = vmatprep.subr.bf16.mxu0 %v608
    %1428 = vmatpush1.bf16.msra.mxu0 %v607
    %1429 = vmatprep.subr.bf16.mxu0 0
    %1430 = vmatpush2.bf16.msra.mxu0 0
    %1431 = vmatprep.subr.bf16.mxu0 0
    %1432 = vmatpush2.bf16.msra.mxu0 0
    %1433 = vmatprep.subr.bf16.mxu0 0
    %1434 = vmatpush2.bf16.msra.mxu0 0
    %1435 = vmatprep.subr.bf16.mxu0 0
    %1436 = vmatpush2.bf16.msra.mxu0 0
    %1437 = vmatprep.subr.bf16.mxu0 0
    %1438 = vmatpush2.bf16.msra.mxu0 0
    %1439 = vmatprep.subr.bf16.mxu0 0
    %1440 = vmatpush2.bf16.msra.mxu0 0
    %1441 = vmatprep.subr.bf16.mxu0 0
    %1442 = vmatpush2.bf16.msra.mxu0 0
    %1443 = vmatprep.subr.bf16.mxu0 0
    %1444 = vmatpush2.bf16.msra.mxu0 0
    %1445 = vmatprep.mubr.bf16.mxu0 0
    %1446 = vmatmul.mubr.bf16.gmra.mxu0 %v837
    %v1447 = vpop.f32.mrf.mxu0
    %v1448 = vadd.f32 0.0, %v1447
    %v1449 = vpop.f32.mrf.mxu0
    %v1450 = vadd.f32 0.0, %v1449
    %v1451 = vpop.f32.mrf.mxu0
    %v1452 = vpop.f32.mrf.mxu0
    %1453 = vdwg.mxu0
    %1454 = vmatprep.subr.bf16.mxu0 0
    %1455 = vmatpush1.bf16.msra.mxu0 0
    %1456 = vmatprep.subr.bf16.mxu0 0
    %1457 = vmatpush1.bf16.msra.mxu0 0
    %1458 = vmatprep.subr.bf16.mxu0 0
    %1459 = vmatpush1.bf16.msra.mxu0 0
    %1460 = vmatprep.subr.bf16.mxu0 0
    %1461 = vmatpush1.bf16.msra.mxu0 0
    %1462 = vmatprep.subr.bf16.mxu0 %v706
    %1463 = vmatpush1.bf16.msra.mxu0 %v705
    %1464 = vmatprep.subr.bf16.mxu0 %v674
    %1465 = vmatpush1.bf16.msra.mxu0 %v673
    %1466 = vmatprep.subr.bf16.mxu0 %v642
    %1467 = vmatpush1.bf16.msra.mxu0 %v641
    %1468 = vmatprep.subr.bf16.mxu0 %v610
    %1469 = vmatpush1.bf16.msra.mxu0 %v609
    %1470 = vmatprep.subr.bf16.mxu0 0
    %1471 = vmatpush2.bf16.msra.mxu0 0
    %1472 = vmatprep.subr.bf16.mxu0 0
    %1473 = vmatpush2.bf16.msra.mxu0 0
    %1474 = vmatprep.subr.bf16.mxu0 0
    %1475 = vmatpush2.bf16.msra.mxu0 0
    %1476 = vmatprep.subr.bf16.mxu0 0
    %1477 = vmatpush2.bf16.msra.mxu0 0
    %1478 = vmatprep.subr.bf16.mxu0 0
    %1479 = vmatpush2.bf16.msra.mxu0 0
    %1480 = vmatprep.subr.bf16.mxu0 0
    %1481 = vmatpush2.bf16.msra.mxu0 0
    %1482 = vmatprep.subr.bf16.mxu0 0
    %1483 = vmatpush2.bf16.msra.mxu0 0
    %1484 = vmatprep.subr.bf16.mxu0 0
    %1485 = vmatpush2.bf16.msra.mxu0 0
    %1486 = vmatprep.mubr.bf16.mxu0 0
    %1487 = vmatmul.mubr.bf16.gmra.mxu0 %v837
    %v1488 = vpop.f32.mrf.mxu0
    %v1489 = vadd.f32 0.0, %v1488
    %v1490 = vpop.f32.mrf.mxu0
    %v1491 = vadd.f32 0.0, %v1490
    %v1492 = vpop.f32.mrf.mxu0
    %v1493 = vpop.f32.mrf.mxu0
    %1494 = vdwg.mxu0
    %v1495 = vld [vmem:[%s2] sm:$0xff]
    %v1496 = vld [vmem:[%s2 + $0x8] sm:$0xff]
    %v1497 = vld [vmem:[%s2 + $0x10] sm:$0xff]
    %v1498 = vld [vmem:[%s2 + $0x18] sm:$0xff]
    %v1503 = vlaneseq
    %v1504 = vshrl.u32 %v1503, 7
    %v1505 = vsub.s32 0, %v1504
    %v1506 = vrot.slane %v1495, %v1505
    %v1507 = vlaneseq
    %v1508 = vshrl.u32 %v1507, 7
    %v1509 = vsub.s32 1, %v1508
    %v1510 = vrot.slane %v1495, %v1509
    %v1511 = vlaneseq
    %v1512 = vshrl.u32 %v1511, 7
    %v1513 = vsub.s32 2, %v1512
    %v1514 = vrot.slane %v1495, %v1513
    %v1515 = vlaneseq
    %v1516 = vshrl.u32 %v1515, 7
    %v1517 = vsub.s32 3, %v1516
    %v1518 = vrot.slane %v1495, %v1517
    %v1519 = vlaneseq
    %v1520 = vshrl.u32 %v1519, 7
    %v1521 = vsub.s32 4, %v1520
    %v1522 = vrot.slane %v1495, %v1521
    %v1523 = vlaneseq
    %v1524 = vshrl.u32 %v1523, 7
    %v1525 = vsub.s32 5, %v1524
    %v1526 = vrot.slane %v1495, %v1525
    %v1527 = vlaneseq
    %v1528 = vshrl.u32 %v1527, 7
    %v1529 = vsub.s32 6, %v1528
    %v1530 = vrot.slane %v1495, %v1529
    %v1531 = vlaneseq
    %v1532 = vshrl.u32 %v1531, 7
    %v1533 = vsub.s32 7, %v1532
    %v1534 = vrot.slane %v1495, %v1533
    %v1535 = vlaneseq
    %v1536 = vshrl.u32 %v1535, 7
    %v1537 = vsub.s32 0, %v1536
    %v1538 = vrot.slane %v1496, %v1537
    %v1539 = vlaneseq
    %v1540 = vshrl.u32 %v1539, 7
    %v1541 = vsub.s32 1, %v1540
    %v1542 = vrot.slane %v1496, %v1541
    %v1543 = vlaneseq
    %v1544 = vshrl.u32 %v1543, 7
    %v1545 = vsub.s32 2, %v1544
    %v1546 = vrot.slane %v1496, %v1545
    %v1547 = vlaneseq
    %v1548 = vshrl.u32 %v1547, 7
    %v1549 = vsub.s32 3, %v1548
    %v1550 = vrot.slane %v1496, %v1549
    %v1551 = vlaneseq
    %v1552 = vshrl.u32 %v1551, 7
    %v1553 = vsub.s32 4, %v1552
    %v1554 = vrot.slane %v1496, %v1553
    %v1555 = vlaneseq
    %v1556 = vshrl.u32 %v1555, 7
    %v1557 = vsub.s32 5, %v1556
    %v1558 = vrot.slane %v1496, %v1557
    %v1559 = vlaneseq
    %v1560 = vshrl.u32 %v1559, 7
    %v1561 = vsub.s32 6, %v1560
    %v1562 = vrot.slane %v1496, %v1561
    %v1563 = vlaneseq
    %v1564 = vshrl.u32 %v1563, 7
    %v1565 = vsub.s32 7, %v1564
    %v1566 = vrot.slane %v1496, %v1565
    %v1567 = vlaneseq
    %v1568 = vshrl.u32 %v1567, 7
    %v1569 = vsub.s32 0, %v1568
    %v1570 = vrot.slane %v1497, %v1569
    %v1571 = vlaneseq
    %v1572 = vshrl.u32 %v1571, 7
    %v1573 = vsub.s32 1, %v1572
    %v1574 = vrot.slane %v1497, %v1573
    %v1575 = vlaneseq
    %v1576 = vshrl.u32 %v1575, 7
    %v1577 = vsub.s32 2, %v1576
    %v1578 = vrot.slane %v1497, %v1577
    %v1579 = vlaneseq
    %v1580 = vshrl.u32 %v1579, 7
    %v1581 = vsub.s32 3, %v1580
    %v1582 = vrot.slane %v1497, %v1581
    %v1583 = vlaneseq
    %v1584 = vshrl.u32 %v1583, 7
    %v1585 = vsub.s32 4, %v1584
    %v1586 = vrot.slane %v1497, %v1585
    %v1587 = vlaneseq
    %v1588 = vshrl.u32 %v1587, 7
    %v1589 = vsub.s32 5, %v1588
    %v1590 = vrot.slane %v1497, %v1589
    %v1591 = vlaneseq
    %v1592 = vshrl.u32 %v1591, 7
    %v1593 = vsub.s32 6, %v1592
    %v1594 = vrot.slane %v1497, %v1593
    %v1595 = vlaneseq
    %v1596 = vshrl.u32 %v1595, 7
    %v1597 = vsub.s32 7, %v1596
    %v1598 = vrot.slane %v1497, %v1597
    %v1599 = vlaneseq
    %v1600 = vshrl.u32 %v1599, 7
    %v1601 = vsub.s32 0, %v1600
    %v1602 = vrot.slane %v1498, %v1601
    %v1603 = vlaneseq
    %v1604 = vshrl.u32 %v1603, 7
    %v1605 = vsub.s32 1, %v1604
    %v1606 = vrot.slane %v1498, %v1605
    %v1607 = vlaneseq
    %v1608 = vshrl.u32 %v1607, 7
    %v1609 = vsub.s32 2, %v1608
    %v1610 = vrot.slane %v1498, %v1609
    %v1611 = vlaneseq
    %v1612 = vshrl.u32 %v1611, 7
    %v1613 = vsub.s32 3, %v1612
    %v1614 = vrot.slane %v1498, %v1613
    %v1615 = vlaneseq
    %v1616 = vshrl.u32 %v1615, 7
    %v1617 = vsub.s32 4, %v1616
    %v1618 = vrot.slane %v1498, %v1617
    %v1619 = vlaneseq
    %v1620 = vshrl.u32 %v1619, 7
    %v1621 = vsub.s32 5, %v1620
    %v1622 = vrot.slane %v1498, %v1621
    %v1623 = vlaneseq
    %v1624 = vshrl.u32 %v1623, 7
    %v1625 = vsub.s32 6, %v1624
    %v1626 = vrot.slane %v1498, %v1625
    %v1627 = vlaneseq
    %v1628 = vshrl.u32 %v1627, 7
    %v1629 = vsub.s32 7, %v1628
    %v1630 = vrot.slane %v1498, %v1629
    %v1663 = vmul.f32 %v874, %v1506
    %v1664 = vmul.f32 %v876, %v1510
    %v1665 = vmul.f32 %v915, %v1514
    %v1666 = vmul.f32 %v917, %v1518
    %v1667 = vmul.f32 %v956, %v1522
    %v1668 = vmul.f32 %v958, %v1526
    %v1669 = vmul.f32 %v997, %v1530
    %v1670 = vmul.f32 %v999, %v1534
    %v1671 = vmul.f32 %v1038, %v1538
    %v1672 = vmul.f32 %v1040, %v1542
    %v1673 = vmul.f32 %v1079, %v1546
    %v1674 = vmul.f32 %v1081, %v1550
    %v1675 = vmul.f32 %v1120, %v1554
    %v1676 = vmul.f32 %v1122, %v1558
    %v1677 = vmul.f32 %v1161, %v1562
    %v1678 = vmul.f32 %v1163, %v1566
    %v1679 = vmul.f32 %v1202, %v1570
    %v1680 = vmul.f32 %v1204, %v1574
    %v1681 = vmul.f32 %v1243, %v1578
    %v1682 = vmul.f32 %v1245, %v1582
    %v1683 = vmul.f32 %v1284, %v1586
    %v1684 = vmul.f32 %v1286, %v1590
    %v1685 = vmul.f32 %v1325, %v1594
    %v1686 = vmul.f32 %v1327, %v1598
    %v1687 = vmul.f32 %v1366, %v1602
    %v1688 = vmul.f32 %v1368, %v1606
    %v1689 = vmul.f32 %v1407, %v1610
    %v1690 = vmul.f32 %v1409, %v1614
    %v1691 = vmul.f32 %v1448, %v1618
    %v1692 = vmul.f32 %v1450, %v1622
    %v1693 = vmul.f32 %v1489, %v1626
    %v1694 = vmul.f32 %v1491, %v1630
    %v1695 = vld [vmem:[%s3] sm:$0xff]
    %v1696 = vld [vmem:[%s3 + $0x8] sm:$0xff]
    %v1697 = vld [vmem:[%s3 + $0x10] sm:$0xff]
    %v1698 = vld [vmem:[%s3 + $0x18] sm:$0xff]
    %v1703 = vlaneseq
    %v1704 = vshrl.u32 %v1703, 7
    %v1705 = vsub.s32 0, %v1704
    %v1706 = vrot.slane %v1695, %v1705
    %v1707 = vlaneseq
    %v1708 = vshrl.u32 %v1707, 7
    %v1709 = vsub.s32 1, %v1708
    %v1710 = vrot.slane %v1695, %v1709
    %v1711 = vlaneseq
    %v1712 = vshrl.u32 %v1711, 7
    %v1713 = vsub.s32 2, %v1712
    %v1714 = vrot.slane %v1695, %v1713
    %v1715 = vlaneseq
    %v1716 = vshrl.u32 %v1715, 7
    %v1717 = vsub.s32 3, %v1716
    %v1718 = vrot.slane %v1695, %v1717
    %v1719 = vlaneseq
    %v1720 = vshrl.u32 %v1719, 7
    %v1721 = vsub.s32 4, %v1720
    %v1722 = vrot.slane %v1695, %v1721
    %v1723 = vlaneseq
    %v1724 = vshrl.u32 %v1723, 7
    %v1725 = vsub.s32 5, %v1724
    %v1726 = vrot.slane %v1695, %v1725
    %v1727 = vlaneseq
    %v1728 = vshrl.u32 %v1727, 7
    %v1729 = vsub.s32 6, %v1728
    %v1730 = vrot.slane %v1695, %v1729
    %v1731 = vlaneseq
    %v1732 = vshrl.u32 %v1731, 7
    %v1733 = vsub.s32 7, %v1732
    %v1734 = vrot.slane %v1695, %v1733
    %v1735 = vlaneseq
    %v1736 = vshrl.u32 %v1735, 7
    %v1737 = vsub.s32 0, %v1736
    %v1738 = vrot.slane %v1696, %v1737
    %v1739 = vlaneseq
    %v1740 = vshrl.u32 %v1739, 7
    %v1741 = vsub.s32 1, %v1740
    %v1742 = vrot.slane %v1696, %v1741
    %v1743 = vlaneseq
    %v1744 = vshrl.u32 %v1743, 7
    %v1745 = vsub.s32 2, %v1744
    %v1746 = vrot.slane %v1696, %v1745
    %v1747 = vlaneseq
    %v1748 = vshrl.u32 %v1747, 7
    %v1749 = vsub.s32 3, %v1748
    %v1750 = vrot.slane %v1696, %v1749
    %v1751 = vlaneseq
    %v1752 = vshrl.u32 %v1751, 7
    %v1753 = vsub.s32 4, %v1752
    %v1754 = vrot.slane %v1696, %v1753
    %v1755 = vlaneseq
    %v1756 = vshrl.u32 %v1755, 7
    %v1757 = vsub.s32 5, %v1756
    %v1758 = vrot.slane %v1696, %v1757
    %v1759 = vlaneseq
    %v1760 = vshrl.u32 %v1759, 7
    %v1761 = vsub.s32 6, %v1760
    %v1762 = vrot.slane %v1696, %v1761
    %v1763 = vlaneseq
    %v1764 = vshrl.u32 %v1763, 7
    %v1765 = vsub.s32 7, %v1764
    %v1766 = vrot.slane %v1696, %v1765
    %v1767 = vlaneseq
    %v1768 = vshrl.u32 %v1767, 7
    %v1769 = vsub.s32 0, %v1768
    %v1770 = vrot.slane %v1697, %v1769
    %v1771 = vlaneseq
    %v1772 = vshrl.u32 %v1771, 7
    %v1773 = vsub.s32 1, %v1772
    %v1774 = vrot.slane %v1697, %v1773
    %v1775 = vlaneseq
    %v1776 = vshrl.u32 %v1775, 7
    %v1777 = vsub.s32 2, %v1776
    %v1778 = vrot.slane %v1697, %v1777
    %v1779 = vlaneseq
    %v1780 = vshrl.u32 %v1779, 7
    %v1781 = vsub.s32 3, %v1780
    %v1782 = vrot.slane %v1697, %v1781
    %v1783 = vlaneseq
    %v1784 = vshrl.u32 %v1783, 7
    %v1785 = vsub.s32 4, %v1784
    %v1786 = vrot.slane %v1697, %v1785
    %v1787 = vlaneseq
    %v1788 = vshrl.u32 %v1787, 7
    %v1789 = vsub.s32 5, %v1788
    %v1790 = vrot.slane %v1697, %v1789
    %v1791 = vlaneseq
    %v1792 = vshrl.u32 %v1791, 7
    %v1793 = vsub.s32 6, %v1792
    %v1794 = vrot.slane %v1697, %v1793
    %v1795 = vlaneseq
    %v1796 = vshrl.u32 %v1795, 7
    %v1797 = vsub.s32 7, %v1796
    %v1798 = vrot.slane %v1697, %v1797
    %v1799 = vlaneseq
    %v1800 = vshrl.u32 %v1799, 7
    %v1801 = vsub.s32 0, %v1800
    %v1802 = vrot.slane %v1698, %v1801
    %v1803 = vlaneseq
    %v1804 = vshrl.u32 %v1803, 7
    %v1805 = vsub.s32 1, %v1804
    %v1806 = vrot.slane %v1698, %v1805
    %v1807 = vlaneseq
    %v1808 = vshrl.u32 %v1807, 7
    %v1809 = vsub.s32 2, %v1808
    %v1810 = vrot.slane %v1698, %v1809
    %v1811 = vlaneseq
    %v1812 = vshrl.u32 %v1811, 7
    %v1813 = vsub.s32 3, %v1812
    %v1814 = vrot.slane %v1698, %v1813
    %v1815 = vlaneseq
    %v1816 = vshrl.u32 %v1815, 7
    %v1817 = vsub.s32 4, %v1816
    %v1818 = vrot.slane %v1698, %v1817
    %v1819 = vlaneseq
    %v1820 = vshrl.u32 %v1819, 7
    %v1821 = vsub.s32 5, %v1820
    %v1822 = vrot.slane %v1698, %v1821
    %v1823 = vlaneseq
    %v1824 = vshrl.u32 %v1823, 7
    %v1825 = vsub.s32 6, %v1824
    %v1826 = vrot.slane %v1698, %v1825
    %v1827 = vlaneseq
    %v1828 = vshrl.u32 %v1827, 7
    %v1829 = vsub.s32 7, %v1828
    %v1830 = vrot.slane %v1698, %v1829
    %v1863 = vadd.f32 %v1663, %v1706
    %v1864 = vadd.f32 %v1664, %v1710
    %v1865 = vadd.f32 %v1665, %v1714
    %v1866 = vadd.f32 %v1666, %v1718
    %v1867 = vadd.f32 %v1667, %v1722
    %v1868 = vadd.f32 %v1668, %v1726
    %v1869 = vadd.f32 %v1669, %v1730
    %v1870 = vadd.f32 %v1670, %v1734
    %v1871 = vadd.f32 %v1671, %v1738
    %v1872 = vadd.f32 %v1672, %v1742
    %v1873 = vadd.f32 %v1673, %v1746
    %v1874 = vadd.f32 %v1674, %v1750
    %v1875 = vadd.f32 %v1675, %v1754
    %v1876 = vadd.f32 %v1676, %v1758
    %v1877 = vadd.f32 %v1677, %v1762
    %v1878 = vadd.f32 %v1678, %v1766
    %v1879 = vadd.f32 %v1679, %v1770
    %v1880 = vadd.f32 %v1680, %v1774
    %v1881 = vadd.f32 %v1681, %v1778
    %v1882 = vadd.f32 %v1682, %v1782
    %v1883 = vadd.f32 %v1683, %v1786
    %v1884 = vadd.f32 %v1684, %v1790
    %v1885 = vadd.f32 %v1685, %v1794
    %v1886 = vadd.f32 %v1686, %v1798
    %v1887 = vadd.f32 %v1687, %v1802
    %v1888 = vadd.f32 %v1688, %v1806
    %v1889 = vadd.f32 %v1689, %v1810
    %v1890 = vadd.f32 %v1690, %v1814
    %v1891 = vadd.f32 %v1691, %v1818
    %v1892 = vadd.f32 %v1692, %v1822
    %v1893 = vadd.f32 %v1693, %v1826
    %v1894 = vadd.f32 %v1694, %v1830
    %v1895 = vmax.f32 %v1863, 0.0
    %v1896 = vmax.f32 %v1864, 0.0
    %v1897 = vmax.f32 %v1865, 0.0
    %v1898 = vmax.f32 %v1866, 0.0
    %v1899 = vmax.f32 %v1867, 0.0
    %v1900 = vmax.f32 %v1868, 0.0
    %v1901 = vmax.f32 %v1869, 0.0
    %v1902 = vmax.f32 %v1870, 0.0
    %v1903 = vmax.f32 %v1871, 0.0
    %v1904 = vmax.f32 %v1872, 0.0
    %v1905 = vmax.f32 %v1873, 0.0
    %v1906 = vmax.f32 %v1874, 0.0
    %v1907 = vmax.f32 %v1875, 0.0
    %v1908 = vmax.f32 %v1876, 0.0
    %v1909 = vmax.f32 %v1877, 0.0
    %v1910 = vmax.f32 %v1878, 0.0
    %v1911 = vmax.f32 %v1879, 0.0
    %v1912 = vmax.f32 %v1880, 0.0
    %v1913 = vmax.f32 %v1881, 0.0
    %v1914 = vmax.f32 %v1882, 0.0
    %v1915 = vmax.f32 %v1883, 0.0
    %v1916 = vmax.f32 %v1884, 0.0
    %v1917 = vmax.f32 %v1885, 0.0
    %v1918 = vmax.f32 %v1886, 0.0
    %v1919 = vmax.f32 %v1887, 0.0
    %v1920 = vmax.f32 %v1888, 0.0
    %v1921 = vmax.f32 %v1889, 0.0
    %v1922 = vmax.f32 %v1890, 0.0
    %v1923 = vmax.f32 %v1891, 0.0
    %v1924 = vmax.f32 %v1892, 0.0
    %v1925 = vmax.f32 %v1893, 0.0
    %v1926 = vmax.f32 %v1894, 0.0
    %v1959 = vrot.slane %v1895, 2
    %v1960 = vrot.slane %v1896, 2
    %v1961 = vrot.slane %v1897, 2
    %v1962 = vrot.slane %v1898, 2
    %v1963 = vrot.slane %v1899, 2
    %v1964 = vrot.slane %v1900, 2
    %v1965 = vrot.slane %v1901, 2
    %v1966 = vrot.slane %v1902, 2
    %v1967 = vrot.slane %v1903, 2
    %v1968 = vrot.slane %v1904, 2
    %v1969 = vrot.slane %v1905, 2
    %v1970 = vrot.slane %v1906, 2
    %v1971 = vrot.slane %v1907, 2
    %v1972 = vrot.slane %v1908, 2
    %v1973 = vrot.slane %v1909, 2
    %v1974 = vrot.slane %v1910, 2
    %v1975 = vrot.slane %v1911, 2
    %v1976 = vrot.slane %v1912, 2
    %v1977 = vrot.slane %v1913, 2
    %v1978 = vrot.slane %v1914, 2
    %v1979 = vrot.slane %v1915, 2
    %v1980 = vrot.slane %v1916, 2
    %v1981 = vrot.slane %v1917, 2
    %v1982 = vrot.slane %v1918, 2
    %v1983 = vrot.slane %v1919, 2
    %v1984 = vrot.slane %v1920, 2
    %v1985 = vrot.slane %v1921, 2
    %v1986 = vrot.slane %v1922, 2
    %v1987 = vrot.slane %v1923, 2
    %v1988 = vrot.slane %v1924, 2
    %v1989 = vrot.slane %v1925, 2
    %v1990 = vrot.slane %v1926, 2
    %v2023 = vmax.f32 %v1895, %v1959
    %v2024 = vmax.f32 %v1896, %v1960
    %v2025 = vmax.f32 %v1897, %v1961
    %v2026 = vmax.f32 %v1898, %v1962
    %v2027 = vmax.f32 %v1899, %v1963
    %v2028 = vmax.f32 %v1900, %v1964
    %v2029 = vmax.f32 %v1901, %v1965
    %v2030 = vmax.f32 %v1902, %v1966
    %v2031 = vmax.f32 %v1903, %v1967
    %v2032 = vmax.f32 %v1904, %v1968
    %v2033 = vmax.f32 %v1905, %v1969
    %v2034 = vmax.f32 %v1906, %v1970
    %v2035 = vmax.f32 %v1907, %v1971
    %v2036 = vmax.f32 %v1908, %v1972
    %v2037 = vmax.f32 %v1909, %v1973
    %v2038 = vmax.f32 %v1910, %v1974
    %v2039 = vmax.f32 %v1911, %v1975
    %v2040 = vmax.f32 %v1912, %v1976
    %v2041 = vmax.f32 %v1913, %v1977
    %v2042 = vmax.f32 %v1914, %v1978
    %v2043 = vmax.f32 %v1915, %v1979
    %v2044 = vmax.f32 %v1916, %v1980
    %v2045 = vmax.f32 %v1917, %v1981
    %v2046 = vmax.f32 %v1918, %v1982
    %v2047 = vmax.f32 %v1919, %v1983
    %v2048 = vmax.f32 %v1920, %v1984
    %v2049 = vmax.f32 %v1921, %v1985
    %v2050 = vmax.f32 %v1922, %v1986
    %v2051 = vmax.f32 %v1923, %v1987
    %v2052 = vmax.f32 %v1924, %v1988
    %v2053 = vmax.f32 %v1925, %v1989
    %v2054 = vmax.f32 %v1926, %v1990
    %v2055 = vrot.slane %v1895, 4
    %v2056 = vrot.slane %v1896, 4
    %v2057 = vrot.slane %v1897, 4
    %v2058 = vrot.slane %v1898, 4
    %v2059 = vrot.slane %v1899, 4
    %v2060 = vrot.slane %v1900, 4
    %v2061 = vrot.slane %v1901, 4
    %v2062 = vrot.slane %v1902, 4
    %v2063 = vrot.slane %v1903, 4
    %v2064 = vrot.slane %v1904, 4
    %v2065 = vrot.slane %v1905, 4
    %v2066 = vrot.slane %v1906, 4
    %v2067 = vrot.slane %v1907, 4
    %v2068 = vrot.slane %v1908, 4
    %v2069 = vrot.slane %v1909, 4
    %v2070 = vrot.slane %v1910, 4
    %v2071 = vrot.slane %v1911, 4
    %v2072 = vrot.slane %v1912, 4
    %v2073 = vrot.slane %v1913, 4
    %v2074 = vrot.slane %v1914, 4
    %v2075 = vrot.slane %v1915, 4
    %v2076 = vrot.slane %v1916, 4
    %v2077 = vrot.slane %v1917, 4
    %v2078 = vrot.slane %v1918, 4
    %v2079 = vrot.slane %v1919, 4
    %v2080 = vrot.slane %v1920, 4
    %v2081 = vrot.slane %v1921, 4
    %v2082 = vrot.slane %v1922, 4
    %v2083 = vrot.slane %v1923, 4
    %v2084 = vrot.slane %v1924, 4
    %v2085 = vrot.slane %v1925, 4
    %v2086 = vrot.slane %v1926, 4
    %v2119 = vmax.f32 %v2023, %v2055
    %v2120 = vmax.f32 %v2024, %v2056
    %v2121 = vmax.f32 %v2025, %v2057
    %v2122 = vmax.f32 %v2026, %v2058
    %v2123 = vmax.f32 %v2027, %v2059
    %v2124 = vmax.f32 %v2028, %v2060
    %v2125 = vmax.f32 %v2029, %v2061
    %v2126 = vmax.f32 %v2030, %v2062
    %v2127 = vmax.f32 %v2031, %v2063
    %v2128 = vmax.f32 %v2032, %v2064
    %v2129 = vmax.f32 %v2033, %v2065
    %v2130 = vmax.f32 %v2034, %v2066
    %v2131 = vmax.f32 %v2035, %v2067
    %v2132 = vmax.f32 %v2036, %v2068
    %v2133 = vmax.f32 %v2037, %v2069
    %v2134 = vmax.f32 %v2038, %v2070
    %v2135 = vmax.f32 %v2039, %v2071
    %v2136 = vmax.f32 %v2040, %v2072
    %v2137 = vmax.f32 %v2041, %v2073
    %v2138 = vmax.f32 %v2042, %v2074
    %v2139 = vmax.f32 %v2043, %v2075
    %v2140 = vmax.f32 %v2044, %v2076
    %v2141 = vmax.f32 %v2045, %v2077
    %v2142 = vmax.f32 %v2046, %v2078
    %v2143 = vmax.f32 %v2047, %v2079
    %v2144 = vmax.f32 %v2048, %v2080
    %v2145 = vmax.f32 %v2049, %v2081
    %v2146 = vmax.f32 %v2050, %v2082
    %v2147 = vmax.f32 %v2051, %v2083
    %v2148 = vmax.f32 %v2052, %v2084
    %v2149 = vmax.f32 %v2053, %v2085
    %v2150 = vmax.f32 %v2054, %v2086
    %v2151 = vrot.slane %v1895, 6
    %v2152 = vrot.slane %v1896, 6
    %v2153 = vrot.slane %v1897, 6
    %v2154 = vrot.slane %v1898, 6
    %v2155 = vrot.slane %v1899, 6
    %v2156 = vrot.slane %v1900, 6
    %v2157 = vrot.slane %v1901, 6
    %v2158 = vrot.slane %v1902, 6
    %v2159 = vrot.slane %v1903, 6
    %v2160 = vrot.slane %v1904, 6
    %v2161 = vrot.slane %v1905, 6
    %v2162 = vrot.slane %v1906, 6
    %v2163 = vrot.slane %v1907, 6
    %v2164 = vrot.slane %v1908, 6
    %v2165 = vrot.slane %v1909, 6
    %v2166 = vrot.slane %v1910, 6
    %v2167 = vrot.slane %v1911, 6
    %v2168 = vrot.slane %v1912, 6
    %v2169 = vrot.slane %v1913, 6
    %v2170 = vrot.slane %v1914, 6
    %v2171 = vrot.slane %v1915, 6
    %v2172 = vrot.slane %v1916, 6
    %v2173 = vrot.slane %v1917, 6
    %v2174 = vrot.slane %v1918, 6
    %v2175 = vrot.slane %v1919, 6
    %v2176 = vrot.slane %v1920, 6
    %v2177 = vrot.slane %v1921, 6
    %v2178 = vrot.slane %v1922, 6
    %v2179 = vrot.slane %v1923, 6
    %v2180 = vrot.slane %v1924, 6
    %v2181 = vrot.slane %v1925, 6
    %v2182 = vrot.slane %v1926, 6
    %v2215 = vmax.f32 %v2119, %v2151
    %v2216 = vmax.f32 %v2120, %v2152
    %v2217 = vmax.f32 %v2121, %v2153
    %v2218 = vmax.f32 %v2122, %v2154
    %v2219 = vmax.f32 %v2123, %v2155
    %v2220 = vmax.f32 %v2124, %v2156
    %v2221 = vmax.f32 %v2125, %v2157
    %v2222 = vmax.f32 %v2126, %v2158
    %v2223 = vmax.f32 %v2127, %v2159
    %v2224 = vmax.f32 %v2128, %v2160
    %v2225 = vmax.f32 %v2129, %v2161
    %v2226 = vmax.f32 %v2130, %v2162
    %v2227 = vmax.f32 %v2131, %v2163
    %v2228 = vmax.f32 %v2132, %v2164
    %v2229 = vmax.f32 %v2133, %v2165
    %v2230 = vmax.f32 %v2134, %v2166
    %v2231 = vmax.f32 %v2135, %v2167
    %v2232 = vmax.f32 %v2136, %v2168
    %v2233 = vmax.f32 %v2137, %v2169
    %v2234 = vmax.f32 %v2138, %v2170
    %v2235 = vmax.f32 %v2139, %v2171
    %v2236 = vmax.f32 %v2140, %v2172
    %v2237 = vmax.f32 %v2141, %v2173
    %v2238 = vmax.f32 %v2142, %v2174
    %v2239 = vmax.f32 %v2143, %v2175
    %v2240 = vmax.f32 %v2144, %v2176
    %v2241 = vmax.f32 %v2145, %v2177
    %v2242 = vmax.f32 %v2146, %v2178
    %v2243 = vmax.f32 %v2147, %v2179
    %v2244 = vmax.f32 %v2148, %v2180
    %v2245 = vmax.f32 %v2149, %v2181
    %v2246 = vmax.f32 %v2150, %v2182
    %v2279 = vrot.slane %v2023, 6
    %v2280 = vrot.slane %v2024, 6
    %v2281 = vrot.slane %v2025, 6
    %v2282 = vrot.slane %v2026, 6
    %v2283 = vrot.slane %v2027, 6
    %v2284 = vrot.slane %v2028, 6
    %v2285 = vrot.slane %v2029, 6
    %v2286 = vrot.slane %v2030, 6
    %v2287 = vrot.slane %v2031, 6
    %v2288 = vrot.slane %v2032, 6
    %v2289 = vrot.slane %v2033, 6
    %v2290 = vrot.slane %v2034, 6
    %v2291 = vrot.slane %v2035, 6
    %v2292 = vrot.slane %v2036, 6
    %v2293 = vrot.slane %v2037, 6
    %v2294 = vrot.slane %v2038, 6
    %v2295 = vrot.slane %v2039, 6
    %v2296 = vrot.slane %v2040, 6
    %v2297 = vrot.slane %v2041, 6
    %v2298 = vrot.slane %v2042, 6
    %v2299 = vrot.slane %v2043, 6
    %v2300 = vrot.slane %v2044, 6
    %v2301 = vrot.slane %v2045, 6
    %v2302 = vrot.slane %v2046, 6
    %v2303 = vrot.slane %v2047, 6
    %v2304 = vrot.slane %v2048, 6
    %v2305 = vrot.slane %v2049, 6
    %v2306 = vrot.slane %v2050, 6
    %v2307 = vrot.slane %v2051, 6
    %v2308 = vrot.slane %v2052, 6
    %v2309 = vrot.slane %v2053, 6
    %v2310 = vrot.slane %v2054, 6
    %v2375 = vrot.slane %v2119, 4
    %v2376 = vrot.slane %v2120, 4
    %v2377 = vrot.slane %v2121, 4
    %v2378 = vrot.slane %v2122, 4
    %v2379 = vrot.slane %v2123, 4
    %v2380 = vrot.slane %v2124, 4
    %v2381 = vrot.slane %v2125, 4
    %v2382 = vrot.slane %v2126, 4
    %v2383 = vrot.slane %v2127, 4
    %v2384 = vrot.slane %v2128, 4
    %v2385 = vrot.slane %v2129, 4
    %v2386 = vrot.slane %v2130, 4
    %v2387 = vrot.slane %v2131, 4
    %v2388 = vrot.slane %v2132, 4
    %v2389 = vrot.slane %v2133, 4
    %v2390 = vrot.slane %v2134, 4
    %v2391 = vrot.slane %v2135, 4
    %v2392 = vrot.slane %v2136, 4
    %v2393 = vrot.slane %v2137, 4
    %v2394 = vrot.slane %v2138, 4
    %v2395 = vrot.slane %v2139, 4
    %v2396 = vrot.slane %v2140, 4
    %v2397 = vrot.slane %v2141, 4
    %v2398 = vrot.slane %v2142, 4
    %v2399 = vrot.slane %v2143, 4
    %v2400 = vrot.slane %v2144, 4
    %v2401 = vrot.slane %v2145, 4
    %v2402 = vrot.slane %v2146, 4
    %v2403 = vrot.slane %v2147, 4
    %v2404 = vrot.slane %v2148, 4
    %v2405 = vrot.slane %v2149, 4
    %v2406 = vrot.slane %v2150, 4
    %v2471 = vrot.slane %v2215, 2
    %v2472 = vrot.slane %v2216, 2
    %v2473 = vrot.slane %v2217, 2
    %v2474 = vrot.slane %v2218, 2
    %v2475 = vrot.slane %v2219, 2
    %v2476 = vrot.slane %v2220, 2
    %v2477 = vrot.slane %v2221, 2
    %v2478 = vrot.slane %v2222, 2
    %v2479 = vrot.slane %v2223, 2
    %v2480 = vrot.slane %v2224, 2
    %v2481 = vrot.slane %v2225, 2
    %v2482 = vrot.slane %v2226, 2
    %v2483 = vrot.slane %v2227, 2
    %v2484 = vrot.slane %v2228, 2
    %v2485 = vrot.slane %v2229, 2
    %v2486 = vrot.slane %v2230, 2
    %v2487 = vrot.slane %v2231, 2
    %v2488 = vrot.slane %v2232, 2
    %v2489 = vrot.slane %v2233, 2
    %v2490 = vrot.slane %v2234, 2
    %v2491 = vrot.slane %v2235, 2
    %v2492 = vrot.slane %v2236, 2
    %v2493 = vrot.slane %v2237, 2
    %v2494 = vrot.slane %v2238, 2
    %v2495 = vrot.slane %v2239, 2
    %v2496 = vrot.slane %v2240, 2
    %v2497 = vrot.slane %v2241, 2
    %v2498 = vrot.slane %v2242, 2
    %v2499 = vrot.slane %v2243, 2
    %v2500 = vrot.slane %v2244, 2
    %v2501 = vrot.slane %v2245, 2
    %v2502 = vrot.slane %v2246, 2
    %v2535 = vsel %vm60, %v1895, %v2279
    %v2536 = vsel %vm60, %v1896, %v2280
    %v2537 = vsel %vm60, %v1897, %v2281
    %v2538 = vsel %vm60, %v1898, %v2282
    %v2539 = vsel %vm60, %v1899, %v2283
    %v2540 = vsel %vm60, %v1900, %v2284
    %v2541 = vsel %vm60, %v1901, %v2285
    %v2542 = vsel %vm60, %v1902, %v2286
    %v2543 = vsel %vm60, %v1903, %v2287
    %v2544 = vsel %vm60, %v1904, %v2288
    %v2545 = vsel %vm60, %v1905, %v2289
    %v2546 = vsel %vm60, %v1906, %v2290
    %v2547 = vsel %vm60, %v1907, %v2291
    %v2548 = vsel %vm60, %v1908, %v2292
    %v2549 = vsel %vm60, %v1909, %v2293
    %v2550 = vsel %vm60, %v1910, %v2294
    %v2551 = vsel %vm60, %v1911, %v2295
    %v2552 = vsel %vm60, %v1912, %v2296
    %v2553 = vsel %vm60, %v1913, %v2297
    %v2554 = vsel %vm60, %v1914, %v2298
    %v2555 = vsel %vm60, %v1915, %v2299
    %v2556 = vsel %vm60, %v1916, %v2300
    %v2557 = vsel %vm60, %v1917, %v2301
    %v2558 = vsel %vm60, %v1918, %v2302
    %v2559 = vsel %vm60, %v1919, %v2303
    %v2560 = vsel %vm60, %v1920, %v2304
    %v2561 = vsel %vm60, %v1921, %v2305
    %v2562 = vsel %vm60, %v1922, %v2306
    %v2563 = vsel %vm60, %v1923, %v2307
    %v2564 = vsel %vm60, %v1924, %v2308
    %v2565 = vsel %vm60, %v1925, %v2309
    %v2566 = vsel %vm60, %v1926, %v2310
    %v2567 = vsel %vm62, %v2535, %v2375
    %v2568 = vsel %vm62, %v2536, %v2376
    %v2569 = vsel %vm62, %v2537, %v2377
    %v2570 = vsel %vm62, %v2538, %v2378
    %v2571 = vsel %vm62, %v2539, %v2379
    %v2572 = vsel %vm62, %v2540, %v2380
    %v2573 = vsel %vm62, %v2541, %v2381
    %v2574 = vsel %vm62, %v2542, %v2382
    %v2575 = vsel %vm62, %v2543, %v2383
    %v2576 = vsel %vm62, %v2544, %v2384
    %v2577 = vsel %vm62, %v2545, %v2385
    %v2578 = vsel %vm62, %v2546, %v2386
    %v2579 = vsel %vm62, %v2547, %v2387
    %v2580 = vsel %vm62, %v2548, %v2388
    %v2581 = vsel %vm62, %v2549, %v2389
    %v2582 = vsel %vm62, %v2550, %v2390
    %v2583 = vsel %vm62, %v2551, %v2391
    %v2584 = vsel %vm62, %v2552, %v2392
    %v2585 = vsel %vm62, %v2553, %v2393
    %v2586 = vsel %vm62, %v2554, %v2394
    %v2587 = vsel %vm62, %v2555, %v2395
    %v2588 = vsel %vm62, %v2556, %v2396
    %v2589 = vsel %vm62, %v2557, %v2397
    %v2590 = vsel %vm62, %v2558, %v2398
    %v2591 = vsel %vm62, %v2559, %v2399
    %v2592 = vsel %vm62, %v2560, %v2400
    %v2593 = vsel %vm62, %v2561, %v2401
    %v2594 = vsel %vm62, %v2562, %v2402
    %v2595 = vsel %vm62, %v2563, %v2403
    %v2596 = vsel %vm62, %v2564, %v2404
    %v2597 = vsel %vm62, %v2565, %v2405
    %v2598 = vsel %vm62, %v2566, %v2406
    %v2599 = vsel %vm64, %v2567, %v2471
    %v2600 = vsel %vm64, %v2568, %v2472
    %v2601 = vsel %vm64, %v2569, %v2473
    %v2602 = vsel %vm64, %v2570, %v2474
    %v2603 = vsel %vm64, %v2571, %v2475
    %v2604 = vsel %vm64, %v2572, %v2476
    %v2605 = vsel %vm64, %v2573, %v2477
    %v2606 = vsel %vm64, %v2574, %v2478
    %v2607 = vsel %vm64, %v2575, %v2479
    %v2608 = vsel %vm64, %v2576, %v2480
    %v2609 = vsel %vm64, %v2577, %v2481
    %v2610 = vsel %vm64, %v2578, %v2482
    %v2611 = vsel %vm64, %v2579, %v2483
    %v2612 = vsel %vm64, %v2580, %v2484
    %v2613 = vsel %vm64, %v2581, %v2485
    %v2614 = vsel %vm64, %v2582, %v2486
    %v2615 = vsel %vm64, %v2583, %v2487
    %v2616 = vsel %vm64, %v2584, %v2488
    %v2617 = vsel %vm64, %v2585, %v2489
    %v2618 = vsel %vm64, %v2586, %v2490
    %v2619 = vsel %vm64, %v2587, %v2491
    %v2620 = vsel %vm64, %v2588, %v2492
    %v2621 = vsel %vm64, %v2589, %v2493
    %v2622 = vsel %vm64, %v2590, %v2494
    %v2623 = vsel %vm64, %v2591, %v2495
    %v2624 = vsel %vm64, %v2592, %v2496
    %v2625 = vsel %vm64, %v2593, %v2497
    %v2626 = vsel %vm64, %v2594, %v2498
    %v2627 = vsel %vm64, %v2595, %v2499
    %v2628 = vsel %vm64, %v2596, %v2500
    %v2629 = vsel %vm64, %v2597, %v2501
    %v2630 = vsel %vm64, %v2598, %v2502
    %v2631 = vpack.c.bf16 %v2599, %v2599
    %v2632 = vpack.c.bf16 %v2600, %v2600
    %v2633 = vpack.c.bf16 %v2601, %v2601
    %v2634 = vpack.c.bf16 %v2602, %v2602
    %v2635 = vpack.c.bf16 %v2603, %v2603
    %v2636 = vpack.c.bf16 %v2604, %v2604
    %v2637 = vpack.c.bf16 %v2605, %v2605
    %v2638 = vpack.c.bf16 %v2606, %v2606
    %v2639 = vpack.c.bf16 %v2607, %v2607
    %v2640 = vpack.c.bf16 %v2608, %v2608
    %v2641 = vpack.c.bf16 %v2609, %v2609
    %v2642 = vpack.c.bf16 %v2610, %v2610
    %v2643 = vpack.c.bf16 %v2611, %v2611
    %v2644 = vpack.c.bf16 %v2612, %v2612
    %v2645 = vpack.c.bf16 %v2613, %v2613
    %v2646 = vpack.c.bf16 %v2614, %v2614
    %v2647 = vpack.c.bf16 %v2615, %v2615
    %v2648 = vpack.c.bf16 %v2616, %v2616
    %v2649 = vpack.c.bf16 %v2617, %v2617
    %v2650 = vpack.c.bf16 %v2618, %v2618
    %v2651 = vpack.c.bf16 %v2619, %v2619
    %v2652 = vpack.c.bf16 %v2620, %v2620
    %v2653 = vpack.c.bf16 %v2621, %v2621
    %v2654 = vpack.c.bf16 %v2622, %v2622
    %v2655 = vpack.c.bf16 %v2623, %v2623
    %v2656 = vpack.c.bf16 %v2624, %v2624
    %v2657 = vpack.c.bf16 %v2625, %v2625
    %v2658 = vpack.c.bf16 %v2626, %v2626
    %v2659 = vpack.c.bf16 %v2627, %v2627
    %v2660 = vpack.c.bf16 %v2628, %v2628
    %v2661 = vpack.c.bf16 %v2629, %v2629
    %v2662 = vpack.c.bf16 %v2630, %v2630
    %v2663 = vld [vmem:[%s4] sm:$0xf]
    %v2664 = vld [vmem:[%s4 + $0x4] sm:$0xf]
    %v2665 = vld [vmem:[%s4 + $0x8] sm:$0xf]
    %v2666 = vld [vmem:[%s4 + $0xc] sm:$0xf]
    %v2667 = vld [vmem:[%s4 + $0x10] sm:$0xf]
    %v2668 = vld [vmem:[%s4 + $0x14] sm:$0xf]
    %v2669 = vld [vmem:[%s4 + $0x18] sm:$0xf]
    %v2670 = vld [vmem:[%s4 + $0x1c] sm:$0xf]
    %v2671 = vld [vmem:[%s4 + $0x20] sm:$0xf]
    %v2672 = vld [vmem:[%s4 + $0x24] sm:$0xf]
    %v2673 = vld [vmem:[%s4 + $0x28] sm:$0xf]
    %v2674 = vld [vmem:[%s4 + $0x2c] sm:$0xf]
    %v2675 = vld [vmem:[%s4 + $0x30] sm:$0xf]
    %v2676 = vld [vmem:[%s4 + $0x34] sm:$0xf]
    %v2677 = vld [vmem:[%s4 + $0x38] sm:$0xf]
    %v2678 = vld [vmem:[%s4 + $0x3c] sm:$0xf]
    %v2679 = vld [vmem:[%s4 + $0x40] sm:$0xf]
    %v2680 = vld [vmem:[%s4 + $0x44] sm:$0xf]
    %v2681 = vld [vmem:[%s4 + $0x48] sm:$0xf]
    %v2682 = vld [vmem:[%s4 + $0x4c] sm:$0xf]
    %v2683 = vld [vmem:[%s4 + $0x50] sm:$0xf]
    %v2684 = vld [vmem:[%s4 + $0x54] sm:$0xf]
    %v2685 = vld [vmem:[%s4 + $0x58] sm:$0xf]
    %v2686 = vld [vmem:[%s4 + $0x5c] sm:$0xf]
    %v2687 = vld [vmem:[%s4 + $0x60] sm:$0xf]
    %v2688 = vld [vmem:[%s4 + $0x64] sm:$0xf]
    %v2689 = vld [vmem:[%s4 + $0x68] sm:$0xf]
    %v2690 = vld [vmem:[%s4 + $0x6c] sm:$0xf]
    %v2691 = vld [vmem:[%s4 + $0x70] sm:$0xf]
    %v2692 = vld [vmem:[%s4 + $0x74] sm:$0xf]
    %v2693 = vld [vmem:[%s4 + $0x78] sm:$0xf]
    %v2694 = vld [vmem:[%s4 + $0x7c] sm:$0xf]
    %v2695 = vld [vmem:[%s4 + $0x80] sm:$0xf]
    %v2696 = vld [vmem:[%s4 + $0x84] sm:$0xf]
    %v2697 = vld [vmem:[%s4 + $0x88] sm:$0xf]
    %v2698 = vld [vmem:[%s4 + $0x8c] sm:$0xf]
    %v2699 = vld [vmem:[%s4 + $0x90] sm:$0xf]
    %v2700 = vld [vmem:[%s4 + $0x94] sm:$0xf]
    %v2701 = vld [vmem:[%s4 + $0x98] sm:$0xf]
    %v2702 = vld [vmem:[%s4 + $0x9c] sm:$0xf]
    %v2703 = vld [vmem:[%s4 + $0xa0] sm:$0xf]
    %v2704 = vld [vmem:[%s4 + $0xa4] sm:$0xf]
    %v2705 = vld [vmem:[%s4 + $0xa8] sm:$0xf]
    %v2706 = vld [vmem:[%s4 + $0xac] sm:$0xf]
    %v2707 = vld [vmem:[%s4 + $0xb0] sm:$0xf]
    %v2708 = vld [vmem:[%s4 + $0xb4] sm:$0xf]
    %v2709 = vld [vmem:[%s4 + $0xb8] sm:$0xf]
    %v2710 = vld [vmem:[%s4 + $0xbc] sm:$0xf]
    %v2711 = vld [vmem:[%s4 + $0xc0] sm:$0xf]
    %v2712 = vld [vmem:[%s4 + $0xc4] sm:$0xf]
    %v2713 = vld [vmem:[%s4 + $0xc8] sm:$0xf]
    %v2714 = vld [vmem:[%s4 + $0xcc] sm:$0xf]
    %v2715 = vld [vmem:[%s4 + $0xd0] sm:$0xf]
    %v2716 = vld [vmem:[%s4 + $0xd4] sm:$0xf]
    %v2717 = vld [vmem:[%s4 + $0xd8] sm:$0xf]
    %v2718 = vld [vmem:[%s4 + $0xdc] sm:$0xf]
    %v2719 = vld [vmem:[%s4 + $0xe0] sm:$0xf]
    %v2720 = vld [vmem:[%s4 + $0xe4] sm:$0xf]
    %v2721 = vld [vmem:[%s4 + $0xe8] sm:$0xf]
    %v2722 = vld [vmem:[%s4 + $0xec] sm:$0xf]
    %v2723 = vld [vmem:[%s4 + $0xf0] sm:$0xf]
    %v2724 = vld [vmem:[%s4 + $0xf4] sm:$0xf]
    %v2725 = vld [vmem:[%s4 + $0xf8] sm:$0xf]
    %v2726 = vld [vmem:[%s4 + $0xfc] sm:$0xf]
    %v2727 = vld [vmem:[%s4 + $0x100] sm:$0xf]
    %v2728 = vld [vmem:[%s4 + $0x104] sm:$0xf]
    %v2729 = vld [vmem:[%s4 + $0x108] sm:$0xf]
    %v2730 = vld [vmem:[%s4 + $0x10c] sm:$0xf]
    %v2731 = vld [vmem:[%s4 + $0x110] sm:$0xf]
    %v2732 = vld [vmem:[%s4 + $0x114] sm:$0xf]
    %v2733 = vld [vmem:[%s4 + $0x118] sm:$0xf]
    %v2734 = vld [vmem:[%s4 + $0x11c] sm:$0xf]
    %v2735 = vld [vmem:[%s4 + $0x120] sm:$0xf]
    %v2736 = vld [vmem:[%s4 + $0x124] sm:$0xf]
    %v2737 = vld [vmem:[%s4 + $0x128] sm:$0xf]
    %v2738 = vld [vmem:[%s4 + $0x12c] sm:$0xf]
    %v2739 = vld [vmem:[%s4 + $0x130] sm:$0xf]
    %v2740 = vld [vmem:[%s4 + $0x134] sm:$0xf]
    %v2741 = vld [vmem:[%s4 + $0x138] sm:$0xf]
    %v2742 = vld [vmem:[%s4 + $0x13c] sm:$0xf]
    %v2743 = vld [vmem:[%s4 + $0x140] sm:$0xf]
    %v2744 = vld [vmem:[%s4 + $0x144] sm:$0xf]
    %v2745 = vld [vmem:[%s4 + $0x148] sm:$0xf]
    %v2746 = vld [vmem:[%s4 + $0x14c] sm:$0xf]
    %v2747 = vld [vmem:[%s4 + $0x150] sm:$0xf]
    %v2748 = vld [vmem:[%s4 + $0x154] sm:$0xf]
    %v2749 = vld [vmem:[%s4 + $0x158] sm:$0xf]
    %v2750 = vld [vmem:[%s4 + $0x15c] sm:$0xf]
    %v2751 = vld [vmem:[%s4 + $0x160] sm:$0xf]
    %v2752 = vld [vmem:[%s4 + $0x164] sm:$0xf]
    %v2753 = vld [vmem:[%s4 + $0x168] sm:$0xf]
    %v2754 = vld [vmem:[%s4 + $0x16c] sm:$0xf]
    %v2755 = vld [vmem:[%s4 + $0x170] sm:$0xf]
    %v2756 = vld [vmem:[%s4 + $0x174] sm:$0xf]
    %v2757 = vld [vmem:[%s4 + $0x178] sm:$0xf]
    %v2758 = vld [vmem:[%s4 + $0x17c] sm:$0xf]
    %v2759 = vld [vmem:[%s4 + $0x180] sm:$0xf]
    %v2760 = vld [vmem:[%s4 + $0x184] sm:$0xf]
    %v2761 = vld [vmem:[%s4 + $0x188] sm:$0xf]
    %v2762 = vld [vmem:[%s4 + $0x18c] sm:$0xf]
    %v2763 = vld [vmem:[%s4 + $0x190] sm:$0xf]
    %v2764 = vld [vmem:[%s4 + $0x194] sm:$0xf]
    %v2765 = vld [vmem:[%s4 + $0x198] sm:$0xf]
    %v2766 = vld [vmem:[%s4 + $0x19c] sm:$0xf]
    %v2767 = vld [vmem:[%s4 + $0x1a0] sm:$0xf]
    %v2768 = vld [vmem:[%s4 + $0x1a4] sm:$0xf]
    %v2769 = vld [vmem:[%s4 + $0x1a8] sm:$0xf]
    %v2770 = vld [vmem:[%s4 + $0x1ac] sm:$0xf]
    %v2771 = vld [vmem:[%s4 + $0x1b0] sm:$0xf]
    %v2772 = vld [vmem:[%s4 + $0x1b4] sm:$0xf]
    %v2773 = vld [vmem:[%s4 + $0x1b8] sm:$0xf]
    %v2774 = vld [vmem:[%s4 + $0x1bc] sm:$0xf]
    %v2775 = vld [vmem:[%s4 + $0x1c0] sm:$0xf]
    %v2776 = vld [vmem:[%s4 + $0x1c4] sm:$0xf]
    %v2777 = vld [vmem:[%s4 + $0x1c8] sm:$0xf]
    %v2778 = vld [vmem:[%s4 + $0x1cc] sm:$0xf]
    %v2779 = vld [vmem:[%s4 + $0x1d0] sm:$0xf]
    %v2780 = vld [vmem:[%s4 + $0x1d4] sm:$0xf]
    %v2781 = vld [vmem:[%s4 + $0x1d8] sm:$0xf]
    %v2782 = vld [vmem:[%s4 + $0x1dc] sm:$0xf]
    %v2783 = vld [vmem:[%s4 + $0x1e0] sm:$0xf]
    %v2784 = vld [vmem:[%s4 + $0x1e4] sm:$0xf]
    %v2785 = vld [vmem:[%s4 + $0x1e8] sm:$0xf]
    %v2786 = vld [vmem:[%s4 + $0x1ec] sm:$0xf]
    %v2787 = vld [vmem:[%s4 + $0x1f0] sm:$0xf]
    %v2788 = vld [vmem:[%s4 + $0x1f4] sm:$0xf]
    %v2789 = vld [vmem:[%s4 + $0x1f8] sm:$0xf]
    %v2790 = vld [vmem:[%s4 + $0x1fc] sm:$0xf]
    %v2791 = vld [vmem:[%s4 + $0x200] sm:$0xf]
    %v2792 = vld [vmem:[%s4 + $0x204] sm:$0xf]
    %v2793 = vld [vmem:[%s4 + $0x208] sm:$0xf]
    %v2794 = vld [vmem:[%s4 + $0x20c] sm:$0xf]
    %v2795 = vld [vmem:[%s4 + $0x210] sm:$0xf]
    %v2796 = vld [vmem:[%s4 + $0x214] sm:$0xf]
    %v2797 = vld [vmem:[%s4 + $0x218] sm:$0xf]
    %v2798 = vld [vmem:[%s4 + $0x21c] sm:$0xf]
    %v2799 = vld [vmem:[%s4 + $0x220] sm:$0xf]
    %v2800 = vld [vmem:[%s4 + $0x224] sm:$0xf]
    %v2801 = vld [vmem:[%s4 + $0x228] sm:$0xf]
    %v2802 = vld [vmem:[%s4 + $0x22c] sm:$0xf]
    %v2803 = vld [vmem:[%s4 + $0x230] sm:$0xf]
    %v2804 = vld [vmem:[%s4 + $0x234] sm:$0xf]
    %v2805 = vld [vmem:[%s4 + $0x238] sm:$0xf]
    %v2806 = vld [vmem:[%s4 + $0x23c] sm:$0xf]
    %v2807 = vld [vmem:[%s4 + $0x240] sm:$0xf]
    %v2808 = vld [vmem:[%s4 + $0x244] sm:$0xf]
    %v2809 = vld [vmem:[%s4 + $0x248] sm:$0xf]
    %v2810 = vld [vmem:[%s4 + $0x24c] sm:$0xf]
    %v2811 = vld [vmem:[%s4 + $0x250] sm:$0xf]
    %v2812 = vld [vmem:[%s4 + $0x254] sm:$0xf]
    %v2813 = vld [vmem:[%s4 + $0x258] sm:$0xf]
    %v2814 = vld [vmem:[%s4 + $0x25c] sm:$0xf]
    %v2815 = vld [vmem:[%s4 + $0x260] sm:$0xf]
    %v2816 = vld [vmem:[%s4 + $0x264] sm:$0xf]
    %v2817 = vld [vmem:[%s4 + $0x268] sm:$0xf]
    %v2818 = vld [vmem:[%s4 + $0x26c] sm:$0xf]
    %v2819 = vld [vmem:[%s4 + $0x270] sm:$0xf]
    %v2820 = vld [vmem:[%s4 + $0x274] sm:$0xf]
    %v2821 = vld [vmem:[%s4 + $0x278] sm:$0xf]
    %v2822 = vld [vmem:[%s4 + $0x27c] sm:$0xf]
    %v2823 = vld [vmem:[%s4 + $0x280] sm:$0xf]
    %v2824 = vld [vmem:[%s4 + $0x284] sm:$0xf]
    %v2825 = vld [vmem:[%s4 + $0x288] sm:$0xf]
    %v2826 = vld [vmem:[%s4 + $0x28c] sm:$0xf]
    %v2827 = vld [vmem:[%s4 + $0x290] sm:$0xf]
    %v2828 = vld [vmem:[%s4 + $0x294] sm:$0xf]
    %v2829 = vld [vmem:[%s4 + $0x298] sm:$0xf]
    %v2830 = vld [vmem:[%s4 + $0x29c] sm:$0xf]
    %v2831 = vld [vmem:[%s4 + $0x2a0] sm:$0xf]
    %v2832 = vld [vmem:[%s4 + $0x2a4] sm:$0xf]
    %v2833 = vld [vmem:[%s4 + $0x2a8] sm:$0xf]
    %v2834 = vld [vmem:[%s4 + $0x2ac] sm:$0xf]
    %v2835 = vld [vmem:[%s4 + $0x2b0] sm:$0xf]
    %v2836 = vld [vmem:[%s4 + $0x2b4] sm:$0xf]
    %v2837 = vld [vmem:[%s4 + $0x2b8] sm:$0xf]
    %v2838 = vld [vmem:[%s4 + $0x2bc] sm:$0xf]
    %v2839 = vld [vmem:[%s4 + $0x2c0] sm:$0xf]
    %v2840 = vld [vmem:[%s4 + $0x2c4] sm:$0xf]
    %v2841 = vld [vmem:[%s4 + $0x2c8] sm:$0xf]
    %v2842 = vld [vmem:[%s4 + $0x2cc] sm:$0xf]
    %v2843 = vld [vmem:[%s4 + $0x2d0] sm:$0xf]
    %v2844 = vld [vmem:[%s4 + $0x2d4] sm:$0xf]
    %v2845 = vld [vmem:[%s4 + $0x2d8] sm:$0xf]
    %v2846 = vld [vmem:[%s4 + $0x2dc] sm:$0xf]
    %v2847 = vld [vmem:[%s4 + $0x2e0] sm:$0xf]
    %v2848 = vld [vmem:[%s4 + $0x2e4] sm:$0xf]
    %v2849 = vld [vmem:[%s4 + $0x2e8] sm:$0xf]
    %v2850 = vld [vmem:[%s4 + $0x2ec] sm:$0xf]
    %v2851 = vld [vmem:[%s4 + $0x2f0] sm:$0xf]
    %v2852 = vld [vmem:[%s4 + $0x2f4] sm:$0xf]
    %v2853 = vld [vmem:[%s4 + $0x2f8] sm:$0xf]
    %v2854 = vld [vmem:[%s4 + $0x2fc] sm:$0xf]
    %v2855 = vld [vmem:[%s4 + $0x300] sm:$0xf]
    %v2856 = vld [vmem:[%s4 + $0x304] sm:$0xf]
    %v2857 = vld [vmem:[%s4 + $0x308] sm:$0xf]
    %v2858 = vld [vmem:[%s4 + $0x30c] sm:$0xf]
    %v2859 = vld [vmem:[%s4 + $0x310] sm:$0xf]
    %v2860 = vld [vmem:[%s4 + $0x314] sm:$0xf]
    %v2861 = vld [vmem:[%s4 + $0x318] sm:$0xf]
    %v2862 = vld [vmem:[%s4 + $0x31c] sm:$0xf]
    %v2863 = vld [vmem:[%s4 + $0x320] sm:$0xf]
    %v2864 = vld [vmem:[%s4 + $0x324] sm:$0xf]
    %v2865 = vld [vmem:[%s4 + $0x328] sm:$0xf]
    %v2866 = vld [vmem:[%s4 + $0x32c] sm:$0xf]
    %v2867 = vld [vmem:[%s4 + $0x330] sm:$0xf]
    %v2868 = vld [vmem:[%s4 + $0x334] sm:$0xf]
    %v2869 = vld [vmem:[%s4 + $0x338] sm:$0xf]
    %v2870 = vld [vmem:[%s4 + $0x33c] sm:$0xf]
    %v2871 = vld [vmem:[%s4 + $0x340] sm:$0xf]
    %v2872 = vld [vmem:[%s4 + $0x344] sm:$0xf]
    %v2873 = vld [vmem:[%s4 + $0x348] sm:$0xf]
    %v2874 = vld [vmem:[%s4 + $0x34c] sm:$0xf]
    %v2875 = vld [vmem:[%s4 + $0x350] sm:$0xf]
    %v2876 = vld [vmem:[%s4 + $0x354] sm:$0xf]
    %v2877 = vld [vmem:[%s4 + $0x358] sm:$0xf]
    %v2878 = vld [vmem:[%s4 + $0x35c] sm:$0xf]
    %v2879 = vld [vmem:[%s4 + $0x360] sm:$0xf]
    %v2880 = vld [vmem:[%s4 + $0x364] sm:$0xf]
    %v2881 = vld [vmem:[%s4 + $0x368] sm:$0xf]
    %v2882 = vld [vmem:[%s4 + $0x36c] sm:$0xf]
    %v2883 = vld [vmem:[%s4 + $0x370] sm:$0xf]
    %v2884 = vld [vmem:[%s4 + $0x374] sm:$0xf]
    %v2885 = vld [vmem:[%s4 + $0x378] sm:$0xf]
    %v2886 = vld [vmem:[%s4 + $0x37c] sm:$0xf]
    %v2887 = vld [vmem:[%s4 + $0x380] sm:$0xf]
    %v2888 = vld [vmem:[%s4 + $0x384] sm:$0xf]
    %v2889 = vld [vmem:[%s4 + $0x388] sm:$0xf]
    %v2890 = vld [vmem:[%s4 + $0x38c] sm:$0xf]
    %v2891 = vld [vmem:[%s4 + $0x390] sm:$0xf]
    %v2892 = vld [vmem:[%s4 + $0x394] sm:$0xf]
    %v2893 = vld [vmem:[%s4 + $0x398] sm:$0xf]
    %v2894 = vld [vmem:[%s4 + $0x39c] sm:$0xf]
    %v2895 = vld [vmem:[%s4 + $0x3a0] sm:$0xf]
    %v2896 = vld [vmem:[%s4 + $0x3a4] sm:$0xf]
    %v2897 = vld [vmem:[%s4 + $0x3a8] sm:$0xf]
    %v2898 = vld [vmem:[%s4 + $0x3ac] sm:$0xf]
    %v2899 = vld [vmem:[%s4 + $0x3b0] sm:$0xf]
    %v2900 = vld [vmem:[%s4 + $0x3b4] sm:$0xf]
    %v2901 = vld [vmem:[%s4 + $0x3b8] sm:$0xf]
    %v2902 = vld [vmem:[%s4 + $0x3bc] sm:$0xf]
    %v2903 = vld [vmem:[%s4 + $0x3c0] sm:$0xf]
    %v2904 = vld [vmem:[%s4 + $0x3c4] sm:$0xf]
    %v2905 = vld [vmem:[%s4 + $0x3c8] sm:$0xf]
    %v2906 = vld [vmem:[%s4 + $0x3cc] sm:$0xf]
    %v2907 = vld [vmem:[%s4 + $0x3d0] sm:$0xf]
    %v2908 = vld [vmem:[%s4 + $0x3d4] sm:$0xf]
    %v2909 = vld [vmem:[%s4 + $0x3d8] sm:$0xf]
    %v2910 = vld [vmem:[%s4 + $0x3dc] sm:$0xf]
    %v2911 = vld [vmem:[%s4 + $0x3e0] sm:$0xf]
    %v2912 = vld [vmem:[%s4 + $0x3e4] sm:$0xf]
    %v2913 = vld [vmem:[%s4 + $0x3e8] sm:$0xf]
    %v2914 = vld [vmem:[%s4 + $0x3ec] sm:$0xf]
    %v2915 = vld [vmem:[%s4 + $0x3f0] sm:$0xf]
    %v2916 = vld [vmem:[%s4 + $0x3f4] sm:$0xf]
    %v2917 = vld [vmem:[%s4 + $0x3f8] sm:$0xf]
    %v2918 = vld [vmem:[%s4 + $0x3fc] sm:$0xf]
    %v2919 = vld [vmem:[%s4 + $0x400] sm:$0xf]
    %v2920 = vld [vmem:[%s4 + $0x404] sm:$0xf]
    %v2921 = vld [vmem:[%s4 + $0x408] sm:$0xf]
    %v2922 = vld [vmem:[%s4 + $0x40c] sm:$0xf]
    %v2923 = vld [vmem:[%s4 + $0x410] sm:$0xf]
    %v2924 = vld [vmem:[%s4 + $0x414] sm:$0xf]
    %v2925 = vld [vmem:[%s4 + $0x418] sm:$0xf]
    %v2926 = vld [vmem:[%s4 + $0x41c] sm:$0xf]
    %v2927 = vld [vmem:[%s4 + $0x420] sm:$0xf]
    %v2928 = vld [vmem:[%s4 + $0x424] sm:$0xf]
    %v2929 = vld [vmem:[%s4 + $0x428] sm:$0xf]
    %v2930 = vld [vmem:[%s4 + $0x42c] sm:$0xf]
    %v2931 = vld [vmem:[%s4 + $0x430] sm:$0xf]
    %v2932 = vld [vmem:[%s4 + $0x434] sm:$0xf]
    %v2933 = vld [vmem:[%s4 + $0x438] sm:$0xf]
    %v2934 = vld [vmem:[%s4 + $0x43c] sm:$0xf]
    %v2935 = vld [vmem:[%s4 + $0x440] sm:$0xf]
    %v2936 = vld [vmem:[%s4 + $0x444] sm:$0xf]
    %v2937 = vld [vmem:[%s4 + $0x448] sm:$0xf]
    %v2938 = vld [vmem:[%s4 + $0x44c] sm:$0xf]
    %v2939 = vld [vmem:[%s4 + $0x450] sm:$0xf]
    %v2940 = vld [vmem:[%s4 + $0x454] sm:$0xf]
    %v2941 = vld [vmem:[%s4 + $0x458] sm:$0xf]
    %v2942 = vld [vmem:[%s4 + $0x45c] sm:$0xf]
    %v2943 = vld [vmem:[%s4 + $0x460] sm:$0xf]
    %v2944 = vld [vmem:[%s4 + $0x464] sm:$0xf]
    %v2945 = vld [vmem:[%s4 + $0x468] sm:$0xf]
    %v2946 = vld [vmem:[%s4 + $0x46c] sm:$0xf]
    %v2947 = vld [vmem:[%s4 + $0x470] sm:$0xf]
    %v2948 = vld [vmem:[%s4 + $0x474] sm:$0xf]
    %v2949 = vld [vmem:[%s4 + $0x478] sm:$0xf]
    %v2950 = vld [vmem:[%s4 + $0x47c] sm:$0xf]
    %v2951 = vld [vmem:[%s4 + $0x480] sm:$0xf]
    %v2952 = vld [vmem:[%s4 + $0x484] sm:$0xf]
    %v2953 = vld [vmem:[%s4 + $0x488] sm:$0xf]
    %v2954 = vld [vmem:[%s4 + $0x48c] sm:$0xf]
    %v2955 = vld [vmem:[%s4 + $0x490] sm:$0xf]
    %v2956 = vld [vmem:[%s4 + $0x494] sm:$0xf]
    %v2957 = vld [vmem:[%s4 + $0x498] sm:$0xf]
    %v2958 = vld [vmem:[%s4 + $0x49c] sm:$0xf]
    %v2959 = vld [vmem:[%s4 + $0x4a0] sm:$0xf]
    %v2960 = vld [vmem:[%s4 + $0x4a4] sm:$0xf]
    %v2961 = vld [vmem:[%s4 + $0x4a8] sm:$0xf]
    %v2962 = vld [vmem:[%s4 + $0x4ac] sm:$0xf]
    %v2963 = vld [vmem:[%s4 + $0x4b0] sm:$0xf]
    %v2964 = vld [vmem:[%s4 + $0x4b4] sm:$0xf]
    %v2965 = vld [vmem:[%s4 + $0x4b8] sm:$0xf]
    %v2966 = vld [vmem:[%s4 + $0x4bc] sm:$0xf]
    %v2967 = vld [vmem:[%s4 + $0x4c0] sm:$0xf]
    %v2968 = vld [vmem:[%s4 + $0x4c4] sm:$0xf]
    %v2969 = vld [vmem:[%s4 + $0x4c8] sm:$0xf]
    %v2970 = vld [vmem:[%s4 + $0x4cc] sm:$0xf]
    %v2971 = vld [vmem:[%s4 + $0x4d0] sm:$0xf]
    %v2972 = vld [vmem:[%s4 + $0x4d4] sm:$0xf]
    %v2973 = vld [vmem:[%s4 + $0x4d8] sm:$0xf]
    %v2974 = vld [vmem:[%s4 + $0x4dc] sm:$0xf]
    %v2975 = vld [vmem:[%s4 + $0x4e0] sm:$0xf]
    %v2976 = vld [vmem:[%s4 + $0x4e4] sm:$0xf]
    %v2977 = vld [vmem:[%s4 + $0x4e8] sm:$0xf]
    %v2978 = vld [vmem:[%s4 + $0x4ec] sm:$0xf]
    %v2979 = vld [vmem:[%s4 + $0x4f0] sm:$0xf]
    %v2980 = vld [vmem:[%s4 + $0x4f4] sm:$0xf]
    %v2981 = vld [vmem:[%s4 + $0x4f8] sm:$0xf]
    %v2982 = vld [vmem:[%s4 + $0x4fc] sm:$0xf]
    %v2983 = vld [vmem:[%s4 + $0x500] sm:$0xf]
    %v2984 = vld [vmem:[%s4 + $0x504] sm:$0xf]
    %v2985 = vld [vmem:[%s4 + $0x508] sm:$0xf]
    %v2986 = vld [vmem:[%s4 + $0x50c] sm:$0xf]
    %v2987 = vld [vmem:[%s4 + $0x510] sm:$0xf]
    %v2988 = vld [vmem:[%s4 + $0x514] sm:$0xf]
    %v2989 = vld [vmem:[%s4 + $0x518] sm:$0xf]
    %v2990 = vld [vmem:[%s4 + $0x51c] sm:$0xf]
    %v2991 = vld [vmem:[%s4 + $0x520] sm:$0xf]
    %v2992 = vld [vmem:[%s4 + $0x524] sm:$0xf]
    %v2993 = vld [vmem:[%s4 + $0x528] sm:$0xf]
    %v2994 = vld [vmem:[%s4 + $0x52c] sm:$0xf]
    %v2995 = vld [vmem:[%s4 + $0x530] sm:$0xf]
    %v2996 = vld [vmem:[%s4 + $0x534] sm:$0xf]
    %v2997 = vld [vmem:[%s4 + $0x538] sm:$0xf]
    %v2998 = vld [vmem:[%s4 + $0x53c] sm:$0xf]
    %v2999 = vld [vmem:[%s4 + $0x540] sm:$0xf]
    %v3000 = vld [vmem:[%s4 + $0x544] sm:$0xf]
    %v3001 = vld [vmem:[%s4 + $0x548] sm:$0xf]
    %v3002 = vld [vmem:[%s4 + $0x54c] sm:$0xf]
    %v3003 = vld [vmem:[%s4 + $0x550] sm:$0xf]
    %v3004 = vld [vmem:[%s4 + $0x554] sm:$0xf]
    %v3005 = vld [vmem:[%s4 + $0x558] sm:$0xf]
    %v3006 = vld [vmem:[%s4 + $0x55c] sm:$0xf]
    %v3007 = vld [vmem:[%s4 + $0x560] sm:$0xf]
    %v3008 = vld [vmem:[%s4 + $0x564] sm:$0xf]
    %v3009 = vld [vmem:[%s4 + $0x568] sm:$0xf]
    %v3010 = vld [vmem:[%s4 + $0x56c] sm:$0xf]
    %v3011 = vld [vmem:[%s4 + $0x570] sm:$0xf]
    %v3012 = vld [vmem:[%s4 + $0x574] sm:$0xf]
    %v3013 = vld [vmem:[%s4 + $0x578] sm:$0xf]
    %v3014 = vld [vmem:[%s4 + $0x57c] sm:$0xf]
    %v3015 = vld [vmem:[%s4 + $0x580] sm:$0xf]
    %v3016 = vld [vmem:[%s4 + $0x584] sm:$0xf]
    %v3017 = vld [vmem:[%s4 + $0x588] sm:$0xf]
    %v3018 = vld [vmem:[%s4 + $0x58c] sm:$0xf]
    %v3019 = vld [vmem:[%s4 + $0x590] sm:$0xf]
    %v3020 = vld [vmem:[%s4 + $0x594] sm:$0xf]
    %v3021 = vld [vmem:[%s4 + $0x598] sm:$0xf]
    %v3022 = vld [vmem:[%s4 + $0x59c] sm:$0xf]
    %v3023 = vld [vmem:[%s4 + $0x5a0] sm:$0xf]
    %v3024 = vld [vmem:[%s4 + $0x5a4] sm:$0xf]
    %v3025 = vld [vmem:[%s4 + $0x5a8] sm:$0xf]
    %v3026 = vld [vmem:[%s4 + $0x5ac] sm:$0xf]
    %v3027 = vld [vmem:[%s4 + $0x5b0] sm:$0xf]
    %v3028 = vld [vmem:[%s4 + $0x5b4] sm:$0xf]
    %v3029 = vld [vmem:[%s4 + $0x5b8] sm:$0xf]
    %v3030 = vld [vmem:[%s4 + $0x5bc] sm:$0xf]
    %v3031 = vld [vmem:[%s4 + $0x5c0] sm:$0xf]
    %v3032 = vld [vmem:[%s4 + $0x5c4] sm:$0xf]
    %v3033 = vld [vmem:[%s4 + $0x5c8] sm:$0xf]
    %v3034 = vld [vmem:[%s4 + $0x5cc] sm:$0xf]
    %v3035 = vld [vmem:[%s4 + $0x5d0] sm:$0xf]
    %v3036 = vld [vmem:[%s4 + $0x5d4] sm:$0xf]
    %v3037 = vld [vmem:[%s4 + $0x5d8] sm:$0xf]
    %v3038 = vld [vmem:[%s4 + $0x5dc] sm:$0xf]
    %v3039 = vld [vmem:[%s4 + $0x5e0] sm:$0xf]
    %v3040 = vld [vmem:[%s4 + $0x5e4] sm:$0xf]
    %v3041 = vld [vmem:[%s4 + $0x5e8] sm:$0xf]
    %v3042 = vld [vmem:[%s4 + $0x5ec] sm:$0xf]
    %v3043 = vld [vmem:[%s4 + $0x5f0] sm:$0xf]
    %v3044 = vld [vmem:[%s4 + $0x5f4] sm:$0xf]
    %v3045 = vld [vmem:[%s4 + $0x5f8] sm:$0xf]
    %v3046 = vld [vmem:[%s4 + $0x5fc] sm:$0xf]
    %v3047 = vld [vmem:[%s4 + $0x600] sm:$0xf]
    %v3048 = vld [vmem:[%s4 + $0x604] sm:$0xf]
    %v3049 = vld [vmem:[%s4 + $0x608] sm:$0xf]
    %v3050 = vld [vmem:[%s4 + $0x60c] sm:$0xf]
    %v3051 = vld [vmem:[%s4 + $0x610] sm:$0xf]
    %v3052 = vld [vmem:[%s4 + $0x614] sm:$0xf]
    %v3053 = vld [vmem:[%s4 + $0x618] sm:$0xf]
    %v3054 = vld [vmem:[%s4 + $0x61c] sm:$0xf]
    %v3055 = vld [vmem:[%s4 + $0x620] sm:$0xf]
    %v3056 = vld [vmem:[%s4 + $0x624] sm:$0xf]
    %v3057 = vld [vmem:[%s4 + $0x628] sm:$0xf]
    %v3058 = vld [vmem:[%s4 + $0x62c] sm:$0xf]
    %v3059 = vld [vmem:[%s4 + $0x630] sm:$0xf]
    %v3060 = vld [vmem:[%s4 + $0x634] sm:$0xf]
    %v3061 = vld [vmem:[%s4 + $0x638] sm:$0xf]
    %v3062 = vld [vmem:[%s4 + $0x63c] sm:$0xf]
    %v3063 = vld [vmem:[%s4 + $0x640] sm:$0xf]
    %v3064 = vld [vmem:[%s4 + $0x644] sm:$0xf]
    %v3065 = vld [vmem:[%s4 + $0x648] sm:$0xf]
    %v3066 = vld [vmem:[%s4 + $0x64c] sm:$0xf]
    %v3067 = vld [vmem:[%s4 + $0x650] sm:$0xf]
    %v3068 = vld [vmem:[%s4 + $0x654] sm:$0xf]
    %v3069 = vld [vmem:[%s4 + $0x658] sm:$0xf]
    %v3070 = vld [vmem:[%s4 + $0x65c] sm:$0xf]
    %v3071 = vld [vmem:[%s4 + $0x660] sm:$0xf]
    %v3072 = vld [vmem:[%s4 + $0x664] sm:$0xf]
    %v3073 = vld [vmem:[%s4 + $0x668] sm:$0xf]
    %v3074 = vld [vmem:[%s4 + $0x66c] sm:$0xf]
    %v3075 = vld [vmem:[%s4 + $0x670] sm:$0xf]
    %v3076 = vld [vmem:[%s4 + $0x674] sm:$0xf]
    %v3077 = vld [vmem:[%s4 + $0x678] sm:$0xf]
    %v3078 = vld [vmem:[%s4 + $0x67c] sm:$0xf]
    %v3079 = vld [vmem:[%s4 + $0x680] sm:$0xf]
    %v3080 = vld [vmem:[%s4 + $0x684] sm:$0xf]
    %v3081 = vld [vmem:[%s4 + $0x688] sm:$0xf]
    %v3082 = vld [vmem:[%s4 + $0x68c] sm:$0xf]
    %v3083 = vld [vmem:[%s4 + $0x690] sm:$0xf]
    %v3084 = vld [vmem:[%s4 + $0x694] sm:$0xf]
    %v3085 = vld [vmem:[%s4 + $0x698] sm:$0xf]
    %v3086 = vld [vmem:[%s4 + $0x69c] sm:$0xf]
    %v3087 = vld [vmem:[%s4 + $0x6a0] sm:$0xf]
    %v3088 = vld [vmem:[%s4 + $0x6a4] sm:$0xf]
    %v3089 = vld [vmem:[%s4 + $0x6a8] sm:$0xf]
    %v3090 = vld [vmem:[%s4 + $0x6ac] sm:$0xf]
    %v3091 = vld [vmem:[%s4 + $0x6b0] sm:$0xf]
    %v3092 = vld [vmem:[%s4 + $0x6b4] sm:$0xf]
    %v3093 = vld [vmem:[%s4 + $0x6b8] sm:$0xf]
    %v3094 = vld [vmem:[%s4 + $0x6bc] sm:$0xf]
    %v3095 = vld [vmem:[%s4 + $0x6c0] sm:$0xf]
    %v3096 = vld [vmem:[%s4 + $0x6c4] sm:$0xf]
    %v3097 = vld [vmem:[%s4 + $0x6c8] sm:$0xf]
    %v3098 = vld [vmem:[%s4 + $0x6cc] sm:$0xf]
    %v3099 = vld [vmem:[%s4 + $0x6d0] sm:$0xf]
    %v3100 = vld [vmem:[%s4 + $0x6d4] sm:$0xf]
    %v3101 = vld [vmem:[%s4 + $0x6d8] sm:$0xf]
    %v3102 = vld [vmem:[%s4 + $0x6dc] sm:$0xf]
    %v3103 = vld [vmem:[%s4 + $0x6e0] sm:$0xf]
    %v3104 = vld [vmem:[%s4 + $0x6e4] sm:$0xf]
    %v3105 = vld [vmem:[%s4 + $0x6e8] sm:$0xf]
    %v3106 = vld [vmem:[%s4 + $0x6ec] sm:$0xf]
    %v3107 = vld [vmem:[%s4 + $0x6f0] sm:$0xf]
    %v3108 = vld [vmem:[%s4 + $0x6f4] sm:$0xf]
    %v3109 = vld [vmem:[%s4 + $0x6f8] sm:$0xf]
    %v3110 = vld [vmem:[%s4 + $0x6fc] sm:$0xf]
    %v3111 = vld [vmem:[%s4 + $0x700] sm:$0xf]
    %v3112 = vld [vmem:[%s4 + $0x704] sm:$0xf]
    %v3113 = vld [vmem:[%s4 + $0x708] sm:$0xf]
    %v3114 = vld [vmem:[%s4 + $0x70c] sm:$0xf]
    %v3115 = vld [vmem:[%s4 + $0x710] sm:$0xf]
    %v3116 = vld [vmem:[%s4 + $0x714] sm:$0xf]
    %v3117 = vld [vmem:[%s4 + $0x718] sm:$0xf]
    %v3118 = vld [vmem:[%s4 + $0x71c] sm:$0xf]
    %v3119 = vld [vmem:[%s4 + $0x720] sm:$0xf]
    %v3120 = vld [vmem:[%s4 + $0x724] sm:$0xf]
    %v3121 = vld [vmem:[%s4 + $0x728] sm:$0xf]
    %v3122 = vld [vmem:[%s4 + $0x72c] sm:$0xf]
    %v3123 = vld [vmem:[%s4 + $0x730] sm:$0xf]
    %v3124 = vld [vmem:[%s4 + $0x734] sm:$0xf]
    %v3125 = vld [vmem:[%s4 + $0x738] sm:$0xf]
    %v3126 = vld [vmem:[%s4 + $0x73c] sm:$0xf]
    %v3127 = vld [vmem:[%s4 + $0x740] sm:$0xf]
    %v3128 = vld [vmem:[%s4 + $0x744] sm:$0xf]
    %v3129 = vld [vmem:[%s4 + $0x748] sm:$0xf]
    %v3130 = vld [vmem:[%s4 + $0x74c] sm:$0xf]
    %v3131 = vld [vmem:[%s4 + $0x750] sm:$0xf]
    %v3132 = vld [vmem:[%s4 + $0x754] sm:$0xf]
    %v3133 = vld [vmem:[%s4 + $0x758] sm:$0xf]
    %v3134 = vld [vmem:[%s4 + $0x75c] sm:$0xf]
    %v3135 = vld [vmem:[%s4 + $0x760] sm:$0xf]
    %v3136 = vld [vmem:[%s4 + $0x764] sm:$0xf]
    %v3137 = vld [vmem:[%s4 + $0x768] sm:$0xf]
    %v3138 = vld [vmem:[%s4 + $0x76c] sm:$0xf]
    %v3139 = vld [vmem:[%s4 + $0x770] sm:$0xf]
    %v3140 = vld [vmem:[%s4 + $0x774] sm:$0xf]
    %v3141 = vld [vmem:[%s4 + $0x778] sm:$0xf]
    %v3142 = vld [vmem:[%s4 + $0x77c] sm:$0xf]
    %v3143 = vld [vmem:[%s4 + $0x780] sm:$0xf]
    %v3144 = vld [vmem:[%s4 + $0x784] sm:$0xf]
    %v3145 = vld [vmem:[%s4 + $0x788] sm:$0xf]
    %v3146 = vld [vmem:[%s4 + $0x78c] sm:$0xf]
    %v3147 = vld [vmem:[%s4 + $0x790] sm:$0xf]
    %v3148 = vld [vmem:[%s4 + $0x794] sm:$0xf]
    %v3149 = vld [vmem:[%s4 + $0x798] sm:$0xf]
    %v3150 = vld [vmem:[%s4 + $0x79c] sm:$0xf]
    %v3151 = vld [vmem:[%s4 + $0x7a0] sm:$0xf]
    %v3152 = vld [vmem:[%s4 + $0x7a4] sm:$0xf]
    %v3153 = vld [vmem:[%s4 + $0x7a8] sm:$0xf]
    %v3154 = vld [vmem:[%s4 + $0x7ac] sm:$0xf]
    %v3155 = vld [vmem:[%s4 + $0x7b0] sm:$0xf]
    %v3156 = vld [vmem:[%s4 + $0x7b4] sm:$0xf]
    %v3157 = vld [vmem:[%s4 + $0x7b8] sm:$0xf]
    %v3158 = vld [vmem:[%s4 + $0x7bc] sm:$0xf]
    %v3159 = vld [vmem:[%s4 + $0x7c0] sm:$0xf]
    %v3160 = vld [vmem:[%s4 + $0x7c4] sm:$0xf]
    %v3161 = vld [vmem:[%s4 + $0x7c8] sm:$0xf]
    %v3162 = vld [vmem:[%s4 + $0x7cc] sm:$0xf]
    %v3163 = vld [vmem:[%s4 + $0x7d0] sm:$0xf]
    %v3164 = vld [vmem:[%s4 + $0x7d4] sm:$0xf]
    %v3165 = vld [vmem:[%s4 + $0x7d8] sm:$0xf]
    %v3166 = vld [vmem:[%s4 + $0x7dc] sm:$0xf]
    %v3167 = vld [vmem:[%s4 + $0x7e0] sm:$0xf]
    %v3168 = vld [vmem:[%s4 + $0x7e4] sm:$0xf]
    %v3169 = vld [vmem:[%s4 + $0x7e8] sm:$0xf]
    %v3170 = vld [vmem:[%s4 + $0x7ec] sm:$0xf]
    %v3171 = vld [vmem:[%s4 + $0x7f0] sm:$0xf]
    %v3172 = vld [vmem:[%s4 + $0x7f4] sm:$0xf]
    %v3173 = vld [vmem:[%s4 + $0x7f8] sm:$0xf]
    %v3174 = vld [vmem:[%s4 + $0x7fc] sm:$0xf]
    %v3175 = vld [vmem:[%s5] sm:$0x1]
    %v3177 = vlaneseq
    %v3178 = vshrl.u32 %v3177, 7
    %v3179 = vsub.s32 0, %v3178
    %v3180 = vrot.slane %v3175, %v3179
    %v3694 = vunpack.c.l.b16 %v2663
    %v3695 = vunpack.c.l.b16 %v2664
    %v3696 = vunpack.c.l.b16 %v2665
    %v3697 = vunpack.c.l.b16 %v2666
    %v3698 = vunpack.c.l.b16 %v2667
    %v3699 = vunpack.c.l.b16 %v2668
    %v3700 = vunpack.c.l.b16 %v2669
    %v3701 = vunpack.c.l.b16 %v2670
    %v3702 = vunpack.c.l.b16 %v2671
    %v3703 = vunpack.c.l.b16 %v2672
    %v3704 = vunpack.c.l.b16 %v2673
    %v3705 = vunpack.c.l.b16 %v2674
    %v3706 = vunpack.c.l.b16 %v2675
    %v3707 = vunpack.c.l.b16 %v2676
    %v3708 = vunpack.c.l.b16 %v2677
    %v3709 = vunpack.c.l.b16 %v2678
    %v3710 = vunpack.c.l.b16 %v2679
    %v3711 = vunpack.c.l.b16 %v2680
    %v3712 = vunpack.c.l.b16 %v2681
    %v3713 = vunpack.c.l.b16 %v2682
    %v3714 = vunpack.c.l.b16 %v2683
    %v3715 = vunpack.c.l.b16 %v2684
    %v3716 = vunpack.c.l.b16 %v2685
    %v3717 = vunpack.c.l.b16 %v2686
    %v3718 = vunpack.c.l.b16 %v2687
    %v3719 = vunpack.c.l.b16 %v2688
    %v3720 = vunpack.c.l.b16 %v2689
    %v3721 = vunpack.c.l.b16 %v2690
    %v3722 = vunpack.c.l.b16 %v2691
    %v3723 = vunpack.c.l.b16 %v2692
    %v3724 = vunpack.c.l.b16 %v2693
    %v3725 = vunpack.c.l.b16 %v2694
    %v3726 = vunpack.c.l.b16 %v2695
    %v3727 = vunpack.c.l.b16 %v2696
    %v3728 = vunpack.c.l.b16 %v2697
    %v3729 = vunpack.c.l.b16 %v2698
    %v3730 = vunpack.c.l.b16 %v2699
    %v3731 = vunpack.c.l.b16 %v2700
    %v3732 = vunpack.c.l.b16 %v2701
    %v3733 = vunpack.c.l.b16 %v2702
    %v3734 = vunpack.c.l.b16 %v2703
    %v3735 = vunpack.c.l.b16 %v2704
    %v3736 = vunpack.c.l.b16 %v2705
    %v3737 = vunpack.c.l.b16 %v2706
    %v3738 = vunpack.c.l.b16 %v2707
    %v3739 = vunpack.c.l.b16 %v2708
    %v3740 = vunpack.c.l.b16 %v2709
    %v3741 = vunpack.c.l.b16 %v2710
    %v3742 = vunpack.c.l.b16 %v2711
    %v3743 = vunpack.c.l.b16 %v2712
    %v3744 = vunpack.c.l.b16 %v2713
    %v3745 = vunpack.c.l.b16 %v2714
    %v3746 = vunpack.c.l.b16 %v2715
    %v3747 = vunpack.c.l.b16 %v2716
    %v3748 = vunpack.c.l.b16 %v2717
    %v3749 = vunpack.c.l.b16 %v2718
    %v3750 = vunpack.c.l.b16 %v2719
    %v3751 = vunpack.c.l.b16 %v2720
    %v3752 = vunpack.c.l.b16 %v2721
    %v3753 = vunpack.c.l.b16 %v2722
    %v3754 = vunpack.c.l.b16 %v2723
    %v3755 = vunpack.c.l.b16 %v2724
    %v3756 = vunpack.c.l.b16 %v2725
    %v3757 = vunpack.c.l.b16 %v2726
    %v3758 = vunpack.c.l.b16 %v2727
    %v3759 = vunpack.c.l.b16 %v2728
    %v3760 = vunpack.c.l.b16 %v2729
    %v3761 = vunpack.c.l.b16 %v2730
    %v3762 = vunpack.c.l.b16 %v2731
    %v3763 = vunpack.c.l.b16 %v2732
    %v3764 = vunpack.c.l.b16 %v2733
    %v3765 = vunpack.c.l.b16 %v2734
    %v3766 = vunpack.c.l.b16 %v2735
    %v3767 = vunpack.c.l.b16 %v2736
    %v3768 = vunpack.c.l.b16 %v2737
    %v3769 = vunpack.c.l.b16 %v2738
    %v3770 = vunpack.c.l.b16 %v2739
    %v3771 = vunpack.c.l.b16 %v2740
    %v3772 = vunpack.c.l.b16 %v2741
    %v3773 = vunpack.c.l.b16 %v2742
    %v3774 = vunpack.c.l.b16 %v2743
    %v3775 = vunpack.c.l.b16 %v2744
    %v3776 = vunpack.c.l.b16 %v2745
    %v3777 = vunpack.c.l.b16 %v2746
    %v3778 = vunpack.c.l.b16 %v2747
    %v3779 = vunpack.c.l.b16 %v2748
    %v3780 = vunpack.c.l.b16 %v2749
    %v3781 = vunpack.c.l.b16 %v2750
    %v3782 = vunpack.c.l.b16 %v2751
    %v3783 = vunpack.c.l.b16 %v2752
    %v3784 = vunpack.c.l.b16 %v2753
    %v3785 = vunpack.c.l.b16 %v2754
    %v3786 = vunpack.c.l.b16 %v2755
    %v3787 = vunpack.c.l.b16 %v2756
    %v3788 = vunpack.c.l.b16 %v2757
    %v3789 = vunpack.c.l.b16 %v2758
    %v3790 = vunpack.c.l.b16 %v2759
    %v3791 = vunpack.c.l.b16 %v2760
    %v3792 = vunpack.c.l.b16 %v2761
    %v3793 = vunpack.c.l.b16 %v2762
    %v3794 = vunpack.c.l.b16 %v2763
    %v3795 = vunpack.c.l.b16 %v2764
    %v3796 = vunpack.c.l.b16 %v2765
    %v3797 = vunpack.c.l.b16 %v2766
    %v3798 = vunpack.c.l.b16 %v2767
    %v3799 = vunpack.c.l.b16 %v2768
    %v3800 = vunpack.c.l.b16 %v2769
    %v3801 = vunpack.c.l.b16 %v2770
    %v3802 = vunpack.c.l.b16 %v2771
    %v3803 = vunpack.c.l.b16 %v2772
    %v3804 = vunpack.c.l.b16 %v2773
    %v3805 = vunpack.c.l.b16 %v2774
    %v3806 = vunpack.c.l.b16 %v2775
    %v3807 = vunpack.c.l.b16 %v2776
    %v3808 = vunpack.c.l.b16 %v2777
    %v3809 = vunpack.c.l.b16 %v2778
    %v3810 = vunpack.c.l.b16 %v2779
    %v3811 = vunpack.c.l.b16 %v2780
    %v3812 = vunpack.c.l.b16 %v2781
    %v3813 = vunpack.c.l.b16 %v2782
    %v3814 = vunpack.c.l.b16 %v2783
    %v3815 = vunpack.c.l.b16 %v2784
    %v3816 = vunpack.c.l.b16 %v2785
    %v3817 = vunpack.c.l.b16 %v2786
    %v3818 = vunpack.c.l.b16 %v2787
    %v3819 = vunpack.c.l.b16 %v2788
    %v3820 = vunpack.c.l.b16 %v2789
    %v3821 = vunpack.c.l.b16 %v2790
    %v3822 = vunpack.c.l.b16 %v2791
    %v3823 = vunpack.c.l.b16 %v2792
    %v3824 = vunpack.c.l.b16 %v2793
    %v3825 = vunpack.c.l.b16 %v2794
    %v3826 = vunpack.c.l.b16 %v2795
    %v3827 = vunpack.c.l.b16 %v2796
    %v3828 = vunpack.c.l.b16 %v2797
    %v3829 = vunpack.c.l.b16 %v2798
    %v3830 = vunpack.c.l.b16 %v2799
    %v3831 = vunpack.c.l.b16 %v2800
    %v3832 = vunpack.c.l.b16 %v2801
    %v3833 = vunpack.c.l.b16 %v2802
    %v3834 = vunpack.c.l.b16 %v2803
    %v3835 = vunpack.c.l.b16 %v2804
    %v3836 = vunpack.c.l.b16 %v2805
    %v3837 = vunpack.c.l.b16 %v2806
    %v3838 = vunpack.c.l.b16 %v2807
    %v3839 = vunpack.c.l.b16 %v2808
    %v3840 = vunpack.c.l.b16 %v2809
    %v3841 = vunpack.c.l.b16 %v2810
    %v3842 = vunpack.c.l.b16 %v2811
    %v3843 = vunpack.c.l.b16 %v2812
    %v3844 = vunpack.c.l.b16 %v2813
    %v3845 = vunpack.c.l.b16 %v2814
    %v3846 = vunpack.c.l.b16 %v2815
    %v3847 = vunpack.c.l.b16 %v2816
    %v3848 = vunpack.c.l.b16 %v2817
    %v3849 = vunpack.c.l.b16 %v2818
    %v3850 = vunpack.c.l.b16 %v2819
    %v3851 = vunpack.c.l.b16 %v2820
    %v3852 = vunpack.c.l.b16 %v2821
    %v3853 = vunpack.c.l.b16 %v2822
    %v3854 = vunpack.c.l.b16 %v2823
    %v3855 = vunpack.c.l.b16 %v2824
    %v3856 = vunpack.c.l.b16 %v2825
    %v3857 = vunpack.c.l.b16 %v2826
    %v3858 = vunpack.c.l.b16 %v2827
    %v3859 = vunpack.c.l.b16 %v2828
    %v3860 = vunpack.c.l.b16 %v2829
    %v3861 = vunpack.c.l.b16 %v2830
    %v3862 = vunpack.c.l.b16 %v2831
    %v3863 = vunpack.c.l.b16 %v2832
    %v3864 = vunpack.c.l.b16 %v2833
    %v3865 = vunpack.c.l.b16 %v2834
    %v3866 = vunpack.c.l.b16 %v2835
    %v3867 = vunpack.c.l.b16 %v2836
    %v3868 = vunpack.c.l.b16 %v2837
    %v3869 = vunpack.c.l.b16 %v2838
    %v3870 = vunpack.c.l.b16 %v2839
    %v3871 = vunpack.c.l.b16 %v2840
    %v3872 = vunpack.c.l.b16 %v2841
    %v3873 = vunpack.c.l.b16 %v2842
    %v3874 = vunpack.c.l.b16 %v2843
    %v3875 = vunpack.c.l.b16 %v2844
    %v3876 = vunpack.c.l.b16 %v2845
    %v3877 = vunpack.c.l.b16 %v2846
    %v3878 = vunpack.c.l.b16 %v2847
    %v3879 = vunpack.c.l.b16 %v2848
    %v3880 = vunpack.c.l.b16 %v2849
    %v3881 = vunpack.c.l.b16 %v2850
    %v3882 = vunpack.c.l.b16 %v2851
    %v3883 = vunpack.c.l.b16 %v2852
    %v3884 = vunpack.c.l.b16 %v2853
    %v3885 = vunpack.c.l.b16 %v2854
    %v3886 = vunpack.c.l.b16 %v2855
    %v3887 = vunpack.c.l.b16 %v2856
    %v3888 = vunpack.c.l.b16 %v2857
    %v3889 = vunpack.c.l.b16 %v2858
    %v3890 = vunpack.c.l.b16 %v2859
    %v3891 = vunpack.c.l.b16 %v2860
    %v3892 = vunpack.c.l.b16 %v2861
    %v3893 = vunpack.c.l.b16 %v2862
    %v3894 = vunpack.c.l.b16 %v2863
    %v3895 = vunpack.c.l.b16 %v2864
    %v3896 = vunpack.c.l.b16 %v2865
    %v3897 = vunpack.c.l.b16 %v2866
    %v3898 = vunpack.c.l.b16 %v2867
    %v3899 = vunpack.c.l.b16 %v2868
    %v3900 = vunpack.c.l.b16 %v2869
    %v3901 = vunpack.c.l.b16 %v2870
    %v3902 = vunpack.c.l.b16 %v2871
    %v3903 = vunpack.c.l.b16 %v2872
    %v3904 = vunpack.c.l.b16 %v2873
    %v3905 = vunpack.c.l.b16 %v2874
    %v3906 = vunpack.c.l.b16 %v2875
    %v3907 = vunpack.c.l.b16 %v2876
    %v3908 = vunpack.c.l.b16 %v2877
    %v3909 = vunpack.c.l.b16 %v2878
    %v3910 = vunpack.c.l.b16 %v2879
    %v3911 = vunpack.c.l.b16 %v2880
    %v3912 = vunpack.c.l.b16 %v2881
    %v3913 = vunpack.c.l.b16 %v2882
    %v3914 = vunpack.c.l.b16 %v2883
    %v3915 = vunpack.c.l.b16 %v2884
    %v3916 = vunpack.c.l.b16 %v2885
    %v3917 = vunpack.c.l.b16 %v2886
    %v3918 = vunpack.c.l.b16 %v2887
    %v3919 = vunpack.c.l.b16 %v2888
    %v3920 = vunpack.c.l.b16 %v2889
    %v3921 = vunpack.c.l.b16 %v2890
    %v3922 = vunpack.c.l.b16 %v2891
    %v3923 = vunpack.c.l.b16 %v2892
    %v3924 = vunpack.c.l.b16 %v2893
    %v3925 = vunpack.c.l.b16 %v2894
    %v3926 = vunpack.c.l.b16 %v2895
    %v3927 = vunpack.c.l.b16 %v2896
    %v3928 = vunpack.c.l.b16 %v2897
    %v3929 = vunpack.c.l.b16 %v2898
    %v3930 = vunpack.c.l.b16 %v2899
    %v3931 = vunpack.c.l.b16 %v2900
    %v3932 = vunpack.c.l.b16 %v2901
    %v3933 = vunpack.c.l.b16 %v2902
    %v3934 = vunpack.c.l.b16 %v2903
    %v3935 = vunpack.c.l.b16 %v2904
    %v3936 = vunpack.c.l.b16 %v2905
    %v3937 = vunpack.c.l.b16 %v2906
    %v3938 = vunpack.c.l.b16 %v2907
    %v3939 = vunpack.c.l.b16 %v2908
    %v3940 = vunpack.c.l.b16 %v2909
    %v3941 = vunpack.c.l.b16 %v2910
    %v3942 = vunpack.c.l.b16 %v2911
    %v3943 = vunpack.c.l.b16 %v2912
    %v3944 = vunpack.c.l.b16 %v2913
    %v3945 = vunpack.c.l.b16 %v2914
    %v3946 = vunpack.c.l.b16 %v2915
    %v3947 = vunpack.c.l.b16 %v2916
    %v3948 = vunpack.c.l.b16 %v2917
    %v3949 = vunpack.c.l.b16 %v2918
    %v3950 = vunpack.c.l.b16 %v2919
    %v3951 = vunpack.c.l.b16 %v2920
    %v3952 = vunpack.c.l.b16 %v2921
    %v3953 = vunpack.c.l.b16 %v2922
    %v3954 = vunpack.c.l.b16 %v2923
    %v3955 = vunpack.c.l.b16 %v2924
    %v3956 = vunpack.c.l.b16 %v2925
    %v3957 = vunpack.c.l.b16 %v2926
    %v3958 = vunpack.c.l.b16 %v2927
    %v3959 = vunpack.c.l.b16 %v2928
    %v3960 = vunpack.c.l.b16 %v2929
    %v3961 = vunpack.c.l.b16 %v2930
    %v3962 = vunpack.c.l.b16 %v2931
    %v3963 = vunpack.c.l.b16 %v2932
    %v3964 = vunpack.c.l.b16 %v2933
    %v3965 = vunpack.c.l.b16 %v2934
    %v3966 = vunpack.c.l.b16 %v2935
    %v3967 = vunpack.c.l.b16 %v2936
    %v3968 = vunpack.c.l.b16 %v2937
    %v3969 = vunpack.c.l.b16 %v2938
    %v3970 = vunpack.c.l.b16 %v2939
    %v3971 = vunpack.c.l.b16 %v2940
    %v3972 = vunpack.c.l.b16 %v2941
    %v3973 = vunpack.c.l.b16 %v2942
    %v3974 = vunpack.c.l.b16 %v2943
    %v3975 = vunpack.c.l.b16 %v2944
    %v3976 = vunpack.c.l.b16 %v2945
    %v3977 = vunpack.c.l.b16 %v2946
    %v3978 = vunpack.c.l.b16 %v2947
    %v3979 = vunpack.c.l.b16 %v2948
    %v3980 = vunpack.c.l.b16 %v2949
    %v3981 = vunpack.c.l.b16 %v2950
    %v3982 = vunpack.c.l.b16 %v2951
    %v3983 = vunpack.c.l.b16 %v2952
    %v3984 = vunpack.c.l.b16 %v2953
    %v3985 = vunpack.c.l.b16 %v2954
    %v3986 = vunpack.c.l.b16 %v2955
    %v3987 = vunpack.c.l.b16 %v2956
    %v3988 = vunpack.c.l.b16 %v2957
    %v3989 = vunpack.c.l.b16 %v2958
    %v3990 = vunpack.c.l.b16 %v2959
    %v3991 = vunpack.c.l.b16 %v2960
    %v3992 = vunpack.c.l.b16 %v2961
    %v3993 = vunpack.c.l.b16 %v2962
    %v3994 = vunpack.c.l.b16 %v2963
    %v3995 = vunpack.c.l.b16 %v2964
    %v3996 = vunpack.c.l.b16 %v2965
    %v3997 = vunpack.c.l.b16 %v2966
    %v3998 = vunpack.c.l.b16 %v2967
    %v3999 = vunpack.c.l.b16 %v2968
    %v4000 = vunpack.c.l.b16 %v2969
    %v4001 = vunpack.c.l.b16 %v2970
    %v4002 = vunpack.c.l.b16 %v2971
    %v4003 = vunpack.c.l.b16 %v2972
    %v4004 = vunpack.c.l.b16 %v2973
    %v4005 = vunpack.c.l.b16 %v2974
    %v4006 = vunpack.c.l.b16 %v2975
    %v4007 = vunpack.c.l.b16 %v2976
    %v4008 = vunpack.c.l.b16 %v2977
    %v4009 = vunpack.c.l.b16 %v2978
    %v4010 = vunpack.c.l.b16 %v2979
    %v4011 = vunpack.c.l.b16 %v2980
    %v4012 = vunpack.c.l.b16 %v2981
    %v4013 = vunpack.c.l.b16 %v2982
    %v4014 = vunpack.c.l.b16 %v2983
    %v4015 = vunpack.c.l.b16 %v2984
    %v4016 = vunpack.c.l.b16 %v2985
    %v4017 = vunpack.c.l.b16 %v2986
    %v4018 = vunpack.c.l.b16 %v2987
    %v4019 = vunpack.c.l.b16 %v2988
    %v4020 = vunpack.c.l.b16 %v2989
    %v4021 = vunpack.c.l.b16 %v2990
    %v4022 = vunpack.c.l.b16 %v2991
    %v4023 = vunpack.c.l.b16 %v2992
    %v4024 = vunpack.c.l.b16 %v2993
    %v4025 = vunpack.c.l.b16 %v2994
    %v4026 = vunpack.c.l.b16 %v2995
    %v4027 = vunpack.c.l.b16 %v2996
    %v4028 = vunpack.c.l.b16 %v2997
    %v4029 = vunpack.c.l.b16 %v2998
    %v4030 = vunpack.c.l.b16 %v2999
    %v4031 = vunpack.c.l.b16 %v3000
    %v4032 = vunpack.c.l.b16 %v3001
    %v4033 = vunpack.c.l.b16 %v3002
    %v4034 = vunpack.c.l.b16 %v3003
    %v4035 = vunpack.c.l.b16 %v3004
    %v4036 = vunpack.c.l.b16 %v3005
    %v4037 = vunpack.c.l.b16 %v3006
    %v4038 = vunpack.c.l.b16 %v3007
    %v4039 = vunpack.c.l.b16 %v3008
    %v4040 = vunpack.c.l.b16 %v3009
    %v4041 = vunpack.c.l.b16 %v3010
    %v4042 = vunpack.c.l.b16 %v3011
    %v4043 = vunpack.c.l.b16 %v3012
    %v4044 = vunpack.c.l.b16 %v3013
    %v4045 = vunpack.c.l.b16 %v3014
    %v4046 = vunpack.c.l.b16 %v3015
    %v4047 = vunpack.c.l.b16 %v3016
    %v4048 = vunpack.c.l.b16 %v3017
    %v4049 = vunpack.c.l.b16 %v3018
    %v4050 = vunpack.c.l.b16 %v3019
    %v4051 = vunpack.c.l.b16 %v3020
    %v4052 = vunpack.c.l.b16 %v3021
    %v4053 = vunpack.c.l.b16 %v3022
    %v4054 = vunpack.c.l.b16 %v3023
    %v4055 = vunpack.c.l.b16 %v3024
    %v4056 = vunpack.c.l.b16 %v3025
    %v4057 = vunpack.c.l.b16 %v3026
    %v4058 = vunpack.c.l.b16 %v3027
    %v4059 = vunpack.c.l.b16 %v3028
    %v4060 = vunpack.c.l.b16 %v3029
    %v4061 = vunpack.c.l.b16 %v3030
    %v4062 = vunpack.c.l.b16 %v3031
    %v4063 = vunpack.c.l.b16 %v3032
    %v4064 = vunpack.c.l.b16 %v3033
    %v4065 = vunpack.c.l.b16 %v3034
    %v4066 = vunpack.c.l.b16 %v3035
    %v4067 = vunpack.c.l.b16 %v3036
    %v4068 = vunpack.c.l.b16 %v3037
    %v4069 = vunpack.c.l.b16 %v3038
    %v4070 = vunpack.c.l.b16 %v3039
    %v4071 = vunpack.c.l.b16 %v3040
    %v4072 = vunpack.c.l.b16 %v3041
    %v4073 = vunpack.c.l.b16 %v3042
    %v4074 = vunpack.c.l.b16 %v3043
    %v4075 = vunpack.c.l.b16 %v3044
    %v4076 = vunpack.c.l.b16 %v3045
    %v4077 = vunpack.c.l.b16 %v3046
    %v4078 = vunpack.c.l.b16 %v3047
    %v4079 = vunpack.c.l.b16 %v3048
    %v4080 = vunpack.c.l.b16 %v3049
    %v4081 = vunpack.c.l.b16 %v3050
    %v4082 = vunpack.c.l.b16 %v3051
    %v4083 = vunpack.c.l.b16 %v3052
    %v4084 = vunpack.c.l.b16 %v3053
    %v4085 = vunpack.c.l.b16 %v3054
    %v4086 = vunpack.c.l.b16 %v3055
    %v4087 = vunpack.c.l.b16 %v3056
    %v4088 = vunpack.c.l.b16 %v3057
    %v4089 = vunpack.c.l.b16 %v3058
    %v4090 = vunpack.c.l.b16 %v3059
    %v4091 = vunpack.c.l.b16 %v3060
    %v4092 = vunpack.c.l.b16 %v3061
    %v4093 = vunpack.c.l.b16 %v3062
    %v4094 = vunpack.c.l.b16 %v3063
    %v4095 = vunpack.c.l.b16 %v3064
    %v4096 = vunpack.c.l.b16 %v3065
    %v4097 = vunpack.c.l.b16 %v3066
    %v4098 = vunpack.c.l.b16 %v3067
    %v4099 = vunpack.c.l.b16 %v3068
    %v4100 = vunpack.c.l.b16 %v3069
    %v4101 = vunpack.c.l.b16 %v3070
    %v4102 = vunpack.c.l.b16 %v3071
    %v4103 = vunpack.c.l.b16 %v3072
    %v4104 = vunpack.c.l.b16 %v3073
    %v4105 = vunpack.c.l.b16 %v3074
    %v4106 = vunpack.c.l.b16 %v3075
    %v4107 = vunpack.c.l.b16 %v3076
    %v4108 = vunpack.c.l.b16 %v3077
    %v4109 = vunpack.c.l.b16 %v3078
    %v4110 = vunpack.c.l.b16 %v3079
    %v4111 = vunpack.c.l.b16 %v3080
    %v4112 = vunpack.c.l.b16 %v3081
    %v4113 = vunpack.c.l.b16 %v3082
    %v4114 = vunpack.c.l.b16 %v3083
    %v4115 = vunpack.c.l.b16 %v3084
    %v4116 = vunpack.c.l.b16 %v3085
    %v4117 = vunpack.c.l.b16 %v3086
    %v4118 = vunpack.c.l.b16 %v3087
    %v4119 = vunpack.c.l.b16 %v3088
    %v4120 = vunpack.c.l.b16 %v3089
    %v4121 = vunpack.c.l.b16 %v3090
    %v4122 = vunpack.c.l.b16 %v3091
    %v4123 = vunpack.c.l.b16 %v3092
    %v4124 = vunpack.c.l.b16 %v3093
    %v4125 = vunpack.c.l.b16 %v3094
    %v4126 = vunpack.c.l.b16 %v3095
    %v4127 = vunpack.c.l.b16 %v3096
    %v4128 = vunpack.c.l.b16 %v3097
    %v4129 = vunpack.c.l.b16 %v3098
    %v4130 = vunpack.c.l.b16 %v3099
    %v4131 = vunpack.c.l.b16 %v3100
    %v4132 = vunpack.c.l.b16 %v3101
    %v4133 = vunpack.c.l.b16 %v3102
    %v4134 = vunpack.c.l.b16 %v3103
    %v4135 = vunpack.c.l.b16 %v3104
    %v4136 = vunpack.c.l.b16 %v3105
    %v4137 = vunpack.c.l.b16 %v3106
    %v4138 = vunpack.c.l.b16 %v3107
    %v4139 = vunpack.c.l.b16 %v3108
    %v4140 = vunpack.c.l.b16 %v3109
    %v4141 = vunpack.c.l.b16 %v3110
    %v4142 = vunpack.c.l.b16 %v3111
    %v4143 = vunpack.c.l.b16 %v3112
    %v4144 = vunpack.c.l.b16 %v3113
    %v4145 = vunpack.c.l.b16 %v3114
    %v4146 = vunpack.c.l.b16 %v3115
    %v4147 = vunpack.c.l.b16 %v3116
    %v4148 = vunpack.c.l.b16 %v3117
    %v4149 = vunpack.c.l.b16 %v3118
    %v4150 = vunpack.c.l.b16 %v3119
    %v4151 = vunpack.c.l.b16 %v3120
    %v4152 = vunpack.c.l.b16 %v3121
    %v4153 = vunpack.c.l.b16 %v3122
    %v4154 = vunpack.c.l.b16 %v3123
    %v4155 = vunpack.c.l.b16 %v3124
    %v4156 = vunpack.c.l.b16 %v3125
    %v4157 = vunpack.c.l.b16 %v3126
    %v4158 = vunpack.c.l.b16 %v3127
    %v4159 = vunpack.c.l.b16 %v3128
    %v4160 = vunpack.c.l.b16 %v3129
    %v4161 = vunpack.c.l.b16 %v3130
    %v4162 = vunpack.c.l.b16 %v3131
    %v4163 = vunpack.c.l.b16 %v3132
    %v4164 = vunpack.c.l.b16 %v3133
    %v4165 = vunpack.c.l.b16 %v3134
    %v4166 = vunpack.c.l.b16 %v3135
    %v4167 = vunpack.c.l.b16 %v3136
    %v4168 = vunpack.c.l.b16 %v3137
    %v4169 = vunpack.c.l.b16 %v3138
    %v4170 = vunpack.c.l.b16 %v3139
    %v4171 = vunpack.c.l.b16 %v3140
    %v4172 = vunpack.c.l.b16 %v3141
    %v4173 = vunpack.c.l.b16 %v3142
    %v4174 = vunpack.c.l.b16 %v3143
    %v4175 = vunpack.c.l.b16 %v3144
    %v4176 = vunpack.c.l.b16 %v3145
    %v4177 = vunpack.c.l.b16 %v3146
    %v4178 = vunpack.c.l.b16 %v3147
    %v4179 = vunpack.c.l.b16 %v3148
    %v4180 = vunpack.c.l.b16 %v3149
    %v4181 = vunpack.c.l.b16 %v3150
    %v4182 = vunpack.c.l.b16 %v3151
    %v4183 = vunpack.c.l.b16 %v3152
    %v4184 = vunpack.c.l.b16 %v3153
    %v4185 = vunpack.c.l.b16 %v3154
    %v4186 = vunpack.c.l.b16 %v3155
    %v4187 = vunpack.c.l.b16 %v3156
    %v4188 = vunpack.c.l.b16 %v3157
    %v4189 = vunpack.c.l.b16 %v3158
    %v4190 = vunpack.c.l.b16 %v3159
    %v4191 = vunpack.c.l.b16 %v3160
    %v4192 = vunpack.c.l.b16 %v3161
    %v4193 = vunpack.c.l.b16 %v3162
    %v4194 = vunpack.c.l.b16 %v3163
    %v4195 = vunpack.c.l.b16 %v3164
    %v4196 = vunpack.c.l.b16 %v3165
    %v4197 = vunpack.c.l.b16 %v3166
    %v4198 = vunpack.c.l.b16 %v3167
    %v4199 = vunpack.c.l.b16 %v3168
    %v4200 = vunpack.c.l.b16 %v3169
    %v4201 = vunpack.c.l.b16 %v3170
    %v4202 = vunpack.c.l.b16 %v3171
    %v4203 = vunpack.c.l.b16 %v3172
    %v4204 = vunpack.c.l.b16 %v3173
    %v4205 = vunpack.c.l.b16 %v3174
    %v4206 = vpack.c.b16 %v3695, %v3694
    %v4207 = vpack.c.b16 %v3697, %v3696
    %v4208 = vpack.c.b16 %v3699, %v3698
    %v4209 = vpack.c.b16 %v3701, %v3700
    %v4210 = vpack.c.b16 %v3703, %v3702
    %v4211 = vpack.c.b16 %v3705, %v3704
    %v4212 = vpack.c.b16 %v3707, %v3706
    %v4213 = vpack.c.b16 %v3709, %v3708
    %v4214 = vpack.c.b16 %v3711, %v3710
    %v4215 = vpack.c.b16 %v3713, %v3712
    %v4216 = vpack.c.b16 %v3715, %v3714
    %v4217 = vpack.c.b16 %v3717, %v3716
    %v4218 = vpack.c.b16 %v3719, %v3718
    %v4219 = vpack.c.b16 %v3721, %v3720
    %v4220 = vpack.c.b16 %v3723, %v3722
    %v4221 = vpack.c.b16 %v3725, %v3724
    %v4222 = vpack.c.b16 %v3727, %v3726
    %v4223 = vpack.c.b16 %v3729, %v3728
    %v4224 = vpack.c.b16 %v3731, %v3730
    %v4225 = vpack.c.b16 %v3733, %v3732
    %v4226 = vpack.c.b16 %v3735, %v3734
    %v4227 = vpack.c.b16 %v3737, %v3736
    %v4228 = vpack.c.b16 %v3739, %v3738
    %v4229 = vpack.c.b16 %v3741, %v3740
    %v4230 = vpack.c.b16 %v3743, %v3742
    %v4231 = vpack.c.b16 %v3745, %v3744
    %v4232 = vpack.c.b16 %v3747, %v3746
    %v4233 = vpack.c.b16 %v3749, %v3748
    %v4234 = vpack.c.b16 %v3751, %v3750
    %v4235 = vpack.c.b16 %v3753, %v3752
    %v4236 = vpack.c.b16 %v3755, %v3754
    %v4237 = vpack.c.b16 %v3757, %v3756
    %v4238 = vpack.c.b16 %v3759, %v3758
    %v4239 = vpack.c.b16 %v3761, %v3760
    %v4240 = vpack.c.b16 %v3763, %v3762
    %v4241 = vpack.c.b16 %v3765, %v3764
    %v4242 = vpack.c.b16 %v3767, %v3766
    %v4243 = vpack.c.b16 %v3769, %v3768
    %v4244 = vpack.c.b16 %v3771, %v3770
    %v4245 = vpack.c.b16 %v3773, %v3772
    %v4246 = vpack.c.b16 %v3775, %v3774
    %v4247 = vpack.c.b16 %v3777, %v3776
    %v4248 = vpack.c.b16 %v3779, %v3778
    %v4249 = vpack.c.b16 %v3781, %v3780
    %v4250 = vpack.c.b16 %v3783, %v3782
    %v4251 = vpack.c.b16 %v3785, %v3784
    %v4252 = vpack.c.b16 %v3787, %v3786
    %v4253 = vpack.c.b16 %v3789, %v3788
    %v4254 = vpack.c.b16 %v3791, %v3790
    %v4255 = vpack.c.b16 %v3793, %v3792
    %v4256 = vpack.c.b16 %v3795, %v3794
    %v4257 = vpack.c.b16 %v3797, %v3796
    %v4258 = vpack.c.b16 %v3799, %v3798
    %v4259 = vpack.c.b16 %v3801, %v3800
    %v4260 = vpack.c.b16 %v3803, %v3802
    %v4261 = vpack.c.b16 %v3805, %v3804
    %v4262 = vpack.c.b16 %v3807, %v3806
    %v4263 = vpack.c.b16 %v3809, %v3808
    %v4264 = vpack.c.b16 %v3811, %v3810
    %v4265 = vpack.c.b16 %v3813, %v3812
    %v4266 = vpack.c.b16 %v3815, %v3814
    %v4267 = vpack.c.b16 %v3817, %v3816
    %v4268 = vpack.c.b16 %v3819, %v3818
    %v4269 = vpack.c.b16 %v3821, %v3820
    %v4270 = vpack.c.b16 %v3823, %v3822
    %v4271 = vpack.c.b16 %v3825, %v3824
    %v4272 = vpack.c.b16 %v3827, %v3826
    %v4273 = vpack.c.b16 %v3829, %v3828
    %v4274 = vpack.c.b16 %v3831, %v3830
    %v4275 = vpack.c.b16 %v3833, %v3832
    %v4276 = vpack.c.b16 %v3835, %v3834
    %v4277 = vpack.c.b16 %v3837, %v3836
    %v4278 = vpack.c.b16 %v3839, %v3838
    %v4279 = vpack.c.b16 %v3841, %v3840
    %v4280 = vpack.c.b16 %v3843, %v3842
    %v4281 = vpack.c.b16 %v3845, %v3844
    %v4282 = vpack.c.b16 %v3847, %v3846
    %v4283 = vpack.c.b16 %v3849, %v3848
    %v4284 = vpack.c.b16 %v3851, %v3850
    %v4285 = vpack.c.b16 %v3853, %v3852
    %v4286 = vpack.c.b16 %v3855, %v3854
    %v4287 = vpack.c.b16 %v3857, %v3856
    %v4288 = vpack.c.b16 %v3859, %v3858
    %v4289 = vpack.c.b16 %v3861, %v3860
    %v4290 = vpack.c.b16 %v3863, %v3862
    %v4291 = vpack.c.b16 %v3865, %v3864
    %v4292 = vpack.c.b16 %v3867, %v3866
    %v4293 = vpack.c.b16 %v3869, %v3868
    %v4294 = vpack.c.b16 %v3871, %v3870
    %v4295 = vpack.c.b16 %v3873, %v3872
    %v4296 = vpack.c.b16 %v3875, %v3874
    %v4297 = vpack.c.b16 %v3877, %v3876
    %v4298 = vpack.c.b16 %v3879, %v3878
    %v4299 = vpack.c.b16 %v3881, %v3880
    %v4300 = vpack.c.b16 %v3883, %v3882
    %v4301 = vpack.c.b16 %v3885, %v3884
    %v4302 = vpack.c.b16 %v3887, %v3886
    %v4303 = vpack.c.b16 %v3889, %v3888
    %v4304 = vpack.c.b16 %v3891, %v3890
    %v4305 = vpack.c.b16 %v3893, %v3892
    %v4306 = vpack.c.b16 %v3895, %v3894
    %v4307 = vpack.c.b16 %v3897, %v3896
    %v4308 = vpack.c.b16 %v3899, %v3898
    %v4309 = vpack.c.b16 %v3901, %v3900
    %v4310 = vpack.c.b16 %v3903, %v3902
    %v4311 = vpack.c.b16 %v3905, %v3904
    %v4312 = vpack.c.b16 %v3907, %v3906
    %v4313 = vpack.c.b16 %v3909, %v3908
    %v4314 = vpack.c.b16 %v3911, %v3910
    %v4315 = vpack.c.b16 %v3913, %v3912
    %v4316 = vpack.c.b16 %v3915, %v3914
    %v4317 = vpack.c.b16 %v3917, %v3916
    %v4318 = vpack.c.b16 %v3919, %v3918
    %v4319 = vpack.c.b16 %v3921, %v3920
    %v4320 = vpack.c.b16 %v3923, %v3922
    %v4321 = vpack.c.b16 %v3925, %v3924
    %v4322 = vpack.c.b16 %v3927, %v3926
    %v4323 = vpack.c.b16 %v3929, %v3928
    %v4324 = vpack.c.b16 %v3931, %v3930
    %v4325 = vpack.c.b16 %v3933, %v3932
    %v4326 = vpack.c.b16 %v3935, %v3934
    %v4327 = vpack.c.b16 %v3937, %v3936
    %v4328 = vpack.c.b16 %v3939, %v3938
    %v4329 = vpack.c.b16 %v3941, %v3940
    %v4330 = vpack.c.b16 %v3943, %v3942
    %v4331 = vpack.c.b16 %v3945, %v3944
    %v4332 = vpack.c.b16 %v3947, %v3946
    %v4333 = vpack.c.b16 %v3949, %v3948
    %v4334 = vpack.c.b16 %v3951, %v3950
    %v4335 = vpack.c.b16 %v3953, %v3952
    %v4336 = vpack.c.b16 %v3955, %v3954
    %v4337 = vpack.c.b16 %v3957, %v3956
    %v4338 = vpack.c.b16 %v3959, %v3958
    %v4339 = vpack.c.b16 %v3961, %v3960
    %v4340 = vpack.c.b16 %v3963, %v3962
    %v4341 = vpack.c.b16 %v3965, %v3964
    %v4342 = vpack.c.b16 %v3967, %v3966
    %v4343 = vpack.c.b16 %v3969, %v3968
    %v4344 = vpack.c.b16 %v3971, %v3970
    %v4345 = vpack.c.b16 %v3973, %v3972
    %v4346 = vpack.c.b16 %v3975, %v3974
    %v4347 = vpack.c.b16 %v3977, %v3976
    %v4348 = vpack.c.b16 %v3979, %v3978
    %v4349 = vpack.c.b16 %v3981, %v3980
    %v4350 = vpack.c.b16 %v3983, %v3982
    %v4351 = vpack.c.b16 %v3985, %v3984
    %v4352 = vpack.c.b16 %v3987, %v3986
    %v4353 = vpack.c.b16 %v3989, %v3988
    %v4354 = vpack.c.b16 %v3991, %v3990
    %v4355 = vpack.c.b16 %v3993, %v3992
    %v4356 = vpack.c.b16 %v3995, %v3994
    %v4357 = vpack.c.b16 %v3997, %v3996
    %v4358 = vpack.c.b16 %v3999, %v3998
    %v4359 = vpack.c.b16 %v4001, %v4000
    %v4360 = vpack.c.b16 %v4003, %v4002
    %v4361 = vpack.c.b16 %v4005, %v4004
    %v4362 = vpack.c.b16 %v4007, %v4006
    %v4363 = vpack.c.b16 %v4009, %v4008
    %v4364 = vpack.c.b16 %v4011, %v4010
    %v4365 = vpack.c.b16 %v4013, %v4012
    %v4366 = vpack.c.b16 %v4015, %v4014
    %v4367 = vpack.c.b16 %v4017, %v4016
    %v4368 = vpack.c.b16 %v4019, %v4018
    %v4369 = vpack.c.b16 %v4021, %v4020
    %v4370 = vpack.c.b16 %v4023, %v4022
    %v4371 = vpack.c.b16 %v4025, %v4024
    %v4372 = vpack.c.b16 %v4027, %v4026
    %v4373 = vpack.c.b16 %v4029, %v4028
    %v4374 = vpack.c.b16 %v4031, %v4030
    %v4375 = vpack.c.b16 %v4033, %v4032
    %v4376 = vpack.c.b16 %v4035, %v4034
    %v4377 = vpack.c.b16 %v4037, %v4036
    %v4378 = vpack.c.b16 %v4039, %v4038
    %v4379 = vpack.c.b16 %v4041, %v4040
    %v4380 = vpack.c.b16 %v4043, %v4042
    %v4381 = vpack.c.b16 %v4045, %v4044
    %v4382 = vpack.c.b16 %v4047, %v4046
    %v4383 = vpack.c.b16 %v4049, %v4048
    %v4384 = vpack.c.b16 %v4051, %v4050
    %v4385 = vpack.c.b16 %v4053, %v4052
    %v4386 = vpack.c.b16 %v4055, %v4054
    %v4387 = vpack.c.b16 %v4057, %v4056
    %v4388 = vpack.c.b16 %v4059, %v4058
    %v4389 = vpack.c.b16 %v4061, %v4060
    %v4390 = vpack.c.b16 %v4063, %v4062
    %v4391 = vpack.c.b16 %v4065, %v4064
    %v4392 = vpack.c.b16 %v4067, %v4066
    %v4393 = vpack.c.b16 %v4069, %v4068
    %v4394 = vpack.c.b16 %v4071, %v4070
    %v4395 = vpack.c.b16 %v4073, %v4072
    %v4396 = vpack.c.b16 %v4075, %v4074
    %v4397 = vpack.c.b16 %v4077, %v4076
    %v4398 = vpack.c.b16 %v4079, %v4078
    %v4399 = vpack.c.b16 %v4081, %v4080
    %v4400 = vpack.c.b16 %v4083, %v4082
    %v4401 = vpack.c.b16 %v4085, %v4084
    %v4402 = vpack.c.b16 %v4087, %v4086
    %v4403 = vpack.c.b16 %v4089, %v4088
    %v4404 = vpack.c.b16 %v4091, %v4090
    %v4405 = vpack.c.b16 %v4093, %v4092
    %v4406 = vpack.c.b16 %v4095, %v4094
    %v4407 = vpack.c.b16 %v4097, %v4096
    %v4408 = vpack.c.b16 %v4099, %v4098
    %v4409 = vpack.c.b16 %v4101, %v4100
    %v4410 = vpack.c.b16 %v4103, %v4102
    %v4411 = vpack.c.b16 %v4105, %v4104
    %v4412 = vpack.c.b16 %v4107, %v4106
    %v4413 = vpack.c.b16 %v4109, %v4108
    %v4414 = vpack.c.b16 %v4111, %v4110
    %v4415 = vpack.c.b16 %v4113, %v4112
    %v4416 = vpack.c.b16 %v4115, %v4114
    %v4417 = vpack.c.b16 %v4117, %v4116
    %v4418 = vpack.c.b16 %v4119, %v4118
    %v4419 = vpack.c.b16 %v4121, %v4120
    %v4420 = vpack.c.b16 %v4123, %v4122
    %v4421 = vpack.c.b16 %v4125, %v4124
    %v4422 = vpack.c.b16 %v4127, %v4126
    %v4423 = vpack.c.b16 %v4129, %v4128
    %v4424 = vpack.c.b16 %v4131, %v4130
    %v4425 = vpack.c.b16 %v4133, %v4132
    %v4426 = vpack.c.b16 %v4135, %v4134
    %v4427 = vpack.c.b16 %v4137, %v4136
    %v4428 = vpack.c.b16 %v4139, %v4138
    %v4429 = vpack.c.b16 %v4141, %v4140
    %v4430 = vpack.c.b16 %v4143, %v4142
    %v4431 = vpack.c.b16 %v4145, %v4144
    %v4432 = vpack.c.b16 %v4147, %v4146
    %v4433 = vpack.c.b16 %v4149, %v4148
    %v4434 = vpack.c.b16 %v4151, %v4150
    %v4435 = vpack.c.b16 %v4153, %v4152
    %v4436 = vpack.c.b16 %v4155, %v4154
    %v4437 = vpack.c.b16 %v4157, %v4156
    %v4438 = vpack.c.b16 %v4159, %v4158
    %v4439 = vpack.c.b16 %v4161, %v4160
    %v4440 = vpack.c.b16 %v4163, %v4162
    %v4441 = vpack.c.b16 %v4165, %v4164
    %v4442 = vpack.c.b16 %v4167, %v4166
    %v4443 = vpack.c.b16 %v4169, %v4168
    %v4444 = vpack.c.b16 %v4171, %v4170
    %v4445 = vpack.c.b16 %v4173, %v4172
    %v4446 = vpack.c.b16 %v4175, %v4174
    %v4447 = vpack.c.b16 %v4177, %v4176
    %v4448 = vpack.c.b16 %v4179, %v4178
    %v4449 = vpack.c.b16 %v4181, %v4180
    %v4450 = vpack.c.b16 %v4183, %v4182
    %v4451 = vpack.c.b16 %v4185, %v4184
    %v4452 = vpack.c.b16 %v4187, %v4186
    %v4453 = vpack.c.b16 %v4189, %v4188
    %v4454 = vpack.c.b16 %v4191, %v4190
    %v4455 = vpack.c.b16 %v4193, %v4192
    %v4456 = vpack.c.b16 %v4195, %v4194
    %v4457 = vpack.c.b16 %v4197, %v4196
    %v4458 = vpack.c.b16 %v4199, %v4198
    %v4459 = vpack.c.b16 %v4201, %v4200
    %v4460 = vpack.c.b16 %v4203, %v4202
    %v4461 = vpack.c.b16 %v4205, %v4204
    %4718 = vmatprep.subr.bf16.mxu0 0
    %4719 = vmatpush1.bf16.msra.mxu0 %v4213
    %4720 = vmatprep.subr.bf16.mxu0 0
    %4721 = vmatpush1.bf16.msra.mxu0 %v4212
    %4722 = vmatprep.subr.bf16.mxu0 0
    %4723 = vmatpush1.bf16.msra.mxu0 %v4211
    %4724 = vmatprep.subr.bf16.mxu0 0
    %4725 = vmatpush1.bf16.msra.mxu0 %v4210
    %4726 = vmatprep.subr.bf16.mxu0 0
    %4727 = vmatpush1.bf16.msra.mxu0 %v4209
    %4728 = vmatprep.subr.bf16.mxu0 0
    %4729 = vmatpush1.bf16.msra.mxu0 %v4208
    %4730 = vmatprep.subr.bf16.mxu0 0
    %4731 = vmatpush1.bf16.msra.mxu0 %v4207
    %4732 = vmatprep.subr.bf16.mxu0 0
    %4733 = vmatpush1.bf16.msra.mxu0 %v4206
    %4734 = vmatprep.subr.bf16.mxu0 0
    %4735 = vmatpush2.bf16.msra.mxu0 %v4221
    %4736 = vmatprep.subr.bf16.mxu0 0
    %4737 = vmatpush2.bf16.msra.mxu0 %v4220
    %4738 = vmatprep.subr.bf16.mxu0 0
    %4739 = vmatpush2.bf16.msra.mxu0 %v4219
    %4740 = vmatprep.subr.bf16.mxu0 0
    %4741 = vmatpush2.bf16.msra.mxu0 %v4218
    %4742 = vmatprep.subr.bf16.mxu0 0
    %4743 = vmatpush2.bf16.msra.mxu0 %v4217
    %4744 = vmatprep.subr.bf16.mxu0 0
    %4745 = vmatpush2.bf16.msra.mxu0 %v4216
    %4746 = vmatprep.subr.bf16.mxu0 0
    %4747 = vmatpush2.bf16.msra.mxu0 %v4215
    %4748 = vmatprep.subr.bf16.mxu0 0
    %4749 = vmatpush2.bf16.msra.mxu0 %v4214
    %4750 = vmatprep.mubr.bf16.mxu0 %v2632
    %4751 = vmatmul.mubr.bf16.gmra.mxu0 %v2631
    %v4752 = vpop.f32.mrf.mxu0
    %v4753 = vadd.f32 %v3180, %v4752
    %v4754 = vpop.f32.mrf.mxu0
    %v4755 = vpop.f32.mrf.mxu0
    %v4756 = vpop.f32.mrf.mxu0
    %4757 = vdwg.mxu0
    %4758 = vmatprep.subr.bf16.mxu0 0
    %4759 = vmatpush1.bf16.msra.mxu0 %v4229
    %4760 = vmatprep.subr.bf16.mxu0 0
    %4761 = vmatpush1.bf16.msra.mxu0 %v4228
    %4762 = vmatprep.subr.bf16.mxu0 0
    %4763 = vmatpush1.bf16.msra.mxu0 %v4227
    %4764 = vmatprep.subr.bf16.mxu0 0
    %4765 = vmatpush1.bf16.msra.mxu0 %v4226
    %4766 = vmatprep.subr.bf16.mxu0 0
    %4767 = vmatpush1.bf16.msra.mxu0 %v4225
    %4768 = vmatprep.subr.bf16.mxu0 0
    %4769 = vmatpush1.bf16.msra.mxu0 %v4224
    %4770 = vmatprep.subr.bf16.mxu0 0
    %4771 = vmatpush1.bf16.msra.mxu0 %v4223
    %4772 = vmatprep.subr.bf16.mxu0 0
    %4773 = vmatpush1.bf16.msra.mxu0 %v4222
    %4774 = vmatprep.subr.bf16.mxu0 0
    %4775 = vmatpush2.bf16.msra.mxu0 %v4237
    %4776 = vmatprep.subr.bf16.mxu0 0
    %4777 = vmatpush2.bf16.msra.mxu0 %v4236
    %4778 = vmatprep.subr.bf16.mxu0 0
    %4779 = vmatpush2.bf16.msra.mxu0 %v4235
    %4780 = vmatprep.subr.bf16.mxu0 0
    %4781 = vmatpush2.bf16.msra.mxu0 %v4234
    %4782 = vmatprep.subr.bf16.mxu0 0
    %4783 = vmatpush2.bf16.msra.mxu0 %v4233
    %4784 = vmatprep.subr.bf16.mxu0 0
    %4785 = vmatpush2.bf16.msra.mxu0 %v4232
    %4786 = vmatprep.subr.bf16.mxu0 0
    %4787 = vmatpush2.bf16.msra.mxu0 %v4231
    %4788 = vmatprep.subr.bf16.mxu0 0
    %4789 = vmatpush2.bf16.msra.mxu0 %v4230
    %4790 = vmatprep.mubr.bf16.mxu0 %v2634
    %4791 = vmatmul.mubr.bf16.gmra.mxu0 %v2633
    %v4792 = vpop.f32.mrf.mxu0
    %v4793 = vadd.f32 %v4753, %v4792
    %v4794 = vpop.f32.mrf.mxu0
    %v4795 = vpop.f32.mrf.mxu0
    %v4796 = vpop.f32.mrf.mxu0
    %4797 = vdwg.mxu0
    %4798 = vmatprep.subr.bf16.mxu0 0
    %4799 = vmatpush1.bf16.msra.mxu0 %v4245
    %4800 = vmatprep.subr.bf16.mxu0 0
    %4801 = vmatpush1.bf16.msra.mxu0 %v4244
    %4802 = vmatprep.subr.bf16.mxu0 0
    %4803 = vmatpush1.bf16.msra.mxu0 %v4243
    %4804 = vmatprep.subr.bf16.mxu0 0
    %4805 = vmatpush1.bf16.msra.mxu0 %v4242
    %4806 = vmatprep.subr.bf16.mxu0 0
    %4807 = vmatpush1.bf16.msra.mxu0 %v4241
    %4808 = vmatprep.subr.bf16.mxu0 0
    %4809 = vmatpush1.bf16.msra.mxu0 %v4240
    %4810 = vmatprep.subr.bf16.mxu0 0
    %4811 = vmatpush1.bf16.msra.mxu0 %v4239
    %4812 = vmatprep.subr.bf16.mxu0 0
    %4813 = vmatpush1.bf16.msra.mxu0 %v4238
    %4814 = vmatprep.subr.bf16.mxu0 0
    %4815 = vmatpush2.bf16.msra.mxu0 %v4253
    %4816 = vmatprep.subr.bf16.mxu0 0
    %4817 = vmatpush2.bf16.msra.mxu0 %v4252
    %4818 = vmatprep.subr.bf16.mxu0 0
    %4819 = vmatpush2.bf16.msra.mxu0 %v4251
    %4820 = vmatprep.subr.bf16.mxu0 0
    %4821 = vmatpush2.bf16.msra.mxu0 %v4250
    %4822 = vmatprep.subr.bf16.mxu0 0
    %4823 = vmatpush2.bf16.msra.mxu0 %v4249
    %4824 = vmatprep.subr.bf16.mxu0 0
    %4825 = vmatpush2.bf16.msra.mxu0 %v4248
    %4826 = vmatprep.subr.bf16.mxu0 0
    %4827 = vmatpush2.bf16.msra.mxu0 %v4247
    %4828 = vmatprep.subr.bf16.mxu0 0
    %4829 = vmatpush2.bf16.msra.mxu0 %v4246
    %4830 = vmatprep.mubr.bf16.mxu0 %v2636
    %4831 = vmatmul.mubr.bf16.gmra.mxu0 %v2635
    %v4832 = vpop.f32.mrf.mxu0
    %v4833 = vadd.f32 %v4793, %v4832
    %v4834 = vpop.f32.mrf.mxu0
    %v4835 = vpop.f32.mrf.mxu0
    %v4836 = vpop.f32.mrf.mxu0
    %4837 = vdwg.mxu0
    %4838 = vmatprep.subr.bf16.mxu0 0
    %4839 = vmatpush1.bf16.msra.mxu0 %v4261
    %4840 = vmatprep.subr.bf16.mxu0 0
    %4841 = vmatpush1.bf16.msra.mxu0 %v4260
    %4842 = vmatprep.subr.bf16.mxu0 0
    %4843 = vmatpush1.bf16.msra.mxu0 %v4259
    %4844 = vmatprep.subr.bf16.mxu0 0
    %4845 = vmatpush1.bf16.msra.mxu0 %v4258
    %4846 = vmatprep.subr.bf16.mxu0 0
    %4847 = vmatpush1.bf16.msra.mxu0 %v4257
    %4848 = vmatprep.subr.bf16.mxu0 0
    %4849 = vmatpush1.bf16.msra.mxu0 %v4256
    %4850 = vmatprep.subr.bf16.mxu0 0
    %4851 = vmatpush1.bf16.msra.mxu0 %v4255
    %4852 = vmatprep.subr.bf16.mxu0 0
    %4853 = vmatpush1.bf16.msra.mxu0 %v4254
    %4854 = vmatprep.subr.bf16.mxu0 0
    %4855 = vmatpush2.bf16.msra.mxu0 %v4269
    %4856 = vmatprep.subr.bf16.mxu0 0
    %4857 = vmatpush2.bf16.msra.mxu0 %v4268
    %4858 = vmatprep.subr.bf16.mxu0 0
    %4859 = vmatpush2.bf16.msra.mxu0 %v4267
    %4860 = vmatprep.subr.bf16.mxu0 0
    %4861 = vmatpush2.bf16.msra.mxu0 %v4266
    %4862 = vmatprep.subr.bf16.mxu0 0
    %4863 = vmatpush2.bf16.msra.mxu0 %v4265
    %4864 = vmatprep.subr.bf16.mxu0 0
    %4865 = vmatpush2.bf16.msra.mxu0 %v4264
    %4866 = vmatprep.subr.bf16.mxu0 0
    %4867 = vmatpush2.bf16.msra.mxu0 %v4263
    %4868 = vmatprep.subr.bf16.mxu0 0
    %4869 = vmatpush2.bf16.msra.mxu0 %v4262
    %4870 = vmatprep.mubr.bf16.mxu0 %v2638
    %4871 = vmatmul.mubr.bf16.gmra.mxu0 %v2637
    %v4872 = vpop.f32.mrf.mxu0
    %v4873 = vadd.f32 %v4833, %v4872
    %v4874 = vpop.f32.mrf.mxu0
    %v4875 = vpop.f32.mrf.mxu0
    %v4876 = vpop.f32.mrf.mxu0
    %4877 = vdwg.mxu0
    %4878 = vmatprep.subr.bf16.mxu0 0
    %4879 = vmatpush1.bf16.msra.mxu0 %v4277
    %4880 = vmatprep.subr.bf16.mxu0 0
    %4881 = vmatpush1.bf16.msra.mxu0 %v4276
    %4882 = vmatprep.subr.bf16.mxu0 0
    %4883 = vmatpush1.bf16.msra.mxu0 %v4275
    %4884 = vmatprep.subr.bf16.mxu0 0
    %4885 = vmatpush1.bf16.msra.mxu0 %v4274
    %4886 = vmatprep.subr.bf16.mxu0 0
    %4887 = vmatpush1.bf16.msra.mxu0 %v4273
    %4888 = vmatprep.subr.bf16.mxu0 0
    %4889 = vmatpush1.bf16.msra.mxu0 %v4272
    %4890 = vmatprep.subr.bf16.mxu0 0
    %4891 = vmatpush1.bf16.msra.mxu0 %v4271
    %4892 = vmatprep.subr.bf16.mxu0 0
    %4893 = vmatpush1.bf16.msra.mxu0 %v4270
    %4894 = vmatprep.subr.bf16.mxu0 0
    %4895 = vmatpush2.bf16.msra.mxu0 %v4285
    %4896 = vmatprep.subr.bf16.mxu0 0
    %4897 = vmatpush2.bf16.msra.mxu0 %v4284
    %4898 = vmatprep.subr.bf16.mxu0 0
    %4899 = vmatpush2.bf16.msra.mxu0 %v4283
    %4900 = vmatprep.subr.bf16.mxu0 0
    %4901 = vmatpush2.bf16.msra.mxu0 %v4282
    %4902 = vmatprep.subr.bf16.mxu0 0
    %4903 = vmatpush2.bf16.msra.mxu0 %v4281
    %4904 = vmatprep.subr.bf16.mxu0 0
    %4905 = vmatpush2.bf16.msra.mxu0 %v4280
    %4906 = vmatprep.subr.bf16.mxu0 0
    %4907 = vmatpush2.bf16.msra.mxu0 %v4279
    %4908 = vmatprep.subr.bf16.mxu0 0
    %4909 = vmatpush2.bf16.msra.mxu0 %v4278
    %4910 = vmatprep.mubr.bf16.mxu0 %v2640
    %4911 = vmatmul.mubr.bf16.gmra.mxu0 %v2639
    %v4912 = vpop.f32.mrf.mxu0
    %v4913 = vadd.f32 %v4873, %v4912
    %v4914 = vpop.f32.mrf.mxu0
    %v4915 = vpop.f32.mrf.mxu0
    %v4916 = vpop.f32.mrf.mxu0
    %4917 = vdwg.mxu0
    %4918 = vmatprep.subr.bf16.mxu0 0
    %4919 = vmatpush1.bf16.msra.mxu0 %v4293
    %4920 = vmatprep.subr.bf16.mxu0 0
    %4921 = vmatpush1.bf16.msra.mxu0 %v4292
    %4922 = vmatprep.subr.bf16.mxu0 0
    %4923 = vmatpush1.bf16.msra.mxu0 %v4291
    %4924 = vmatprep.subr.bf16.mxu0 0
    %4925 = vmatpush1.bf16.msra.mxu0 %v4290
    %4926 = vmatprep.subr.bf16.mxu0 0
    %4927 = vmatpush1.bf16.msra.mxu0 %v4289
    %4928 = vmatprep.subr.bf16.mxu0 0
    %4929 = vmatpush1.bf16.msra.mxu0 %v4288
    %4930 = vmatprep.subr.bf16.mxu0 0
    %4931 = vmatpush1.bf16.msra.mxu0 %v4287
    %4932 = vmatprep.subr.bf16.mxu0 0
    %4933 = vmatpush1.bf16.msra.mxu0 %v4286
    %4934 = vmatprep.subr.bf16.mxu0 0
    %4935 = vmatpush2.bf16.msra.mxu0 %v4301
    %4936 = vmatprep.subr.bf16.mxu0 0
    %4937 = vmatpush2.bf16.msra.mxu0 %v4300
    %4938 = vmatprep.subr.bf16.mxu0 0
    %4939 = vmatpush2.bf16.msra.mxu0 %v4299
    %4940 = vmatprep.subr.bf16.mxu0 0
    %4941 = vmatpush2.bf16.msra.mxu0 %v4298
    %4942 = vmatprep.subr.bf16.mxu0 0
    %4943 = vmatpush2.bf16.msra.mxu0 %v4297
    %4944 = vmatprep.subr.bf16.mxu0 0
    %4945 = vmatpush2.bf16.msra.mxu0 %v4296
    %4946 = vmatprep.subr.bf16.mxu0 0
    %4947 = vmatpush2.bf16.msra.mxu0 %v4295
    %4948 = vmatprep.subr.bf16.mxu0 0
    %4949 = vmatpush2.bf16.msra.mxu0 %v4294
    %4950 = vmatprep.mubr.bf16.mxu0 %v2642
    %4951 = vmatmul.mubr.bf16.gmra.mxu0 %v2641
    %v4952 = vpop.f32.mrf.mxu0
    %v4953 = vadd.f32 %v4913, %v4952
    %v4954 = vpop.f32.mrf.mxu0
    %v4955 = vpop.f32.mrf.mxu0
    %v4956 = vpop.f32.mrf.mxu0
    %4957 = vdwg.mxu0
    %4958 = vmatprep.subr.bf16.mxu0 0
    %4959 = vmatpush1.bf16.msra.mxu0 %v4309
    %4960 = vmatprep.subr.bf16.mxu0 0
    %4961 = vmatpush1.bf16.msra.mxu0 %v4308
    %4962 = vmatprep.subr.bf16.mxu0 0
    %4963 = vmatpush1.bf16.msra.mxu0 %v4307
    %4964 = vmatprep.subr.bf16.mxu0 0
    %4965 = vmatpush1.bf16.msra.mxu0 %v4306
    %4966 = vmatprep.subr.bf16.mxu0 0
    %4967 = vmatpush1.bf16.msra.mxu0 %v4305
    %4968 = vmatprep.subr.bf16.mxu0 0
    %4969 = vmatpush1.bf16.msra.mxu0 %v4304
    %4970 = vmatprep.subr.bf16.mxu0 0
    %4971 = vmatpush1.bf16.msra.mxu0 %v4303
    %4972 = vmatprep.subr.bf16.mxu0 0
    %4973 = vmatpush1.bf16.msra.mxu0 %v4302
    %4974 = vmatprep.subr.bf16.mxu0 0
    %4975 = vmatpush2.bf16.msra.mxu0 %v4317
    %4976 = vmatprep.subr.bf16.mxu0 0
    %4977 = vmatpush2.bf16.msra.mxu0 %v4316
    %4978 = vmatprep.subr.bf16.mxu0 0
    %4979 = vmatpush2.bf16.msra.mxu0 %v4315
    %4980 = vmatprep.subr.bf16.mxu0 0
    %4981 = vmatpush2.bf16.msra.mxu0 %v4314
    %4982 = vmatprep.subr.bf16.mxu0 0
    %4983 = vmatpush2.bf16.msra.mxu0 %v4313
    %4984 = vmatprep.subr.bf16.mxu0 0
    %4985 = vmatpush2.bf16.msra.mxu0 %v4312
    %4986 = vmatprep.subr.bf16.mxu0 0
    %4987 = vmatpush2.bf16.msra.mxu0 %v4311
    %4988 = vmatprep.subr.bf16.mxu0 0
    %4989 = vmatpush2.bf16.msra.mxu0 %v4310
    %4990 = vmatprep.mubr.bf16.mxu0 %v2644
    %4991 = vmatmul.mubr.bf16.gmra.mxu0 %v2643
    %v4992 = vpop.f32.mrf.mxu0
    %v4993 = vadd.f32 %v4953, %v4992
    %v4994 = vpop.f32.mrf.mxu0
    %v4995 = vpop.f32.mrf.mxu0
    %v4996 = vpop.f32.mrf.mxu0
    %4997 = vdwg.mxu0
    %4998 = vmatprep.subr.bf16.mxu0 0
    %4999 = vmatpush1.bf16.msra.mxu0 %v4325
    %5000 = vmatprep.subr.bf16.mxu0 0
    %5001 = vmatpush1.bf16.msra.mxu0 %v4324
    %5002 = vmatprep.subr.bf16.mxu0 0
    %5003 = vmatpush1.bf16.msra.mxu0 %v4323
    %5004 = vmatprep.subr.bf16.mxu0 0
    %5005 = vmatpush1.bf16.msra.mxu0 %v4322
    %5006 = vmatprep.subr.bf16.mxu0 0
    %5007 = vmatpush1.bf16.msra.mxu0 %v4321
    %5008 = vmatprep.subr.bf16.mxu0 0
    %5009 = vmatpush1.bf16.msra.mxu0 %v4320
    %5010 = vmatprep.subr.bf16.mxu0 0
    %5011 = vmatpush1.bf16.msra.mxu0 %v4319
    %5012 = vmatprep.subr.bf16.mxu0 0
    %5013 = vmatpush1.bf16.msra.mxu0 %v4318
    %5014 = vmatprep.subr.bf16.mxu0 0
    %5015 = vmatpush2.bf16.msra.mxu0 %v4333
    %5016 = vmatprep.subr.bf16.mxu0 0
    %5017 = vmatpush2.bf16.msra.mxu0 %v4332
    %5018 = vmatprep.subr.bf16.mxu0 0
    %5019 = vmatpush2.bf16.msra.mxu0 %v4331
    %5020 = vmatprep.subr.bf16.mxu0 0
    %5021 = vmatpush2.bf16.msra.mxu0 %v4330
    %5022 = vmatprep.subr.bf16.mxu0 0
    %5023 = vmatpush2.bf16.msra.mxu0 %v4329
    %5024 = vmatprep.subr.bf16.mxu0 0
    %5025 = vmatpush2.bf16.msra.mxu0 %v4328
    %5026 = vmatprep.subr.bf16.mxu0 0
    %5027 = vmatpush2.bf16.msra.mxu0 %v4327
    %5028 = vmatprep.subr.bf16.mxu0 0
    %5029 = vmatpush2.bf16.msra.mxu0 %v4326
    %5030 = vmatprep.mubr.bf16.mxu0 %v2646
    %5031 = vmatmul.mubr.bf16.gmra.mxu0 %v2645
    %v5032 = vpop.f32.mrf.mxu0
    %v5033 = vadd.f32 %v4993, %v5032
    %v5034 = vpop.f32.mrf.mxu0
    %v5035 = vpop.f32.mrf.mxu0
    %v5036 = vpop.f32.mrf.mxu0
    %5037 = vdwg.mxu0
    %5038 = vmatprep.subr.bf16.mxu0 0
    %5039 = vmatpush1.bf16.msra.mxu0 %v4341
    %5040 = vmatprep.subr.bf16.mxu0 0
    %5041 = vmatpush1.bf16.msra.mxu0 %v4340
    %5042 = vmatprep.subr.bf16.mxu0 0
    %5043 = vmatpush1.bf16.msra.mxu0 %v4339
    %5044 = vmatprep.subr.bf16.mxu0 0
    %5045 = vmatpush1.bf16.msra.mxu0 %v4338
    %5046 = vmatprep.subr.bf16.mxu0 0
    %5047 = vmatpush1.bf16.msra.mxu0 %v4337
    %5048 = vmatprep.subr.bf16.mxu0 0
    %5049 = vmatpush1.bf16.msra.mxu0 %v4336
    %5050 = vmatprep.subr.bf16.mxu0 0
    %5051 = vmatpush1.bf16.msra.mxu0 %v4335
    %5052 = vmatprep.subr.bf16.mxu0 0
    %5053 = vmatpush1.bf16.msra.mxu0 %v4334
    %5054 = vmatprep.subr.bf16.mxu0 0
    %5055 = vmatpush2.bf16.msra.mxu0 %v4349
    %5056 = vmatprep.subr.bf16.mxu0 0
    %5057 = vmatpush2.bf16.msra.mxu0 %v4348
    %5058 = vmatprep.subr.bf16.mxu0 0
    %5059 = vmatpush2.bf16.msra.mxu0 %v4347
    %5060 = vmatprep.subr.bf16.mxu0 0
    %5061 = vmatpush2.bf16.msra.mxu0 %v4346
    %5062 = vmatprep.subr.bf16.mxu0 0
    %5063 = vmatpush2.bf16.msra.mxu0 %v4345
    %5064 = vmatprep.subr.bf16.mxu0 0
    %5065 = vmatpush2.bf16.msra.mxu0 %v4344
    %5066 = vmatprep.subr.bf16.mxu0 0
    %5067 = vmatpush2.bf16.msra.mxu0 %v4343
    %5068 = vmatprep.subr.bf16.mxu0 0
    %5069 = vmatpush2.bf16.msra.mxu0 %v4342
    %5070 = vmatprep.mubr.bf16.mxu0 %v2648
    %5071 = vmatmul.mubr.bf16.gmra.mxu0 %v2647
    %v5072 = vpop.f32.mrf.mxu0
    %v5073 = vadd.f32 %v5033, %v5072
    %v5074 = vpop.f32.mrf.mxu0
    %v5075 = vpop.f32.mrf.mxu0
    %v5076 = vpop.f32.mrf.mxu0
    %5077 = vdwg.mxu0
    %5078 = vmatprep.subr.bf16.mxu0 0
    %5079 = vmatpush1.bf16.msra.mxu0 %v4357
    %5080 = vmatprep.subr.bf16.mxu0 0
    %5081 = vmatpush1.bf16.msra.mxu0 %v4356
    %5082 = vmatprep.subr.bf16.mxu0 0
    %5083 = vmatpush1.bf16.msra.mxu0 %v4355
    %5084 = vmatprep.subr.bf16.mxu0 0
    %5085 = vmatpush1.bf16.msra.mxu0 %v4354
    %5086 = vmatprep.subr.bf16.mxu0 0
    %5087 = vmatpush1.bf16.msra.mxu0 %v4353
    %5088 = vmatprep.subr.bf16.mxu0 0
    %5089 = vmatpush1.bf16.msra.mxu0 %v4352
    %5090 = vmatprep.subr.bf16.mxu0 0
    %5091 = vmatpush1.bf16.msra.mxu0 %v4351
    %5092 = vmatprep.subr.bf16.mxu0 0
    %5093 = vmatpush1.bf16.msra.mxu0 %v4350
    %5094 = vmatprep.subr.bf16.mxu0 0
    %5095 = vmatpush2.bf16.msra.mxu0 %v4365
    %5096 = vmatprep.subr.bf16.mxu0 0
    %5097 = vmatpush2.bf16.msra.mxu0 %v4364
    %5098 = vmatprep.subr.bf16.mxu0 0
    %5099 = vmatpush2.bf16.msra.mxu0 %v4363
    %5100 = vmatprep.subr.bf16.mxu0 0
    %5101 = vmatpush2.bf16.msra.mxu0 %v4362
    %5102 = vmatprep.subr.bf16.mxu0 0
    %5103 = vmatpush2.bf16.msra.mxu0 %v4361
    %5104 = vmatprep.subr.bf16.mxu0 0
    %5105 = vmatpush2.bf16.msra.mxu0 %v4360
    %5106 = vmatprep.subr.bf16.mxu0 0
    %5107 = vmatpush2.bf16.msra.mxu0 %v4359
    %5108 = vmatprep.subr.bf16.mxu0 0
    %5109 = vmatpush2.bf16.msra.mxu0 %v4358
    %5110 = vmatprep.mubr.bf16.mxu0 %v2650
    %5111 = vmatmul.mubr.bf16.gmra.mxu0 %v2649
    %v5112 = vpop.f32.mrf.mxu0
    %v5113 = vadd.f32 %v5073, %v5112
    %v5114 = vpop.f32.mrf.mxu0
    %v5115 = vpop.f32.mrf.mxu0
    %v5116 = vpop.f32.mrf.mxu0
    %5117 = vdwg.mxu0
    %5118 = vmatprep.subr.bf16.mxu0 0
    %5119 = vmatpush1.bf16.msra.mxu0 %v4373
    %5120 = vmatprep.subr.bf16.mxu0 0
    %5121 = vmatpush1.bf16.msra.mxu0 %v4372
    %5122 = vmatprep.subr.bf16.mxu0 0
    %5123 = vmatpush1.bf16.msra.mxu0 %v4371
    %5124 = vmatprep.subr.bf16.mxu0 0
    %5125 = vmatpush1.bf16.msra.mxu0 %v4370
    %5126 = vmatprep.subr.bf16.mxu0 0
    %5127 = vmatpush1.bf16.msra.mxu0 %v4369
    %5128 = vmatprep.subr.bf16.mxu0 0
    %5129 = vmatpush1.bf16.msra.mxu0 %v4368
    %5130 = vmatprep.subr.bf16.mxu0 0
    %5131 = vmatpush1.bf16.msra.mxu0 %v4367
    %5132 = vmatprep.subr.bf16.mxu0 0
    %5133 = vmatpush1.bf16.msra.mxu0 %v4366
    %5134 = vmatprep.subr.bf16.mxu0 0
    %5135 = vmatpush2.bf16.msra.mxu0 %v4381
    %5136 = vmatprep.subr.bf16.mxu0 0
    %5137 = vmatpush2.bf16.msra.mxu0 %v4380
    %5138 = vmatprep.subr.bf16.mxu0 0
    %5139 = vmatpush2.bf16.msra.mxu0 %v4379
    %5140 = vmatprep.subr.bf16.mxu0 0
    %5141 = vmatpush2.bf16.msra.mxu0 %v4378
    %5142 = vmatprep.subr.bf16.mxu0 0
    %5143 = vmatpush2.bf16.msra.mxu0 %v4377
    %5144 = vmatprep.subr.bf16.mxu0 0
    %5145 = vmatpush2.bf16.msra.mxu0 %v4376
    %5146 = vmatprep.subr.bf16.mxu0 0
    %5147 = vmatpush2.bf16.msra.mxu0 %v4375
    %5148 = vmatprep.subr.bf16.mxu0 0
    %5149 = vmatpush2.bf16.msra.mxu0 %v4374
    %5150 = vmatprep.mubr.bf16.mxu0 %v2652
    %5151 = vmatmul.mubr.bf16.gmra.mxu0 %v2651
    %v5152 = vpop.f32.mrf.mxu0
    %v5153 = vadd.f32 %v5113, %v5152
    %v5154 = vpop.f32.mrf.mxu0
    %v5155 = vpop.f32.mrf.mxu0
    %v5156 = vpop.f32.mrf.mxu0
    %5157 = vdwg.mxu0
    %5158 = vmatprep.subr.bf16.mxu0 0
    %5159 = vmatpush1.bf16.msra.mxu0 %v4389
    %5160 = vmatprep.subr.bf16.mxu0 0
    %5161 = vmatpush1.bf16.msra.mxu0 %v4388
    %5162 = vmatprep.subr.bf16.mxu0 0
    %5163 = vmatpush1.bf16.msra.mxu0 %v4387
    %5164 = vmatprep.subr.bf16.mxu0 0
    %5165 = vmatpush1.bf16.msra.mxu0 %v4386
    %5166 = vmatprep.subr.bf16.mxu0 0
    %5167 = vmatpush1.bf16.msra.mxu0 %v4385
    %5168 = vmatprep.subr.bf16.mxu0 0
    %5169 = vmatpush1.bf16.msra.mxu0 %v4384
    %5170 = vmatprep.subr.bf16.mxu0 0
    %5171 = vmatpush1.bf16.msra.mxu0 %v4383
    %5172 = vmatprep.subr.bf16.mxu0 0
    %5173 = vmatpush1.bf16.msra.mxu0 %v4382
    %5174 = vmatprep.subr.bf16.mxu0 0
    %5175 = vmatpush2.bf16.msra.mxu0 %v4397
    %5176 = vmatprep.subr.bf16.mxu0 0
    %5177 = vmatpush2.bf16.msra.mxu0 %v4396
    %5178 = vmatprep.subr.bf16.mxu0 0
    %5179 = vmatpush2.bf16.msra.mxu0 %v4395
    %5180 = vmatprep.subr.bf16.mxu0 0
    %5181 = vmatpush2.bf16.msra.mxu0 %v4394
    %5182 = vmatprep.subr.bf16.mxu0 0
    %5183 = vmatpush2.bf16.msra.mxu0 %v4393
    %5184 = vmatprep.subr.bf16.mxu0 0
    %5185 = vmatpush2.bf16.msra.mxu0 %v4392
    %5186 = vmatprep.subr.bf16.mxu0 0
    %5187 = vmatpush2.bf16.msra.mxu0 %v4391
    %5188 = vmatprep.subr.bf16.mxu0 0
    %5189 = vmatpush2.bf16.msra.mxu0 %v4390
    %5190 = vmatprep.mubr.bf16.mxu0 %v2654
    %5191 = vmatmul.mubr.bf16.gmra.mxu0 %v2653
    %v5192 = vpop.f32.mrf.mxu0
    %v5193 = vadd.f32 %v5153, %v5192
    %v5194 = vpop.f32.mrf.mxu0
    %v5195 = vpop.f32.mrf.mxu0
    %v5196 = vpop.f32.mrf.mxu0
    %5197 = vdwg.mxu0
    %5198 = vmatprep.subr.bf16.mxu0 0
    %5199 = vmatpush1.bf16.msra.mxu0 %v4405
    %5200 = vmatprep.subr.bf16.mxu0 0
    %5201 = vmatpush1.bf16.msra.mxu0 %v4404
    %5202 = vmatprep.subr.bf16.mxu0 0
    %5203 = vmatpush1.bf16.msra.mxu0 %v4403
    %5204 = vmatprep.subr.bf16.mxu0 0
    %5205 = vmatpush1.bf16.msra.mxu0 %v4402
    %5206 = vmatprep.subr.bf16.mxu0 0
    %5207 = vmatpush1.bf16.msra.mxu0 %v4401
    %5208 = vmatprep.subr.bf16.mxu0 0
    %5209 = vmatpush1.bf16.msra.mxu0 %v4400
    %5210 = vmatprep.subr.bf16.mxu0 0
    %5211 = vmatpush1.bf16.msra.mxu0 %v4399
    %5212 = vmatprep.subr.bf16.mxu0 0
    %5213 = vmatpush1.bf16.msra.mxu0 %v4398
    %5214 = vmatprep.subr.bf16.mxu0 0
    %5215 = vmatpush2.bf16.msra.mxu0 %v4413
    %5216 = vmatprep.subr.bf16.mxu0 0
    %5217 = vmatpush2.bf16.msra.mxu0 %v4412
    %5218 = vmatprep.subr.bf16.mxu0 0
    %5219 = vmatpush2.bf16.msra.mxu0 %v4411
    %5220 = vmatprep.subr.bf16.mxu0 0
    %5221 = vmatpush2.bf16.msra.mxu0 %v4410
    %5222 = vmatprep.subr.bf16.mxu0 0
    %5223 = vmatpush2.bf16.msra.mxu0 %v4409
    %5224 = vmatprep.subr.bf16.mxu0 0
    %5225 = vmatpush2.bf16.msra.mxu0 %v4408
    %5226 = vmatprep.subr.bf16.mxu0 0
    %5227 = vmatpush2.bf16.msra.mxu0 %v4407
    %5228 = vmatprep.subr.bf16.mxu0 0
    %5229 = vmatpush2.bf16.msra.mxu0 %v4406
    %5230 = vmatprep.mubr.bf16.mxu0 %v2656
    %5231 = vmatmul.mubr.bf16.gmra.mxu0 %v2655
    %v5232 = vpop.f32.mrf.mxu0
    %v5233 = vadd.f32 %v5193, %v5232
    %v5234 = vpop.f32.mrf.mxu0
    %v5235 = vpop.f32.mrf.mxu0
    %v5236 = vpop.f32.mrf.mxu0
    %5237 = vdwg.mxu0
    %5238 = vmatprep.subr.bf16.mxu0 0
    %5239 = vmatpush1.bf16.msra.mxu0 %v4421
    %5240 = vmatprep.subr.bf16.mxu0 0
    %5241 = vmatpush1.bf16.msra.mxu0 %v4420
    %5242 = vmatprep.subr.bf16.mxu0 0
    %5243 = vmatpush1.bf16.msra.mxu0 %v4419
    %5244 = vmatprep.subr.bf16.mxu0 0
    %5245 = vmatpush1.bf16.msra.mxu0 %v4418
    %5246 = vmatprep.subr.bf16.mxu0 0
    %5247 = vmatpush1.bf16.msra.mxu0 %v4417
    %5248 = vmatprep.subr.bf16.mxu0 0
    %5249 = vmatpush1.bf16.msra.mxu0 %v4416
    %5250 = vmatprep.subr.bf16.mxu0 0
    %5251 = vmatpush1.bf16.msra.mxu0 %v4415
    %5252 = vmatprep.subr.bf16.mxu0 0
    %5253 = vmatpush1.bf16.msra.mxu0 %v4414
    %5254 = vmatprep.subr.bf16.mxu0 0
    %5255 = vmatpush2.bf16.msra.mxu0 %v4429
    %5256 = vmatprep.subr.bf16.mxu0 0
    %5257 = vmatpush2.bf16.msra.mxu0 %v4428
    %5258 = vmatprep.subr.bf16.mxu0 0
    %5259 = vmatpush2.bf16.msra.mxu0 %v4427
    %5260 = vmatprep.subr.bf16.mxu0 0
    %5261 = vmatpush2.bf16.msra.mxu0 %v4426
    %5262 = vmatprep.subr.bf16.mxu0 0
    %5263 = vmatpush2.bf16.msra.mxu0 %v4425
    %5264 = vmatprep.subr.bf16.mxu0 0
    %5265 = vmatpush2.bf16.msra.mxu0 %v4424
    %5266 = vmatprep.subr.bf16.mxu0 0
    %5267 = vmatpush2.bf16.msra.mxu0 %v4423
    %5268 = vmatprep.subr.bf16.mxu0 0
    %5269 = vmatpush2.bf16.msra.mxu0 %v4422
    %5270 = vmatprep.mubr.bf16.mxu0 %v2658
    %5271 = vmatmul.mubr.bf16.gmra.mxu0 %v2657
    %v5272 = vpop.f32.mrf.mxu0
    %v5273 = vadd.f32 %v5233, %v5272
    %v5274 = vpop.f32.mrf.mxu0
    %v5275 = vpop.f32.mrf.mxu0
    %v5276 = vpop.f32.mrf.mxu0
    %5277 = vdwg.mxu0
    %5278 = vmatprep.subr.bf16.mxu0 0
    %5279 = vmatpush1.bf16.msra.mxu0 %v4437
    %5280 = vmatprep.subr.bf16.mxu0 0
    %5281 = vmatpush1.bf16.msra.mxu0 %v4436
    %5282 = vmatprep.subr.bf16.mxu0 0
    %5283 = vmatpush1.bf16.msra.mxu0 %v4435
    %5284 = vmatprep.subr.bf16.mxu0 0
    %5285 = vmatpush1.bf16.msra.mxu0 %v4434
    %5286 = vmatprep.subr.bf16.mxu0 0
    %5287 = vmatpush1.bf16.msra.mxu0 %v4433
    %5288 = vmatprep.subr.bf16.mxu0 0
    %5289 = vmatpush1.bf16.msra.mxu0 %v4432
    %5290 = vmatprep.subr.bf16.mxu0 0
    %5291 = vmatpush1.bf16.msra.mxu0 %v4431
    %5292 = vmatprep.subr.bf16.mxu0 0
    %5293 = vmatpush1.bf16.msra.mxu0 %v4430
    %5294 = vmatprep.subr.bf16.mxu0 0
    %5295 = vmatpush2.bf16.msra.mxu0 %v4445
    %5296 = vmatprep.subr.bf16.mxu0 0
    %5297 = vmatpush2.bf16.msra.mxu0 %v4444
    %5298 = vmatprep.subr.bf16.mxu0 0
    %5299 = vmatpush2.bf16.msra.mxu0 %v4443
    %5300 = vmatprep.subr.bf16.mxu0 0
    %5301 = vmatpush2.bf16.msra.mxu0 %v4442
    %5302 = vmatprep.subr.bf16.mxu0 0
    %5303 = vmatpush2.bf16.msra.mxu0 %v4441
    %5304 = vmatprep.subr.bf16.mxu0 0
    %5305 = vmatpush2.bf16.msra.mxu0 %v4440
    %5306 = vmatprep.subr.bf16.mxu0 0
    %5307 = vmatpush2.bf16.msra.mxu0 %v4439
    %5308 = vmatprep.subr.bf16.mxu0 0
    %5309 = vmatpush2.bf16.msra.mxu0 %v4438
    %5310 = vmatprep.mubr.bf16.mxu0 %v2660
    %5311 = vmatmul.mubr.bf16.gmra.mxu0 %v2659
    %v5312 = vpop.f32.mrf.mxu0
    %v5313 = vadd.f32 %v5273, %v5312
    %v5314 = vpop.f32.mrf.mxu0
    %v5315 = vpop.f32.mrf.mxu0
    %v5316 = vpop.f32.mrf.mxu0
    %5317 = vdwg.mxu0
    %5318 = vmatprep.subr.bf16.mxu0 0
    %5319 = vmatpush1.bf16.msra.mxu0 %v4453
    %5320 = vmatprep.subr.bf16.mxu0 0
    %5321 = vmatpush1.bf16.msra.mxu0 %v4452
    %5322 = vmatprep.subr.bf16.mxu0 0
    %5323 = vmatpush1.bf16.msra.mxu0 %v4451
    %5324 = vmatprep.subr.bf16.mxu0 0
    %5325 = vmatpush1.bf16.msra.mxu0 %v4450
    %5326 = vmatprep.subr.bf16.mxu0 0
    %5327 = vmatpush1.bf16.msra.mxu0 %v4449
    %5328 = vmatprep.subr.bf16.mxu0 0
    %5329 = vmatpush1.bf16.msra.mxu0 %v4448
    %5330 = vmatprep.subr.bf16.mxu0 0
    %5331 = vmatpush1.bf16.msra.mxu0 %v4447
    %5332 = vmatprep.subr.bf16.mxu0 0
    %5333 = vmatpush1.bf16.msra.mxu0 %v4446
    %5334 = vmatprep.subr.bf16.mxu0 0
    %5335 = vmatpush2.bf16.msra.mxu0 %v4461
    %5336 = vmatprep.subr.bf16.mxu0 0
    %5337 = vmatpush2.bf16.msra.mxu0 %v4460
    %5338 = vmatprep.subr.bf16.mxu0 0
    %5339 = vmatpush2.bf16.msra.mxu0 %v4459
    %5340 = vmatprep.subr.bf16.mxu0 0
    %5341 = vmatpush2.bf16.msra.mxu0 %v4458
    %5342 = vmatprep.subr.bf16.mxu0 0
    %5343 = vmatpush2.bf16.msra.mxu0 %v4457
    %5344 = vmatprep.subr.bf16.mxu0 0
    %5345 = vmatpush2.bf16.msra.mxu0 %v4456
    %5346 = vmatprep.subr.bf16.mxu0 0
    %5347 = vmatpush2.bf16.msra.mxu0 %v4455
    %5348 = vmatprep.subr.bf16.mxu0 0
    %5349 = vmatpush2.bf16.msra.mxu0 %v4454
    %5350 = vmatprep.mubr.bf16.mxu0 %v2662
    %5351 = vmatmul.mubr.bf16.gmra.mxu0 %v2661
    %v5352 = vpop.f32.mrf.mxu0
    %v5353 = vadd.f32 %v5313, %v5352
    %v5354 = vpop.f32.mrf.mxu0
    %v5355 = vpop.f32.mrf.mxu0
    %v5356 = vpop.f32.mrf.mxu0
    %5357 = vdwg.mxu0
    %5358 = vst.msk [vmem:[#allocation2] sm:$0xff] %vm835, %v5353
    // Predicated region
    $region26: #{tpu_custom_call.1} parent=1 // pred_check
      _
    $region27: #{tpu_custom_call.1} parent=1 // pred_check_branch
      %5360 = sbr.rel (0) target = $region29
    $region28: #{tpu_custom_call.1} parent=1 // pred_region
      %s5362 = ssub.s32 128, 128
      %5363 = vsyncadd [#allocation3], %s5362
      %s5365 = sshll.u32 [#allocation2], 4
      %s5366 = int_to_ptr.vmem [resolvable:$true] %s5365
      %5368 = dma.vmem_to_hbm [thread:$0]  %s5366, 128, %s6, [#allocation3]
    $region29: #{tpu_custom_call.1} parent=1 // pred_fallthru
      _
    // Predicated region
    $region30: #{tpu_custom_call.1} parent=1 // pred_check
      _
    $region31: #{tpu_custom_call.1} parent=1 // pred_check_branch
      %5370 = sbr.rel (0) target = $region33
    $region32: #{tpu_custom_call.1} parent=1 // pred_region
      %5371 = dma.done [#allocation3], 128
    $region33: #{tpu_custom_call.1} parent=1 // pred_fallthru
      _
    %5372 = vsyncpa [#allocation3], 1

</llo_original>
